<compile_context>
chip_gen: v5e
topology: v5e:2x2
jax: 0.10.0
libtpu: 0.0.40
codegen_flags: <defaults>
</compile_context>

<pallas_src>
import jax
import jax.numpy as jnp
import numpy as np
from jax import lax
from jax.experimental import pallas as pl
from jax.experimental.pallas import tpu as pltpu

NEG_SLOPE = 0.01   # nn.LeakyReLU default negative_slope
BN_EPS = 1e-5      # nn.BatchNorm2d default eps

VMEM_TILE_BUDGET = 48 * 1024 * 1024   # fits v7x's 64 MiB / TC with headroom


def _leaky_relu(x):
    return jnp.where(x >= 0, x, NEG_SLOPE * x)


def resnet_block_kernel(x_ref, w1_ref, t1_ref, w2_ref, t2_ref, o_ref, y_ref):
    """One (batch, row-tile) step of the fused ResNet block.

    x_ref  : (1, TH+4, W+4, Cp) f32   halo slab of the doubly padded input
                                      (auto-pipelined: DMA overlaps compute)
    w1_ref : (9, Cp, Cp)        bf16  conv1 weights, bn1 scale folded in
    t1_ref : (1, Cp)            f32   bn1 shift
    w2_ref : (9, Cp, Cp)        bf16  conv2 weights, bn2 scale folded in
    t2_ref : (1, Cp)            f32   bn2 shift
    o_ref  : (1, TH, W, Cp)     f32   output tile
    y_ref  : (TH+2, W+2, Cp)    f32   scratch: conv1 output on conv2's
                                      zero-padded grid
    """
    _, TH4, Wpp, Cp = x_ref.shape
    TH = TH4 - 4
    W = Wpp - 4
    r = pl.program_id(1)

    # ---- conv1 (bn1 scale folded into w1) on the (TH+2, W) interior --------
    rows1 = (TH + 2) * W
    acc1 = jnp.zeros((rows1, Cp), jnp.float32)
    for kh in range(3):
        for kw in range(3):
            patch = x_ref[0, kh:kh + TH + 2, kw + 1:kw + 1 + W, :]
            acc1 = acc1 + jnp.dot(
                patch.reshape(rows1, Cp).astype(jnp.bfloat16),
                w1_ref[kh * 3 + kw],
                preferred_element_type=jnp.float32)
    y_int = _leaky_relu(acc1 + t1_ref[...]).reshape(TH + 2, W, Cp)

    # conv1's output lands on conv2's zero-padded grid.  Only the two border
    # columns (and, for the first/last row tile, the top/bottom row) need to
    # be zero — no full-slab zero fill per step.
    y_ref[:, 1:W + 1, :] = y_int
    zcol = jnp.zeros((TH + 2, 1, Cp), jnp.float32)
    y_ref[:, 0:1, :] = zcol
    y_ref[:, W + 1:W + 2, :] = zcol

    @pl.when(r == 0)
    def _():
        y_ref[0] = jnp.zeros((W + 2, Cp), jnp.float32)

    @pl.when(r == pl.num_programs(1) - 1)
    def _():
        y_ref[TH + 1] = jnp.zeros((W + 2, Cp), jnp.float32)

    # ---- conv2 (bn2 scale folded into w2) -----------------------------------
    rows2 = TH * W
    acc2 = jnp.zeros((rows2, Cp), jnp.float32)
    for kh in range(3):
        for kw in range(3):
            patch = y_ref[kh:kh + TH, kw:kw + W, :]
            acc2 = acc2 + jnp.dot(
                patch.reshape(rows2, Cp).astype(jnp.bfloat16),
                w2_ref[kh * 3 + kw],
                preferred_element_type=jnp.float32)

    # ---- bn2 shift, identity residual (read from the slab), final LeakyReLU -
    res = x_ref[0, 2:TH + 2, 2:W + 2, :].reshape(rows2, Cp)
    out = acc2 + t2_ref[...] + res
    o_ref[0] = _leaky_relu(out).reshape(TH, W, Cp)


def make_params(key, inplanes, planes):
    ks = jax.random.split(key, 10)
    p = dict(
        w1=0.1 * jax.random.normal(ks[0], (planes, inplanes, 3, 3), jnp.float32),
        g1=1.0 + 0.1 * jax.random.normal(ks[1], (planes,), jnp.float32),
        b1=0.05 * jax.random.normal(ks[2], (planes,), jnp.float32),
        m1=0.1 * jax.random.normal(ks[3], (planes,), jnp.float32),
        v1=1.0 + 0.1 * jnp.abs(jax.random.normal(ks[4], (planes,), jnp.float32)),
        w2=0.1 * jax.random.normal(ks[5], (planes, planes, 3, 3), jnp.float32),
        g2=1.0 + 0.1 * jax.random.normal(ks[6], (planes,), jnp.float32),
        b2=0.05 * jax.random.normal(ks[7], (planes,), jnp.float32),
        m2=0.1 * jax.random.normal(ks[8], (planes,), jnp.float32),
        v2=1.0 + 0.1 * jnp.abs(jax.random.normal(ks[9], (planes,), jnp.float32)),
    )
    return p


def _fold_bn(gamma, beta, mean, var):
    scale = gamma / jnp.sqrt(var + BN_EPS)
    shift = beta - mean * scale
    return scale, shift


def _vmem_working_set(TH, W, Cp):
    slab = 2 * (TH + 4) * (W + 4) * Cp * 4   # double-buffered f32 halo slab
    outb = 2 * TH * W * Cp * 4               # double-buffered f32 output tile
    wts = 2 * 2 * 9 * Cp * Cp * 2            # w1 + w2 (bf16), double-buffered
    y = (TH + 2) * (W + 2) * Cp * 4          # f32 conv1-output scratch
    return slab + outb + wts + y


def _pick_tile_h(H, W, Cp, budget_bytes):
    """Largest divisor of H whose per-step VMEM working set fits the budget."""
    for th in range(H, 0, -1):
        if H % th:
            continue
        if _vmem_working_set(th, W, Cp) <= budget_bytes:
            return th
    return 1


def resnet_block_forward(x_nchw, p):
    x = jnp.transpose(x_nchw, (0, 2, 3, 1)).astype(jnp.float32)   # NCHW -> NHWC
    N, H, W, Cin = x.shape
    planes = p["w1"].shape[0]
    assert Cin == planes, "identity residual requires inplanes == planes"

    # Lane-dense / MXU-shaped channel padding.
    Cp = ((max(Cin, planes) + 127) // 128) * 128
    TH = _pick_tile_h(H, W, Cp, VMEM_TILE_BUDGET)
    n_rt = H // TH

    # Single padded copy of the activation; the residual is read from it
    # inside the kernel (no separate residual input / extra HBM pass).
    xpp = jnp.pad(x, ((0, 0), (2, 2), (2, 2), (0, Cp - Cin)))

    # Overlapping (TH+4)-row halo slabs: blocked specs + auto-pipeline give
    # free double-buffering of the HBM->VMEM copy.  For TH == H (the shipped
    # case) this is exactly the padded input, no duplication.
    slabs = jnp.stack([xpp[:, r * TH:r * TH + TH + 4] for r in range(n_rt)],
                      axis=1).reshape(N * n_rt, TH + 4, W + 4, Cp)

    s1, t1 = _fold_bn(p["g1"], p["b1"], p["m1"], p["v1"])
    s2, t2 = _fold_bn(p["g2"], p["b2"], p["m2"], p["v2"])

    # OIHW -> HWIO, fold BN scale into the output channels, pad, cast to bf16
    # for the MXU (accumulation stays f32 in-kernel).
    w1f = jnp.pad(jnp.transpose(p["w1"], (2, 3, 1, 0)) * s1,
                  ((0, 0), (0, 0), (0, Cp - Cin), (0, Cp - planes)))
    w2f = jnp.pad(jnp.transpose(p["w2"], (2, 3, 1, 0)) * s2,
                  ((0, 0), (0, 0), (0, Cp - planes), (0, Cp - planes)))
    w1f = w1f.reshape(9, Cp, Cp).astype(jnp.bfloat16)
    w2f = w2f.reshape(9, Cp, Cp).astype(jnp.bfloat16)
    t1f = jnp.pad(t1, (0, Cp - planes)).reshape(1, Cp).astype(jnp.float32)
    t2f = jnp.pad(t2, (0, Cp - planes)).reshape(1, Cp).astype(jnp.float32)

    ws = _vmem_working_set(TH, W, Cp)
    vmem_limit = int(min(max(ws + (8 << 20), 32 << 20), 60 << 20))

    grid_spec = pltpu.PrefetchScalarGridSpec(
        num_scalar_prefetch=0,
        grid=(N, n_rt),
        in_specs=[
            # Halo slab (auto-pipelined / double-buffered by Pallas).
            pl.BlockSpec((1, TH + 4, W + 4, Cp),
                         lambda n, r: (n * n_rt + r, 0, 0, 0)),
            # Grid-invariant weights / shifts: constant index maps keep them
            # VMEM-resident across the whole grid.
            pl.BlockSpec((9, Cp, Cp), lambda n, r: (0, 0, 0)),   # w1 (bf16)
            pl.BlockSpec((1, Cp), lambda n, r: (0, 0)),          # t1
            pl.BlockSpec((9, Cp, Cp), lambda n, r: (0, 0, 0)),   # w2 (bf16)
            pl.BlockSpec((1, Cp), lambda n, r: (0, 0)),          # t2
        ],
        out_specs=pl.BlockSpec((1, TH, W, Cp), lambda n, r: (n, r, 0, 0)),
        scratch_shapes=[pltpu.VMEM((TH + 2, W + 2, Cp), jnp.float32)],
    )

    flops = 2 * 2 * 9 * N * H * W * Cp * Cp
    bytes_accessed = (int(slabs.size) * 4
                      + int(w1f.size + w2f.size) * 2
                      + int(t1f.size + t2f.size) * 4
                      + N * H * W * Cp * 4)

    out_nhwc = pl.pallas_call(
        resnet_block_kernel,
        out_shape=jax.ShapeDtypeStruct((N, H, W, Cp), jnp.float32),
        grid_spec=grid_spec,
        compiler_params=pltpu.CompilerParams(
            dimension_semantics=("parallel", "parallel"),
            vmem_limit_bytes=vmem_limit),
        cost_estimate=pl.CostEstimate(flops=flops, transcendentals=0,
                                      bytes_accessed=bytes_accessed),
    )(slabs, w1f, t1f, w2f, t2f)

    # drop channel padding, NHWC -> NCHW
    return jnp.transpose(out_nhwc[..., :planes], (0, 3, 1, 2))


def resnet_block_reference(x_nchw, p):
    def conv(x, w):
        return lax.conv_general_dilated(
            x, w, window_strides=(1, 1), padding=((1, 1), (1, 1)),
            dimension_numbers=('NCHW', 'OIHW', 'NCHW'))

    def bn(x, g, b, m, v):
        return ((x - m[None, :, None, None]) /
                jnp.sqrt(v + BN_EPS)[None, :, None, None] *
                g[None, :, None, None] + b[None, :, None, None])

    out = conv(x_nchw, p["w1"])
    out = bn(out, p["g1"], p["b1"], p["m1"], p["v1"])
    out = _leaky_relu(out)
    out = conv(out, p["w2"])
    out = bn(out, p["g2"], p["b2"], p["m2"], p["v2"])
    out = out + x_nchw
    return _leaky_relu(out)


if __name__ == "__main__":
    key = jax.random.PRNGKey(0)
    kx, kp = jax.random.split(key)

    N, C, H, W = 2, 4, 16, 16          # inplanes = planes = 4, stride = 1
    x = jax.random.normal(kx, (N, C, H, W), jnp.float32)
    params = make_params(kp, inplanes=C, planes=C)

    out = jax.block_until_ready(resnet_block_forward(x, params))
    ref = jax.block_until_ready(resnet_block_reference(x, params))

    # bf16 MXU operands with f32 accumulation -> loosened tolerance vs f32 ref.
    np.testing.assert_allclose(np.asarray(out), np.asarray(ref),
                               rtol=2e-2, atol=2e-2)
    print("KERNEL_OK")
</pallas_src>

<mosaic_0001>
module attributes {stable_mosaic.version = 11 : i64} {
  func.func @resnet_block_kernel(%arg0: i32, %arg1: i32, %arg2: memref<1x20x20x128xf32, #tpu.memory_space<vmem>>, %arg3: memref<9x128x128xbf16, #tpu.memory_space<vmem>>, %arg4: memref<1x128xf32, #tpu.memory_space<vmem>>, %arg5: memref<9x128x128xbf16, #tpu.memory_space<vmem>>, %arg6: memref<1x128xf32, #tpu.memory_space<vmem>>, %arg7: memref<1x16x16x128xf32, #tpu.memory_space<vmem>>, %arg8: memref<18x18x128xf32, #tpu.memory_space<vmem>>) attributes {dimension_semantics = [#tpu.dimension_semantics<parallel>, #tpu.dimension_semantics<parallel>], iteration_bounds = array<i64: 2, 1>, scalar_prefetch = 0 : i64, scratch_operands = 1 : i64, tpu.core_type = #tpu.core_type<tc>, window_params = [{transform_indices = @transform_0, window_bounds = array<i64: 1, 20, 20, 128>}, {pipeline_mode = #tpu.pipeline_mode<synchronous>, transform_indices = @transform_1, window_bounds = array<i64: 9, 128, 128>}, {pipeline_mode = #tpu.pipeline_mode<synchronous>, transform_indices = @transform_2, window_bounds = array<i64: 1, 128>}, {pipeline_mode = #tpu.pipeline_mode<synchronous>, transform_indices = @transform_3, window_bounds = array<i64: 9, 128, 128>}, {pipeline_mode = #tpu.pipeline_mode<synchronous>, transform_indices = @transform_4, window_bounds = array<i64: 1, 128>}, {transform_indices = @transform_5, window_bounds = array<i64: 1, 16, 16, 128>}]} {
    %cst = arith.constant 0.000000e+00 : f32
    %0 = vector.broadcast %cst : f32 to vector<288x128xf32>
    %c0 = arith.constant 0 : index
    %c0_0 = arith.constant 0 : index
    %c1 = arith.constant 1 : index
    %c0_1 = arith.constant 0 : index
    %1 = vector.load %arg2[%c0, %c0_0, %c1, %c0_1] : memref<1x20x20x128xf32, #tpu.memory_space<vmem>>, vector<1x18x16x128xf32>
    %2 = vector.shape_cast %1 : vector<1x18x16x128xf32> to vector<18x16x128xf32>
    %3 = vector.shape_cast %2 : vector<18x16x128xf32> to vector<288x128xf32>
    %4 = arith.truncf %3 : vector<288x128xf32> to vector<288x128xbf16>
    %c0_2 = arith.constant 0 : index
    %c0_3 = arith.constant 0 : index
    %c0_4 = arith.constant 0 : index
    %5 = vector.load %arg3[%c0_2, %c0_3, %c0_4] : memref<9x128x128xbf16, #tpu.memory_space<vmem>>, vector<1x128x128xbf16>
    %6 = vector.shape_cast %5 : vector<1x128x128xbf16> to vector<128x128xbf16>
    %cst_5 = arith.constant dense<0.000000e+00> : vector<288x128xf32>
    %7 = tpu.matmul %4, %6, %cst_5 {dimension_numbers = #tpu.dot_dimension_numbers<[1], [0], [0], [1], [0, 0, 1, 1], [], []>} : vector<288x128xbf16>, vector<128x128xbf16>, vector<288x128xf32> -> vector<288x128xf32>
    %8 = arith.addf %0, %7 : vector<288x128xf32>
    %c0_6 = arith.constant 0 : index
    %c0_7 = arith.constant 0 : index
    %c2 = arith.constant 2 : index
    %c0_8 = arith.constant 0 : index
    %9 = vector.load %arg2[%c0_6, %c0_7, %c2, %c0_8] : memref<1x20x20x128xf32, #tpu.memory_space<vmem>>, vector<1x18x16x128xf32>
    %10 = vector.shape_cast %9 : vector<1x18x16x128xf32> to vector<18x16x128xf32>
    %11 = vector.shape_cast %10 : vector<18x16x128xf32> to vector<288x128xf32>
    %12 = arith.truncf %11 : vector<288x128xf32> to vector<288x128xbf16>
    %c1_9 = arith.constant 1 : index
    %c0_10 = arith.constant 0 : index
    %c0_11 = arith.constant 0 : index
    %13 = vector.load %arg3[%c1_9, %c0_10, %c0_11] : memref<9x128x128xbf16, #tpu.memory_space<vmem>>, vector<1x128x128xbf16>
    %14 = vector.shape_cast %13 : vector<1x128x128xbf16> to vector<128x128xbf16>
    %cst_12 = arith.constant dense<0.000000e+00> : vector<288x128xf32>
    %15 = tpu.matmul %12, %14, %cst_12 {dimension_numbers = #tpu.dot_dimension_numbers<[1], [0], [0], [1], [0, 0, 1, 1], [], []>} : vector<288x128xbf16>, vector<128x128xbf16>, vector<288x128xf32> -> vector<288x128xf32>
    %16 = arith.addf %8, %15 : vector<288x128xf32>
    %c0_13 = arith.constant 0 : index
    %c0_14 = arith.constant 0 : index
    %c3 = arith.constant 3 : index
    %c0_15 = arith.constant 0 : index
    %17 = vector.load %arg2[%c0_13, %c0_14, %c3, %c0_15] : memref<1x20x20x128xf32, #tpu.memory_space<vmem>>, vector<1x18x16x128xf32>
    %18 = vector.shape_cast %17 : vector<1x18x16x128xf32> to vector<18x16x128xf32>
    %19 = vector.shape_cast %18 : vector<18x16x128xf32> to vector<288x128xf32>
    %20 = arith.truncf %19 : vector<288x128xf32> to vector<288x128xbf16>
    %c2_16 = arith.constant 2 : index
    %c0_17 = arith.constant 0 : index
    %c0_18 = arith.constant 0 : index
    %21 = vector.load %arg3[%c2_16, %c0_17, %c0_18] : memref<9x128x128xbf16, #tpu.memory_space<vmem>>, vector<1x128x128xbf16>
    %22 = vector.shape_cast %21 : vector<1x128x128xbf16> to vector<128x128xbf16>
    %cst_19 = arith.constant dense<0.000000e+00> : vector<288x128xf32>
    %23 = tpu.matmul %20, %22, %cst_19 {dimension_numbers = #tpu.dot_dimension_numbers<[1], [0], [0], [1], [0, 0, 1, 1], [], []>} : vector<288x128xbf16>, vector<128x128xbf16>, vector<288x128xf32> -> vector<288x128xf32>
    %24 = arith.addf %16, %23 : vector<288x128xf32>
    %c0_20 = arith.constant 0 : index
    %c1_21 = arith.constant 1 : index
    %c1_22 = arith.constant 1 : index
    %c0_23 = arith.constant 0 : index
    %25 = vector.load %arg2[%c0_20, %c1_21, %c1_22, %c0_23] : memref<1x20x20x128xf32, #tpu.memory_space<vmem>>, vector<1x18x16x128xf32>
    %26 = vector.shape_cast %25 : vector<1x18x16x128xf32> to vector<18x16x128xf32>
    %27 = vector.shape_cast %26 : vector<18x16x128xf32> to vector<288x128xf32>
    %28 = arith.truncf %27 : vector<288x128xf32> to vector<288x128xbf16>
    %c3_24 = arith.constant 3 : index
    %c0_25 = arith.constant 0 : index
    %c0_26 = arith.constant 0 : index
    %29 = vector.load %arg3[%c3_24, %c0_25, %c0_26] : memref<9x128x128xbf16, #tpu.memory_space<vmem>>, vector<1x128x128xbf16>
    %30 = vector.shape_cast %29 : vector<1x128x128xbf16> to vector<128x128xbf16>
    %cst_27 = arith.constant dense<0.000000e+00> : vector<288x128xf32>
    %31 = tpu.matmul %28, %30, %cst_27 {dimension_numbers = #tpu.dot_dimension_numbers<[1], [0], [0], [1], [0, 0, 1, 1], [], []>} : vector<288x128xbf16>, vector<128x128xbf16>, vector<288x128xf32> -> vector<288x128xf32>
    %32 = arith.addf %24, %31 : vector<288x128xf32>
    %c0_28 = arith.constant 0 : index
    %c1_29 = arith.constant 1 : index
    %c2_30 = arith.constant 2 : index
    %c0_31 = arith.constant 0 : index
    %33 = vector.load %arg2[%c0_28, %c1_29, %c2_30, %c0_31] : memref<1x20x20x128xf32, #tpu.memory_space<vmem>>, vector<1x18x16x128xf32>
    %34 = vector.shape_cast %33 : vector<1x18x16x128xf32> to vector<18x16x128xf32>
    %35 = vector.shape_cast %34 : vector<18x16x128xf32> to vector<288x128xf32>
    %36 = arith.truncf %35 : vector<288x128xf32> to vector<288x128xbf16>
    %c4 = arith.constant 4 : index
    %c0_32 = arith.constant 0 : index
    %c0_33 = arith.constant 0 : index
    %37 = vector.load %arg3[%c4, %c0_32, %c0_33] : memref<9x128x128xbf16, #tpu.memory_space<vmem>>, vector<1x128x128xbf16>
    %38 = vector.shape_cast %37 : vector<1x128x128xbf16> to vector<128x128xbf16>
    %cst_34 = arith.constant dense<0.000000e+00> : vector<288x128xf32>
    %39 = tpu.matmul %36, %38, %cst_34 {dimension_numbers = #tpu.dot_dimension_numbers<[1], [0], [0], [1], [0, 0, 1, 1], [], []>} : vector<288x128xbf16>, vector<128x128xbf16>, vector<288x128xf32> -> vector<288x128xf32>
    %40 = arith.addf %32, %39 : vector<288x128xf32>
    %c0_35 = arith.constant 0 : index
    %c1_36 = arith.constant 1 : index
    %c3_37 = arith.constant 3 : index
    %c0_38 = arith.constant 0 : index
    %41 = vector.load %arg2[%c0_35, %c1_36, %c3_37, %c0_38] : memref<1x20x20x128xf32, #tpu.memory_space<vmem>>, vector<1x18x16x128xf32>
    %42 = vector.shape_cast %41 : vector<1x18x16x128xf32> to vector<18x16x128xf32>
    %43 = vector.shape_cast %42 : vector<18x16x128xf32> to vector<288x128xf32>
    %44 = arith.truncf %43 : vector<288x128xf32> to vector<288x128xbf16>
    %c5 = arith.constant 5 : index
    %c0_39 = arith.constant 0 : index
    %c0_40 = arith.constant 0 : index
    %45 = vector.load %arg3[%c5, %c0_39, %c0_40] : memref<9x128x128xbf16, #tpu.memory_space<vmem>>, vector<1x128x128xbf16>
    %46 = vector.shape_cast %45 : vector<1x128x128xbf16> to vector<128x128xbf16>
    %cst_41 = arith.constant dense<0.000000e+00> : vector<288x128xf32>
    %47 = tpu.matmul %44, %46, %cst_41 {dimension_numbers = #tpu.dot_dimension_numbers<[1], [0], [0], [1], [0, 0, 1, 1], [], []>} : vector<288x128xbf16>, vector<128x128xbf16>, vector<288x128xf32> -> vector<288x128xf32>
    %48 = arith.addf %40, %47 : vector<288x128xf32>
    %c0_42 = arith.constant 0 : index
    %c2_43 = arith.constant 2 : index
    %c1_44 = arith.constant 1 : index
    %c0_45 = arith.constant 0 : index
    %49 = vector.load %arg2[%c0_42, %c2_43, %c1_44, %c0_45] : memref<1x20x20x128xf32, #tpu.memory_space<vmem>>, vector<1x18x16x128xf32>
    %50 = vector.shape_cast %49 : vector<1x18x16x128xf32> to vector<18x16x128xf32>
    %51 = vector.shape_cast %50 : vector<18x16x128xf32> to vector<288x128xf32>
    %52 = arith.truncf %51 : vector<288x128xf32> to vector<288x128xbf16>
    %c6 = arith.constant 6 : index
    %c0_46 = arith.constant 0 : index
    %c0_47 = arith.constant 0 : index
    %53 = vector.load %arg3[%c6, %c0_46, %c0_47] : memref<9x128x128xbf16, #tpu.memory_space<vmem>>, vector<1x128x128xbf16>
    %54 = vector.shape_cast %53 : vector<1x128x128xbf16> to vector<128x128xbf16>
    %cst_48 = arith.constant dense<0.000000e+00> : vector<288x128xf32>
    %55 = tpu.matmul %52, %54, %cst_48 {dimension_numbers = #tpu.dot_dimension_numbers<[1], [0], [0], [1], [0, 0, 1, 1], [], []>} : vector<288x128xbf16>, vector<128x128xbf16>, vector<288x128xf32> -> vector<288x128xf32>
    %56 = arith.addf %48, %55 : vector<288x128xf32>
    %c0_49 = arith.constant 0 : index
    %c2_50 = arith.constant 2 : index
    %c2_51 = arith.constant 2 : index
    %c0_52 = arith.constant 0 : index
    %57 = vector.load %arg2[%c0_49, %c2_50, %c2_51, %c0_52] : memref<1x20x20x128xf32, #tpu.memory_space<vmem>>, vector<1x18x16x128xf32>
    %58 = vector.shape_cast %57 : vector<1x18x16x128xf32> to vector<18x16x128xf32>
    %59 = vector.shape_cast %58 : vector<18x16x128xf32> to vector<288x128xf32>
    %60 = arith.truncf %59 : vector<288x128xf32> to vector<288x128xbf16>
    %c7 = arith.constant 7 : index
    %c0_53 = arith.constant 0 : index
    %c0_54 = arith.constant 0 : index
    %61 = vector.load %arg3[%c7, %c0_53, %c0_54] : memref<9x128x128xbf16, #tpu.memory_space<vmem>>, vector<1x128x128xbf16>
    %62 = vector.shape_cast %61 : vector<1x128x128xbf16> to vector<128x128xbf16>
    %cst_55 = arith.constant dense<0.000000e+00> : vector<288x128xf32>
    %63 = tpu.matmul %60, %62, %cst_55 {dimension_numbers = #tpu.dot_dimension_numbers<[1], [0], [0], [1], [0, 0, 1, 1], [], []>} : vector<288x128xbf16>, vector<128x128xbf16>, vector<288x128xf32> -> vector<288x128xf32>
    %64 = arith.addf %56, %63 : vector<288x128xf32>
    %c0_56 = arith.constant 0 : index
    %c2_57 = arith.constant 2 : index
    %c3_58 = arith.constant 3 : index
    %c0_59 = arith.constant 0 : index
    %65 = vector.load %arg2[%c0_56, %c2_57, %c3_58, %c0_59] : memref<1x20x20x128xf32, #tpu.memory_space<vmem>>, vector<1x18x16x128xf32>
    %66 = vector.shape_cast %65 : vector<1x18x16x128xf32> to vector<18x16x128xf32>
    %67 = vector.shape_cast %66 : vector<18x16x128xf32> to vector<288x128xf32>
    %68 = arith.truncf %67 : vector<288x128xf32> to vector<288x128xbf16>
    %c8 = arith.constant 8 : index
    %c0_60 = arith.constant 0 : index
    %c0_61 = arith.constant 0 : index
    %69 = vector.load %arg3[%c8, %c0_60, %c0_61] : memref<9x128x128xbf16, #tpu.memory_space<vmem>>, vector<1x128x128xbf16>
    %70 = vector.shape_cast %69 : vector<1x128x128xbf16> to vector<128x128xbf16>
    %cst_62 = arith.constant dense<0.000000e+00> : vector<288x128xf32>
    %71 = tpu.matmul %68, %70, %cst_62 {dimension_numbers = #tpu.dot_dimension_numbers<[1], [0], [0], [1], [0, 0, 1, 1], [], []>} : vector<288x128xbf16>, vector<128x128xbf16>, vector<288x128xf32> -> vector<288x128xf32>
    %72 = arith.addf %64, %71 : vector<288x128xf32>
    %c0_63 = arith.constant 0 : index
    %c0_64 = arith.constant 0 : index
    %73 = vector.load %arg4[%c0_63, %c0_64] : memref<1x128xf32, #tpu.memory_space<vmem>>, vector<1x128xf32>
    %74 = vector.broadcast %73 : vector<1x128xf32> to vector<288x128xf32>
    %75 = arith.addf %72, %74 : vector<288x128xf32>
    %cst_65 = arith.constant 0.000000e+00 : f32
    %76 = vector.broadcast %cst_65 : f32 to vector<288x128xf32>
    %77 = arith.cmpf oge, %75, %76 : vector<288x128xf32>
    %cst_66 = arith.constant 0.00999999977 : f32
    %78 = vector.broadcast %cst_66 : f32 to vector<288x128xf32>
    %79 = arith.mulf %78, %75 : vector<288x128xf32>
    %80 = arith.select %77, %75, %79 : vector<288x128xi1>, vector<288x128xf32>
    %81 = vector.shape_cast %80 : vector<288x128xf32> to vector<18x16x128xf32>
    %c0_67 = arith.constant 0 : index
    %c1_68 = arith.constant 1 : index
    %c0_69 = arith.constant 0 : index
    %82 = vector.load %arg8[%c0_67, %c1_68, %c0_69] : memref<18x18x128xf32, #tpu.memory_space<vmem>>, vector<18x16x128xf32>
    tpu.vector_store %arg8[%c0_67, %c1_68, %c0_69], %81 {strides = array<i32>} : memref<18x18x128xf32, #tpu.memory_space<vmem>>, vector<18x16x128xf32>,
    %cst_70 = arith.constant 0.000000e+00 : f32
    %83 = vector.broadcast %cst_70 : f32 to vector<18x1x128xf32>
    %c0_71 = arith.constant 0 : index
    %c0_72 = arith.constant 0 : index
    %c0_73 = arith.constant 0 : index
    %84 = vector.load %arg8[%c0_71, %c0_72, %c0_73] : memref<18x18x128xf32, #tpu.memory_space<vmem>>, vector<18x1x128xf32>
    tpu.vector_store %arg8[%c0_71, %c0_72, %c0_73], %83 {strides = array<i32>} : memref<18x18x128xf32, #tpu.memory_space<vmem>>, vector<18x1x128xf32>,
    %c0_74 = arith.constant 0 : index
    %c17 = arith.constant 17 : index
    %c0_75 = arith.constant 0 : index
    %85 = vector.load %arg8[%c0_74, %c17, %c0_75] : memref<18x18x128xf32, #tpu.memory_space<vmem>>, vector<18x1x128xf32>
    tpu.vector_store %arg8[%c0_74, %c17, %c0_75], %83 {strides = array<i32>} : memref<18x18x128xf32, #tpu.memory_space<vmem>>, vector<18x1x128xf32>,
    %c0_i32 = arith.constant 0 : i32
    %86 = arith.cmpi eq, %arg1, %c0_i32 : i32
    %87 = arith.extui %86 : i1 to i32
    %c0_i32_76 = arith.constant 0 : i32
    %88 = arith.cmpi ne, %87, %c0_i32_76 : i32
    scf.if %88 {
      %cst_155 = arith.constant 0.000000e+00 : f32
      %172 = vector.broadcast %cst_155 : f32 to vector<18x128xf32>
      %c0_156 = arith.constant 0 : index
      %c0_157 = arith.constant 0 : index
      %c0_158 = arith.constant 0 : index
      %173 = vector.load %arg8[%c0_156, %c0_157, %c0_158] : memref<18x18x128xf32, #tpu.memory_space<vmem>>, vector<1x18x128xf32>
      %174 = vector.shape_cast %173 : vector<1x18x128xf32> to vector<18x128xf32>
      %175 = vector.shape_cast %172 : vector<18x128xf32> to vector<1x18x128xf32>
      tpu.vector_store %arg8[%c0_156, %c0_157, %c0_158], %175 {strides = array<i32>} : memref<18x18x128xf32, #tpu.memory_space<vmem>>, vector<1x18x128xf32>,
    } else {
    }
    %c0_i32_77 = arith.constant 0 : i32
    %89 = arith.cmpi eq, %arg1, %c0_i32_77 : i32
    %90 = arith.extui %89 : i1 to i32
    %c0_i32_78 = arith.constant 0 : i32
    %91 = arith.cmpi ne, %90, %c0_i32_78 : i32
    scf.if %91 {
      %cst_155 = arith.constant 0.000000e+00 : f32
      %172 = vector.broadcast %cst_155 : f32 to vector<18x128xf32>
      %c17_156 = arith.constant 17 : index
      %c0_157 = arith.constant 0 : index
      %c0_158 = arith.constant 0 : index
      %173 = vector.load %arg8[%c17_156, %c0_157, %c0_158] : memref<18x18x128xf32, #tpu.memory_space<vmem>>, vector<1x18x128xf32>
      %174 = vector.shape_cast %173 : vector<1x18x128xf32> to vector<18x128xf32>
      %175 = vector.shape_cast %172 : vector<18x128xf32> to vector<1x18x128xf32>
      tpu.vector_store %arg8[%c17_156, %c0_157, %c0_158], %175 {strides = array<i32>} : memref<18x18x128xf32, #tpu.memory_space<vmem>>, vector<1x18x128xf32>,
    } else {
    }
    %cst_79 = arith.constant 0.000000e+00 : f32
    %92 = vector.broadcast %cst_79 : f32 to vector<256x128xf32>
    %c0_80 = arith.constant 0 : index
    %c0_81 = arith.constant 0 : index
    %c0_82 = arith.constant 0 : index
    %93 = vector.load %arg8[%c0_80, %c0_81, %c0_82] : memref<18x18x128xf32, #tpu.memory_space<vmem>>, vector<16x16x128xf32>
    %94 = vector.shape_cast %93 : vector<16x16x128xf32> to vector<256x128xf32>
    %95 = arith.truncf %94 : vector<256x128xf32> to vector<256x128xbf16>
    %c0_83 = arith.constant 0 : index
    %c0_84 = arith.constant 0 : index
    %c0_85 = arith.constant 0 : index
    %96 = vector.load %arg5[%c0_83, %c0_84, %c0_85] : memref<9x128x128xbf16, #tpu.memory_space<vmem>>, vector<1x128x128xbf16>
    %97 = vector.shape_cast %96 : vector<1x128x128xbf16> to vector<128x128xbf16>
    %cst_86 = arith.constant dense<0.000000e+00> : vector<256x128xf32>
    %98 = tpu.matmul %95, %97, %cst_86 {dimension_numbers = #tpu.dot_dimension_numbers<[1], [0], [0], [1], [0, 0, 1, 1], [], []>} : vector<256x128xbf16>, vector<128x128xbf16>, vector<256x128xf32> -> vector<256x128xf32>
    %99 = arith.addf %92, %98 : vector<256x128xf32>
    %c0_87 = arith.constant 0 : index
    %c1_88 = arith.constant 1 : index
    %c0_89 = arith.constant 0 : index
    %100 = vector.load %arg8[%c0_87, %c1_88, %c0_89] : memref<18x18x128xf32, #tpu.memory_space<vmem>>, vector<16x16x128xf32>
    %101 = vector.shape_cast %100 : vector<16x16x128xf32> to vector<256x128xf32>
    %102 = arith.truncf %101 : vector<256x128xf32> to vector<256x128xbf16>
    %c1_90 = arith.constant 1 : index
    %c0_91 = arith.constant 0 : index
    %c0_92 = arith.constant 0 : index
    %103 = vector.load %arg5[%c1_90, %c0_91, %c0_92] : memref<9x128x128xbf16, #tpu.memory_space<vmem>>, vector<1x128x128xbf16>
    %104 = vector.shape_cast %103 : vector<1x128x128xbf16> to vector<128x128xbf16>
    %cst_93 = arith.constant dense<0.000000e+00> : vector<256x128xf32>
    %105 = tpu.matmul %102, %104, %cst_93 {dimension_numbers = #tpu.dot_dimension_numbers<[1], [0], [0], [1], [0, 0, 1, 1], [], []>} : vector<256x128xbf16>, vector<128x128xbf16>, vector<256x128xf32> -> vector<256x128xf32>
    %106 = arith.addf %99, %105 : vector<256x128xf32>
    %c0_94 = arith.constant 0 : index
    %c2_95 = arith.constant 2 : index
    %c0_96 = arith.constant 0 : index
    %107 = vector.load %arg8[%c0_94, %c2_95, %c0_96] : memref<18x18x128xf32, #tpu.memory_space<vmem>>, vector<16x16x128xf32>
    %108 = vector.shape_cast %107 : vector<16x16x128xf32> to vector<256x128xf32>
    %109 = arith.truncf %108 : vector<256x128xf32> to vector<256x128xbf16>
    %c2_97 = arith.constant 2 : index
    %c0_98 = arith.constant 0 : index
    %c0_99 = arith.constant 0 : index
    %110 = vector.load %arg5[%c2_97, %c0_98, %c0_99] : memref<9x128x128xbf16, #tpu.memory_space<vmem>>, vector<1x128x128xbf16>
    %111 = vector.shape_cast %110 : vector<1x128x128xbf16> to vector<128x128xbf16>
    %cst_100 = arith.constant dense<0.000000e+00> : vector<256x128xf32>
    %112 = tpu.matmul %109, %111, %cst_100 {dimension_numbers = #tpu.dot_dimension_numbers<[1], [0], [0], [1], [0, 0, 1, 1], [], []>} : vector<256x128xbf16>, vector<128x128xbf16>, vector<256x128xf32> -> vector<256x128xf32>
    %113 = arith.addf %106, %112 : vector<256x128xf32>
    %c1_101 = arith.constant 1 : index
    %c0_102 = arith.constant 0 : index
    %c0_103 = arith.constant 0 : index
    %114 = vector.load %arg8[%c1_101, %c0_102, %c0_103] : memref<18x18x128xf32, #tpu.memory_space<vmem>>, vector<16x16x128xf32>
    %115 = vector.shape_cast %114 : vector<16x16x128xf32> to vector<256x128xf32>
    %116 = arith.truncf %115 : vector<256x128xf32> to vector<256x128xbf16>
    %c3_104 = arith.constant 3 : index
    %c0_105 = arith.constant 0 : index
    %c0_106 = arith.constant 0 : index
    %117 = vector.load %arg5[%c3_104, %c0_105, %c0_106] : memref<9x128x128xbf16, #tpu.memory_space<vmem>>, vector<1x128x128xbf16>
    %118 = vector.shape_cast %117 : vector<1x128x128xbf16> to vector<128x128xbf16>
    %cst_107 = arith.constant dense<0.000000e+00> : vector<256x128xf32>
    %119 = tpu.matmul %116, %118, %cst_107 {dimension_numbers = #tpu.dot_dimension_numbers<[1], [0], [0], [1], [0, 0, 1, 1], [], []>} : vector<256x128xbf16>, vector<128x128xbf16>, vector<256x128xf32> -> vector<256x128xf32>
    %120 = arith.addf %113, %119 : vector<256x128xf32>
    %c1_108 = arith.constant 1 : index
    %c1_109 = arith.constant 1 : index
    %c0_110 = arith.constant 0 : index
    %121 = vector.load %arg8[%c1_108, %c1_109, %c0_110] : memref<18x18x128xf32, #tpu.memory_space<vmem>>, vector<16x16x128xf32>
    %122 = vector.shape_cast %121 : vector<16x16x128xf32> to vector<256x128xf32>
    %123 = arith.truncf %122 : vector<256x128xf32> to vector<256x128xbf16>
    %c4_111 = arith.constant 4 : index
    %c0_112 = arith.constant 0 : index
    %c0_113 = arith.constant 0 : index
    %124 = vector.load %arg5[%c4_111, %c0_112, %c0_113] : memref<9x128x128xbf16, #tpu.memory_space<vmem>>, vector<1x128x128xbf16>
    %125 = vector.shape_cast %124 : vector<1x128x128xbf16> to vector<128x128xbf16>
    %cst_114 = arith.constant dense<0.000000e+00> : vector<256x128xf32>
    %126 = tpu.matmul %123, %125, %cst_114 {dimension_numbers = #tpu.dot_dimension_numbers<[1], [0], [0], [1], [0, 0, 1, 1], [], []>} : vector<256x128xbf16>, vector<128x128xbf16>, vector<256x128xf32> -> vector<256x128xf32>
    %127 = arith.addf %120, %126 : vector<256x128xf32>
    %c1_115 = arith.constant 1 : index
    %c2_116 = arith.constant 2 : index
    %c0_117 = arith.constant 0 : index
    %128 = vector.load %arg8[%c1_115, %c2_116, %c0_117] : memref<18x18x128xf32, #tpu.memory_space<vmem>>, vector<16x16x128xf32>
    %129 = vector.shape_cast %128 : vector<16x16x128xf32> to vector<256x128xf32>
    %130 = arith.truncf %129 : vector<256x128xf32> to vector<256x128xbf16>
    %c5_118 = arith.constant 5 : index
    %c0_119 = arith.constant 0 : index
    %c0_120 = arith.constant 0 : index
    %131 = vector.load %arg5[%c5_118, %c0_119, %c0_120] : memref<9x128x128xbf16, #tpu.memory_space<vmem>>, vector<1x128x128xbf16>
    %132 = vector.shape_cast %131 : vector<1x128x128xbf16> to vector<128x128xbf16>
    %cst_121 = arith.constant dense<0.000000e+00> : vector<256x128xf32>
    %133 = tpu.matmul %130, %132, %cst_121 {dimension_numbers = #tpu.dot_dimension_numbers<[1], [0], [0], [1], [0, 0, 1, 1], [], []>} : vector<256x128xbf16>, vector<128x128xbf16>, vector<256x128xf32> -> vector<256x128xf32>
    %134 = arith.addf %127, %133 : vector<256x128xf32>
    %c2_122 = arith.constant 2 : index
    %c0_123 = arith.constant 0 : index
    %c0_124 = arith.constant 0 : index
    %135 = vector.load %arg8[%c2_122, %c0_123, %c0_124] : memref<18x18x128xf32, #tpu.memory_space<vmem>>, vector<16x16x128xf32>
    %136 = vector.shape_cast %135 : vector<16x16x128xf32> to vector<256x128xf32>
    %137 = arith.truncf %136 : vector<256x128xf32> to vector<256x128xbf16>
    %c6_125 = arith.constant 6 : index
    %c0_126 = arith.constant 0 : index
    %c0_127 = arith.constant 0 : index
    %138 = vector.load %arg5[%c6_125, %c0_126, %c0_127] : memref<9x128x128xbf16, #tpu.memory_space<vmem>>, vector<1x128x128xbf16>
    %139 = vector.shape_cast %138 : vector<1x128x128xbf16> to vector<128x128xbf16>
    %cst_128 = arith.constant dense<0.000000e+00> : vector<256x128xf32>
    %140 = tpu.matmul %137, %139, %cst_128 {dimension_numbers = #tpu.dot_dimension_numbers<[1], [0], [0], [1], [0, 0, 1, 1], [], []>} : vector<256x128xbf16>, vector<128x128xbf16>, vector<256x128xf32> -> vector<256x128xf32>
    %141 = arith.addf %134, %140 : vector<256x128xf32>
    %c2_129 = arith.constant 2 : index
    %c1_130 = arith.constant 1 : index
    %c0_131 = arith.constant 0 : index
    %142 = vector.load %arg8[%c2_129, %c1_130, %c0_131] : memref<18x18x128xf32, #tpu.memory_space<vmem>>, vector<16x16x128xf32>
    %143 = vector.shape_cast %142 : vector<16x16x128xf32> to vector<256x128xf32>
    %144 = arith.truncf %143 : vector<256x128xf32> to vector<256x128xbf16>
    %c7_132 = arith.constant 7 : index
    %c0_133 = arith.constant 0 : index
    %c0_134 = arith.constant 0 : index
    %145 = vector.load %arg5[%c7_132, %c0_133, %c0_134] : memref<9x128x128xbf16, #tpu.memory_space<vmem>>, vector<1x128x128xbf16>
    %146 = vector.shape_cast %145 : vector<1x128x128xbf16> to vector<128x128xbf16>
    %cst_135 = arith.constant dense<0.000000e+00> : vector<256x128xf32>
    %147 = tpu.matmul %144, %146, %cst_135 {dimension_numbers = #tpu.dot_dimension_numbers<[1], [0], [0], [1], [0, 0, 1, 1], [], []>} : vector<256x128xbf16>, vector<128x128xbf16>, vector<256x128xf32> -> vector<256x128xf32>
    %148 = arith.addf %141, %147 : vector<256x128xf32>
    %c2_136 = arith.constant 2 : index
    %c2_137 = arith.constant 2 : index
    %c0_138 = arith.constant 0 : index
    %149 = vector.load %arg8[%c2_136, %c2_137, %c0_138] : memref<18x18x128xf32, #tpu.memory_space<vmem>>, vector<16x16x128xf32>
    %150 = vector.shape_cast %149 : vector<16x16x128xf32> to vector<256x128xf32>
    %151 = arith.truncf %150 : vector<256x128xf32> to vector<256x128xbf16>
    %c8_139 = arith.constant 8 : index
    %c0_140 = arith.constant 0 : index
    %c0_141 = arith.constant 0 : index
    %152 = vector.load %arg5[%c8_139, %c0_140, %c0_141] : memref<9x128x128xbf16, #tpu.memory_space<vmem>>, vector<1x128x128xbf16>
    %153 = vector.shape_cast %152 : vector<1x128x128xbf16> to vector<128x128xbf16>
    %cst_142 = arith.constant dense<0.000000e+00> : vector<256x128xf32>
    %154 = tpu.matmul %151, %153, %cst_142 {dimension_numbers = #tpu.dot_dimension_numbers<[1], [0], [0], [1], [0, 0, 1, 1], [], []>} : vector<256x128xbf16>, vector<128x128xbf16>, vector<256x128xf32> -> vector<256x128xf32>
    %155 = arith.addf %148, %154 : vector<256x128xf32>
    %c0_143 = arith.constant 0 : index
    %c2_144 = arith.constant 2 : index
    %c2_145 = arith.constant 2 : index
    %c0_146 = arith.constant 0 : index
    %156 = vector.load %arg2[%c0_143, %c2_144, %c2_145, %c0_146] : memref<1x20x20x128xf32, #tpu.memory_space<vmem>>, vector<1x16x16x128xf32>
    %157 = vector.shape_cast %156 : vector<1x16x16x128xf32> to vector<16x16x128xf32>
    %158 = vector.shape_cast %157 : vector<16x16x128xf32> to vector<256x128xf32>
    %c0_147 = arith.constant 0 : index
    %c0_148 = arith.constant 0 : index
    %159 = vector.load %arg6[%c0_147, %c0_148] : memref<1x128xf32, #tpu.memory_space<vmem>>, vector<1x128xf32>
    %160 = vector.broadcast %159 : vector<1x128xf32> to vector<256x128xf32>
    %161 = arith.addf %155, %160 : vector<256x128xf32>
    %162 = arith.addf %161, %158 : vector<256x128xf32>
    %cst_149 = arith.constant 0.000000e+00 : f32
    %163 = vector.broadcast %cst_149 : f32 to vector<256x128xf32>
    %164 = arith.cmpf oge, %162, %163 : vector<256x128xf32>
    %cst_150 = arith.constant 0.00999999977 : f32
    %165 = vector.broadcast %cst_150 : f32 to vector<256x128xf32>
    %166 = arith.mulf %165, %162 : vector<256x128xf32>
    %167 = arith.select %164, %162, %166 : vector<256x128xi1>, vector<256x128xf32>
    %168 = vector.shape_cast %167 : vector<256x128xf32> to vector<16x16x128xf32>
    %c0_151 = arith.constant 0 : index
    %c0_152 = arith.constant 0 : index
    %c0_153 = arith.constant 0 : index
    %c0_154 = arith.constant 0 : index
    %169 = vector.load %arg7[%c0_151, %c0_152, %c0_153, %c0_154] : memref<1x16x16x128xf32, #tpu.memory_space<vmem>>, vector<1x16x16x128xf32>
    %170 = vector.shape_cast %169 : vector<1x16x16x128xf32> to vector<16x16x128xf32>
    %171 = vector.shape_cast %168 : vector<16x16x128xf32> to vector<1x16x16x128xf32>
    tpu.vector_store %arg7[%c0_151, %c0_152, %c0_153, %c0_154], %171 {strides = array<i32>} : memref<1x16x16x128xf32, #tpu.memory_space<vmem>>, vector<1x16x16x128xf32>,
    return
  }
  func.func @transform_0(%arg0: i32, %arg1: i32) -> (i32, i32, i32, i32) {
    %c1_i32 = arith.constant 1 : i32
    %0 = arith.muli %arg0, %c1_i32 : i32
    %1 = arith.addi %0, %arg1 : i32
    %c0_i32 = arith.constant 0 : i32
    %c0_i32_0 = arith.constant 0 : i32
    %c0_i32_1 = arith.constant 0 : i32
    %c0_i32_2 = arith.constant 0 : i32
    return %1, %c0_i32, %c0_i32_0, %c0_i32_1 : i32, i32, i32, i32
  }
  func.func @transform_1(%arg0: i32, %arg1: i32) -> (i32, i32, i32) {
    %c0_i32 = arith.constant 0 : i32
    %c0_i32_0 = arith.constant 0 : i32
    %c0_i32_1 = arith.constant 0 : i32
    %c0_i32_2 = arith.constant 0 : i32
    return %c0_i32, %c0_i32_0, %c0_i32_1 : i32, i32, i32
  }
  func.func @transform_2(%arg0: i32, %arg1: i32) -> (i32, i32) {
    %c0_i32 = arith.constant 0 : i32
    %c0_i32_0 = arith.constant 0 : i32
    %c0_i32_1 = arith.constant 0 : i32
    return %c0_i32, %c0_i32_0 : i32, i32
  }
  func.func @transform_3(%arg0: i32, %arg1: i32) -> (i32, i32, i32) {
    %c0_i32 = arith.constant 0 : i32
    %c0_i32_0 = arith.constant 0 : i32
    %c0_i32_1 = arith.constant 0 : i32
    %c0_i32_2 = arith.constant 0 : i32
    return %c0_i32, %c0_i32_0, %c0_i32_1 : i32, i32, i32
  }
  func.func @transform_4(%arg0: i32, %arg1: i32) -> (i32, i32) {
    %c0_i32 = arith.constant 0 : i32
    %c0_i32_0 = arith.constant 0 : i32
    %c0_i32_1 = arith.constant 0 : i32
    return %c0_i32, %c0_i32_0 : i32, i32
  }
  func.func @transform_5(%arg0: i32, %arg1: i32) -> (i32, i32, i32, i32) {
    %c0_i32 = arith.constant 0 : i32
    %c0_i32_0 = arith.constant 0 : i32
    %c0_i32_1 = arith.constant 0 : i32
    return %arg0, %arg1, %c0_i32, %c0_i32_0 : i32, i32, i32, i32
  }
}

</mosaic_0001>

<llo_original>
// kernel: tpu_custom_call.1
$region0: #{tpu_custom_call.1}
  #allocation0 [shape = 'u32[]', space=smem, size = 0x4, offset = 0x4, fixed_abs, tag = 'smem constant byte address 0x4 - core index']
  #allocation1 [shape = 'u32[72,128]{1,0:T(1,128)}', space=vmem, size = 0x9000, scoped, tag = 'internal scratch']
  #allocation2 [shape = 'f32[18,18,128]{2,1,0:T(8,128)}', space=vmem, size = 0x36000, scoped, tag = 'scratch operand']
  %s0 = inlined_call_operand.vmem [shape: f32[2,20,20,128], index: 0, kind: input, shape index: {}]
  %s1 = inlined_call_operand.vmem [shape: bf16[9,128,128], index: 1, kind: input, shape index: {}]
  %s2 = inlined_call_operand.vmem [shape: f32[1,128], index: 2, kind: input, shape index: {}]
  %s3 = inlined_call_operand.vmem [shape: bf16[9,128,128], index: 3, kind: input, shape index: {}]
  %s4 = inlined_call_operand.vmem [shape: f32[1,128], index: 4, kind: input, shape index: {}]
  %s5 = inlined_call_operand.hbm [shape: f32[2,16,16,128], index: 5, kind: output, shape index: {}]
  %s6 = sld [smem:[#allocation0]]
  $region57: #{tpu_custom_call.1} parent=0
    _
  %s8 = ssub.s32 1, %s6
  %s9 = scalar_select 0, %s8, %s6
  $region1: #{tpu_custom_call.1} parent=0
    #allocation3 [shape = 'u8[262144]{0}', space=vmem, size = 0x40000, scoped, tag = 'output window, operand 0']
    #allocation4 [shape = 's32[2]{0}', space=sflag, size = 0x8, scoped, tag = 'scoped memory for tpu_custom_call.1']
    %10 = vsyncpa [#allocation4], 0
    %s11 = scalar_lea.sflag [#allocation4], 1
    %12 = vsyncpa %s11, 0
    loop: start=0, step=1, limit=4
    $region2: #{tpu_custom_call.1} parent=1 // loop_pre_header
      _
    $region3: #{tpu_custom_call.1} parent=1 // loop_header
      %s14 = sphi 0, %s18
      %p15 = scmp.ge.s32.totalorder %s14, 4
      %s21 = sphi 0, %s33
      %s22 = sphi 0, %s29
      %s23 = sphi 0, %s21
      %s24 = sphi 0, %s22
      %s25 = sphi 0, %s23
      %s26 = sphi 0, %s24
      %s38 = sphi 0, %s40
      %s41 = sphi 0, %s38
      %s42 = sphi 0, %s41
      %s58 = sphi 0, %s42
      %s62 = sphi 0, %s62
      %s64 = sphi 0, %s62
      %s65 = sphi 0, %s64
      %s79 = sphi 0, %s65
      %s83 = sphi 0, %s83
      %s85 = sphi 0, %s83
      %s86 = sphi 0, %s85
      %s100 = sphi 0, %s86
      %s104 = sphi 0, %s104
      %s106 = sphi 0, %s104
      %s107 = sphi 0, %s106
      %s121 = sphi 0, %s107
      %s125 = sphi 0, %s125
      %s127 = sphi 0, %s125
      %s128 = sphi 0, %s127
      %s142 = sphi 0, %s128
      %s150 = sphi 0, %s152
      %s153 = sphi 0, %s150
      %s154 = sphi 0, %s153
      %s170 = sphi 0, %s154
    $region4: #{tpu_custom_call.1} parent=1 // loop_header_branch
      %17 = sbr.rel (%p15) target = $region8
    $region5: #{tpu_custom_call.1} parent=1 // loop_body
      %s19 = ssub.s32 %s14, 1
      %s20 = ssub.s32 %s14, 2
      %s27 = sadd.s32 1, %s22
      %p28 = scmp.ge.s32.totalorder %s27, 1
      %s29 = scalar_select %p28, 0, %s27
      %s30 = sadd.s32 1, %s21
      %s31 = scalar_select %p28, %s30, %s21
      %p32 = scmp.ge.s32.totalorder %s31, 2
      %s33 = scalar_select %p32, 0, %s31
      %s34 = sadd.s32 %s21, %s22
      %s35 = sadd.s32 %s33, %s29
      %s36 = ssub.s32 %s34, %s35
      %p37 = scmp.eq.s32.totalorder %s36, 0
      %s39 = sadd.s32 %s38, 1
      %s40 = scalar_select %p37, %s38, %s39
      %p43 = pneg %p37
      %p44 = scmp.eq.s32.totalorder %s14, 1
      %p45 = por %p43, %p44
      %p46 = scmp.ne.s32.totalorder %s38, %s41
      %p47 = scmp.eq.s32.totalorder %s14, 0
      %p48 = por %p46, %p47
      %p49 = scmp.ne.s32.totalorder %s38, %s41
      %p50 = scmp.eq.s32.totalorder %s19, 1
      %p51 = por %p49, %p50
      %p52 = scmp.ne.s32.totalorder %s41, %s42
      %p53 = scmp.eq.s32.totalorder %s19, 0
      %p54 = por %p52, %p53
      %p55 = scmp.ne.s32.totalorder %s41, %s42
      %p56 = scmp.eq.s32.totalorder %s20, 1
      %p57 = por %p55, %p56
      %p59 = scmp.ne.s32.totalorder %s42, %s58
      %p60 = scmp.eq.s32.totalorder %s20, 0
      %p61 = por %p59, %p60
      %s63 = sadd.s32 %s62, 1
      %p66 = scmp.eq.s32.totalorder %s14, 1
      %p67 = scmp.ne.s32.totalorder %s62, %s64
      %p68 = scmp.eq.s32.totalorder %s14, 0
      %p69 = por %p67, %p68
      %p70 = scmp.ne.s32.totalorder %s62, %s64
      %p71 = scmp.eq.s32.totalorder %s19, 1
      %p72 = por %p70, %p71
      %p73 = scmp.ne.s32.totalorder %s64, %s65
      %p74 = scmp.eq.s32.totalorder %s19, 0
      %p75 = por %p73, %p74
      %p76 = scmp.ne.s32.totalorder %s64, %s65
      %p77 = scmp.eq.s32.totalorder %s20, 1
      %p78 = por %p76, %p77
      %p80 = scmp.ne.s32.totalorder %s65, %s79
      %p81 = scmp.eq.s32.totalorder %s20, 0
      %p82 = por %p80, %p81
      %s84 = sadd.s32 %s83, 1
      %p87 = scmp.eq.s32.totalorder %s14, 1
      %p88 = scmp.ne.s32.totalorder %s83, %s85
      %p89 = scmp.eq.s32.totalorder %s14, 0
      %p90 = por %p88, %p89
      %p91 = scmp.ne.s32.totalorder %s83, %s85
      %p92 = scmp.eq.s32.totalorder %s19, 1
      %p93 = por %p91, %p92
      %p94 = scmp.ne.s32.totalorder %s85, %s86
      %p95 = scmp.eq.s32.totalorder %s19, 0
      %p96 = por %p94, %p95
      %p97 = scmp.ne.s32.totalorder %s85, %s86
      %p98 = scmp.eq.s32.totalorder %s20, 1
      %p99 = por %p97, %p98
      %p101 = scmp.ne.s32.totalorder %s86, %s100
      %p102 = scmp.eq.s32.totalorder %s20, 0
      %p103 = por %p101, %p102
      %s105 = sadd.s32 %s104, 1
      %p108 = scmp.eq.s32.totalorder %s14, 1
      %p109 = scmp.ne.s32.totalorder %s104, %s106
      %p110 = scmp.eq.s32.totalorder %s14, 0
      %p111 = por %p109, %p110
      %p112 = scmp.ne.s32.totalorder %s104, %s106
      %p113 = scmp.eq.s32.totalorder %s19, 1
      %p114 = por %p112, %p113
      %p115 = scmp.ne.s32.totalorder %s106, %s107
      %p116 = scmp.eq.s32.totalorder %s19, 0
      %p117 = por %p115, %p116
      %p118 = scmp.ne.s32.totalorder %s106, %s107
      %p119 = scmp.eq.s32.totalorder %s20, 1
      %p120 = por %p118, %p119
      %p122 = scmp.ne.s32.totalorder %s107, %s121
      %p123 = scmp.eq.s32.totalorder %s20, 0
      %p124 = por %p122, %p123
      %s126 = sadd.s32 %s125, 1
      %p129 = scmp.eq.s32.totalorder %s14, 1
      %p130 = scmp.ne.s32.totalorder %s125, %s127
      %p131 = scmp.eq.s32.totalorder %s14, 0
      %p132 = por %p130, %p131
      %p133 = scmp.ne.s32.totalorder %s125, %s127
      %p134 = scmp.eq.s32.totalorder %s19, 1
      %p135 = por %p133, %p134
      %p136 = scmp.ne.s32.totalorder %s127, %s128
      %p137 = scmp.eq.s32.totalorder %s19, 0
      %p138 = por %p136, %p137
      %p139 = scmp.ne.s32.totalorder %s127, %s128
      %p140 = scmp.eq.s32.totalorder %s20, 1
      %p141 = por %p139, %p140
      %p143 = scmp.ne.s32.totalorder %s128, %s142
      %p144 = scmp.eq.s32.totalorder %s20, 0
      %p145 = por %p143, %p144
      %s146 = ssub.s32 %s21, %s33
      %s147 = ssub.s32 %s22, %s29
      %s148 = sor.u32 %s146, %s147
      %p149 = scmp.eq.s32.totalorder %s148, 0
      %s151 = sadd.s32 %s150, 1
      %s152 = scalar_select %p149, %s150, %s151
      %p155 = pneg %p149
      %p156 = scmp.eq.s32.totalorder %s14, 1
      %p157 = por %p155, %p156
      %p158 = scmp.ne.s32.totalorder %s150, %s153
      %p159 = scmp.eq.s32.totalorder %s14, 0
      %p160 = por %p158, %p159
      %p161 = scmp.ne.s32.totalorder %s150, %s153
      %p162 = scmp.eq.s32.totalorder %s19, 1
      %p163 = por %p161, %p162
      %p164 = scmp.ne.s32.totalorder %s153, %s154
      %p165 = scmp.eq.s32.totalorder %s19, 0
      %p166 = por %p164, %p165
      %p167 = scmp.ne.s32.totalorder %s153, %s154
      %p168 = scmp.eq.s32.totalorder %s20, 1
      %p169 = por %p167, %p168
      %p171 = scmp.ne.s32.totalorder %s154, %s170
      %p172 = scmp.eq.s32.totalorder %s20, 0
      %p173 = por %p171, %p172
      %p174 = scmp.le.s32.totalorder 1, %s14
      %p175 = scmp.lt.s32.totalorder %s14, 3
      %p176 = pnand %p174, %p175
      %p177 = pneg %p176
      // Predicated region
      $region9: #{tpu_custom_call.1} parent=5 // pred_check
        _
      $region10: #{tpu_custom_call.1} parent=5 // pred_check_branch
        %179 = sbr.rel (%p176) target = $region12
      $region11: #{tpu_custom_call.1} parent=5 // pred_region
        %s180 = ssub.s32 %s14, 1
        // Predicated region
        $region13: #{tpu_custom_call.1} parent=11 // pred_check
          %p181 = pneg %p75
        $region14: #{tpu_custom_call.1} parent=11 // pred_check_branch
          %183 = sbr.rel (%p181) target = $region16
        $region15: #{tpu_custom_call.1} parent=11 // pred_region
          _
        $region16: #{tpu_custom_call.1} parent=11 // pred_fallthru
          _
        // Predicated region
        $region17: #{tpu_custom_call.1} parent=11 // pred_check
          %p184 = pneg %p96
        $region18: #{tpu_custom_call.1} parent=11 // pred_check_branch
          %186 = sbr.rel (%p184) target = $region20
        $region19: #{tpu_custom_call.1} parent=11 // pred_region
          _
        $region20: #{tpu_custom_call.1} parent=11 // pred_fallthru
          _
        // Predicated region
        $region21: #{tpu_custom_call.1} parent=11 // pred_check
          %p187 = pneg %p117
        $region22: #{tpu_custom_call.1} parent=11 // pred_check_branch
          %189 = sbr.rel (%p187) target = $region24
        $region23: #{tpu_custom_call.1} parent=11 // pred_region
          _
        $region24: #{tpu_custom_call.1} parent=11 // pred_fallthru
          _
        // Predicated region
        $region25: #{tpu_custom_call.1} parent=11 // pred_check
          %p190 = pneg %p138
        $region26: #{tpu_custom_call.1} parent=11 // pred_check_branch
          %192 = sbr.rel (%p190) target = $region28
        $region27: #{tpu_custom_call.1} parent=11 // pred_region
          _
        $region28: #{tpu_custom_call.1} parent=11 // pred_fallthru
          _
      $region12: #{tpu_custom_call.1} parent=5 // pred_fallthru
        _
      %p193 = scmp.lt.s32.totalorder %s14, 2
      // Predicated region
      $region29: #{tpu_custom_call.1} parent=5 // pred_check
        %p194 = pneg %p193
      $region30: #{tpu_custom_call.1} parent=5 // pred_check_branch
        %196 = sbr.rel (%p194) target = $region32
      $region31: #{tpu_custom_call.1} parent=5 // pred_region
        // Predicated region
        $region33: #{tpu_custom_call.1} parent=31 // pred_check
          %p197 = pneg %p48
        $region34: #{tpu_custom_call.1} parent=31 // pred_check_branch
          %199 = sbr.rel (%p197) target = $region36
        $region35: #{tpu_custom_call.1} parent=31 // pred_region
          %s200 = sadd.s32 %s21, %s22
          %p201 = scmp.lt.s32.totalorder %s200, 1
          %s202 = scalar_select %p201, %s200, 1
          %s203 = smul.addr %s202, 60
          %s204 = smul.addr %s203, 8
          %s205 = scalar_lea.vmem %s0, %s204
          %s206 = sadd.s32 %s21, %s22
        $region36: #{tpu_custom_call.1} parent=31 // pred_fallthru
          _
      $region32: #{tpu_custom_call.1} parent=5 // pred_fallthru
        _
      %p207 = scmp.le.s32.totalorder 1, %s14
      %p208 = scmp.lt.s32.totalorder %s14, 3
      %p209 = pnand %p207, %p208
      %p210 = pneg %p209
      // Predicated region
      $region37: #{tpu_custom_call.1} parent=5 // pred_check
        _
      $region38: #{tpu_custom_call.1} parent=5 // pred_check_branch
        %212 = sbr.rel (%p209) target = $region40
      $region39: #{tpu_custom_call.1} parent=5 // pred_region
        %s213 = ssub.s32 %s14, 1
        %s214 = sadd.s32 %s23, %s24
        %p215 = scmp.lt.s32.totalorder %s214, 1
        %s216 = scalar_select %p215, %s214, 1
        %s217 = smul.addr %s216, 60
        %s218 = smul.addr %s217, 8
        %s219 = scalar_lea.vmem %s0, %s218
        %p220 = pneg %p54
        %p221 = pneg %p51
        %p222 = pneg %p75
        %p223 = pneg %p72
        %p224 = pneg %p96
        %p225 = pneg %p93
        %p226 = pneg %p117
        %p227 = pneg %p114
        %p228 = pneg %p138
        %p229 = pneg %p135
        %p230 = pneg %p166
        %p231 = pneg %p163
        %s232 = sand.u32 %s153, 1
        %s233 = scalar_lea.sflag [#allocation4], %s232
        %s234 = sand.u32 %s153, 1
        %s235 = smul.addr %s234, 256
        %s236 = scalar_lea.vmem [#allocation3], %s235
        %s237 = sadd.s32 %s23, %s24
        %p238 = scmp.lt.s32.totalorder %s237, 1
        %s239 = scalar_select %p238, %s237, 1
        %s240 = smul.addr %s239, 60
        %s241 = smul.addr %s240, 8
        %s242 = scalar_lea.vmem %s0, %s241
        %s243 = sadd.s32 %s23, %s24
        %s244 = smul.u32 16, %s24
        %v245 = vld [vmem:[%s242 + $0x1] sm:$0xff]
        %v246 = vld [vmem:[%s242 + $0x9] sm:$0xff]
        %v247 = vld [vmem:[%s242 + $0x19] sm:$0xff]
        %v248 = vld [vmem:[%s242 + $0x21] sm:$0xff]
        %v249 = vld [vmem:[%s242 + $0x31] sm:$0xff]
        %v250 = vld [vmem:[%s242 + $0x39] sm:$0xff]
        %v251 = vld [vmem:[%s242 + $0x49] sm:$0xff]
        %v252 = vld [vmem:[%s242 + $0x51] sm:$0xff]
        %v253 = vld [vmem:[%s242 + $0x61] sm:$0xff]
        %v254 = vld [vmem:[%s242 + $0x69] sm:$0xff]
        %v255 = vld [vmem:[%s242 + $0x79] sm:$0xff]
        %v256 = vld [vmem:[%s242 + $0x81] sm:$0xff]
        %v257 = vld [vmem:[%s242 + $0x91] sm:$0xff]
        %v258 = vld [vmem:[%s242 + $0x99] sm:$0xff]
        %v259 = vld [vmem:[%s242 + $0xa9] sm:$0xff]
        %v260 = vld [vmem:[%s242 + $0xb1] sm:$0xff]
        %v261 = vld [vmem:[%s242 + $0xc1] sm:$0xff]
        %v262 = vld [vmem:[%s242 + $0xc9] sm:$0xff]
        %v263 = vld [vmem:[%s242 + $0xd9] sm:$0xff]
        %v264 = vld [vmem:[%s242 + $0xe1] sm:$0xff]
        %v265 = vld [vmem:[%s242 + $0xf1] sm:$0xff]
        %v266 = vld [vmem:[%s242 + $0xf9] sm:$0xff]
        %v267 = vld [vmem:[%s242 + $0x109] sm:$0xff]
        %v268 = vld [vmem:[%s242 + $0x111] sm:$0xff]
        %v269 = vld [vmem:[%s242 + $0x121] sm:$0xff]
        %v270 = vld [vmem:[%s242 + $0x129] sm:$0xff]
        %v271 = vld [vmem:[%s242 + $0x139] sm:$0xff]
        %v272 = vld [vmem:[%s242 + $0x141] sm:$0xff]
        %v273 = vld [vmem:[%s242 + $0x151] sm:$0xff]
        %v274 = vld [vmem:[%s242 + $0x159] sm:$0xff]
        %v275 = vld [vmem:[%s242 + $0x169] sm:$0xff]
        %v276 = vld [vmem:[%s242 + $0x171] sm:$0xff]
        %v277 = vld [vmem:[%s242 + $0x181] sm:$0xff]
        %v278 = vld [vmem:[%s242 + $0x189] sm:$0xff]
        %v279 = vld [vmem:[%s242 + $0x199] sm:$0xff]
        %v280 = vld [vmem:[%s242 + $0x1a1] sm:$0xff]
        %v281 = vpack.c.bf16 %v246, %v245
        %v282 = vpack.c.bf16 %v248, %v247
        %v283 = vpack.c.bf16 %v250, %v249
        %v284 = vpack.c.bf16 %v252, %v251
        %v285 = vpack.c.bf16 %v254, %v253
        %v286 = vpack.c.bf16 %v256, %v255
        %v287 = vpack.c.bf16 %v258, %v257
        %v288 = vpack.c.bf16 %v260, %v259
        %v289 = vpack.c.bf16 %v262, %v261
        %v290 = vpack.c.bf16 %v264, %v263
        %v291 = vpack.c.bf16 %v266, %v265
        %v292 = vpack.c.bf16 %v268, %v267
        %v293 = vpack.c.bf16 %v270, %v269
        %v294 = vpack.c.bf16 %v272, %v271
        %v295 = vpack.c.bf16 %v274, %v273
        %v296 = vpack.c.bf16 %v276, %v275
        %v297 = vpack.c.bf16 %v278, %v277
        %v298 = vpack.c.bf16 %v280, %v279
        %v299 = vld [vmem:[%s1] sm:$0xf]
        %v300 = vld [vmem:[%s1 + $0x4] sm:$0xf]
        %v301 = vld [vmem:[%s1 + $0x8] sm:$0xf]
        %v302 = vld [vmem:[%s1 + $0xc] sm:$0xf]
        %v303 = vld [vmem:[%s1 + $0x10] sm:$0xf]
        %v304 = vld [vmem:[%s1 + $0x14] sm:$0xf]
        %v305 = vld [vmem:[%s1 + $0x18] sm:$0xf]
        %v306 = vld [vmem:[%s1 + $0x1c] sm:$0xf]
        %v307 = vld [vmem:[%s1 + $0x20] sm:$0xf]
        %v308 = vld [vmem:[%s1 + $0x24] sm:$0xf]
        %v309 = vld [vmem:[%s1 + $0x28] sm:$0xf]
        %v310 = vld [vmem:[%s1 + $0x2c] sm:$0xf]
        %v311 = vld [vmem:[%s1 + $0x30] sm:$0xf]
        %v312 = vld [vmem:[%s1 + $0x34] sm:$0xf]
        %v313 = vld [vmem:[%s1 + $0x38] sm:$0xf]
        %v314 = vld [vmem:[%s1 + $0x3c] sm:$0xf]
        %v315 = vld [vmem:[%s242 + $0x2] sm:$0xff]
        %v316 = vld [vmem:[%s242 + $0xa] sm:$0xff]
        %v317 = vld [vmem:[%s242 + $0x1a] sm:$0xff]
        %v318 = vld [vmem:[%s242 + $0x22] sm:$0xff]
        %v319 = vld [vmem:[%s242 + $0x32] sm:$0xff]
        %v320 = vld [vmem:[%s242 + $0x3a] sm:$0xff]
        %v321 = vld [vmem:[%s242 + $0x4a] sm:$0xff]
        %v322 = vld [vmem:[%s242 + $0x52] sm:$0xff]
        %v323 = vld [vmem:[%s242 + $0x62] sm:$0xff]
        %v324 = vld [vmem:[%s242 + $0x6a] sm:$0xff]
        %v325 = vld [vmem:[%s242 + $0x7a] sm:$0xff]
        %v326 = vld [vmem:[%s242 + $0x82] sm:$0xff]
        %v327 = vld [vmem:[%s242 + $0x92] sm:$0xff]
        %v328 = vld [vmem:[%s242 + $0x9a] sm:$0xff]
        %v329 = vld [vmem:[%s242 + $0xaa] sm:$0xff]
        %v330 = vld [vmem:[%s242 + $0xb2] sm:$0xff]
        %v331 = vld [vmem:[%s242 + $0xc2] sm:$0xff]
        %v332 = vld [vmem:[%s242 + $0xca] sm:$0xff]
        %v333 = vld [vmem:[%s242 + $0xda] sm:$0xff]
        %v334 = vld [vmem:[%s242 + $0xe2] sm:$0xff]
        %v335 = vld [vmem:[%s242 + $0xf2] sm:$0xff]
        %v336 = vld [vmem:[%s242 + $0xfa] sm:$0xff]
        %v337 = vld [vmem:[%s242 + $0x10a] sm:$0xff]
        %v338 = vld [vmem:[%s242 + $0x112] sm:$0xff]
        %v339 = vld [vmem:[%s242 + $0x122] sm:$0xff]
        %v340 = vld [vmem:[%s242 + $0x12a] sm:$0xff]
        %v341 = vld [vmem:[%s242 + $0x13a] sm:$0xff]
        %v342 = vld [vmem:[%s242 + $0x142] sm:$0xff]
        %v343 = vld [vmem:[%s242 + $0x152] sm:$0xff]
        %v344 = vld [vmem:[%s242 + $0x15a] sm:$0xff]
        %v345 = vld [vmem:[%s242 + $0x16a] sm:$0xff]
        %v346 = vld [vmem:[%s242 + $0x172] sm:$0xff]
        %v347 = vld [vmem:[%s242 + $0x182] sm:$0xff]
        %v348 = vld [vmem:[%s242 + $0x18a] sm:$0xff]
        %v349 = vld [vmem:[%s242 + $0x19a] sm:$0xff]
        %v350 = vld [vmem:[%s242 + $0x1a2] sm:$0xff]
        %v351 = vpack.c.bf16 %v316, %v315
        %v352 = vpack.c.bf16 %v318, %v317
        %v353 = vpack.c.bf16 %v320, %v319
        %v354 = vpack.c.bf16 %v322, %v321
        %v355 = vpack.c.bf16 %v324, %v323
        %v356 = vpack.c.bf16 %v326, %v325
        %v357 = vpack.c.bf16 %v328, %v327
        %v358 = vpack.c.bf16 %v330, %v329
        %v359 = vpack.c.bf16 %v332, %v331
        %v360 = vpack.c.bf16 %v334, %v333
        %v361 = vpack.c.bf16 %v336, %v335
        %v362 = vpack.c.bf16 %v338, %v337
        %v363 = vpack.c.bf16 %v340, %v339
        %v364 = vpack.c.bf16 %v342, %v341
        %v365 = vpack.c.bf16 %v344, %v343
        %v366 = vpack.c.bf16 %v346, %v345
        %v367 = vpack.c.bf16 %v348, %v347
        %v368 = vpack.c.bf16 %v350, %v349
        %s369 = scalar_lea.vmem %s1, 64
        %v370 = vld [vmem:[%s369] sm:$0xf]
        %v371 = vld [vmem:[%s369 + $0x4] sm:$0xf]
        %v372 = vld [vmem:[%s369 + $0x8] sm:$0xf]
        %v373 = vld [vmem:[%s369 + $0xc] sm:$0xf]
        %v374 = vld [vmem:[%s369 + $0x10] sm:$0xf]
        %v375 = vld [vmem:[%s369 + $0x14] sm:$0xf]
        %v376 = vld [vmem:[%s369 + $0x18] sm:$0xf]
        %v377 = vld [vmem:[%s369 + $0x1c] sm:$0xf]
        %v378 = vld [vmem:[%s369 + $0x20] sm:$0xf]
        %v379 = vld [vmem:[%s369 + $0x24] sm:$0xf]
        %v380 = vld [vmem:[%s369 + $0x28] sm:$0xf]
        %v381 = vld [vmem:[%s369 + $0x2c] sm:$0xf]
        %v382 = vld [vmem:[%s369 + $0x30] sm:$0xf]
        %v383 = vld [vmem:[%s369 + $0x34] sm:$0xf]
        %v384 = vld [vmem:[%s369 + $0x38] sm:$0xf]
        %v385 = vld [vmem:[%s369 + $0x3c] sm:$0xf]
        %v402 = vunpack.c.l.b16 %v370
        %v403 = vunpack.c.l.b16 %v371
        %v404 = vunpack.c.l.b16 %v372
        %v405 = vunpack.c.l.b16 %v373
        %v406 = vunpack.c.l.b16 %v374
        %v407 = vunpack.c.l.b16 %v375
        %v408 = vunpack.c.l.b16 %v376
        %v409 = vunpack.c.l.b16 %v377
        %v410 = vunpack.c.l.b16 %v378
        %v411 = vunpack.c.l.b16 %v379
        %v412 = vunpack.c.l.b16 %v380
        %v413 = vunpack.c.l.b16 %v381
        %v414 = vunpack.c.l.b16 %v382
        %v415 = vunpack.c.l.b16 %v383
        %v416 = vunpack.c.l.b16 %v384
        %v417 = vunpack.c.l.b16 %v385
        %v418 = vpack.c.b16 %v403, %v402
        %v419 = vpack.c.b16 %v405, %v404
        %v420 = vpack.c.b16 %v407, %v406
        %v421 = vpack.c.b16 %v409, %v408
        %v422 = vpack.c.b16 %v411, %v410
        %v423 = vpack.c.b16 %v413, %v412
        %v424 = vpack.c.b16 %v415, %v414
        %v425 = vpack.c.b16 %v417, %v416
        %434 = vmatpush.bf16.msra.mxu0 %v425
        %435 = vmatpush.bf16.msra.mxu0 %v424
        %436 = vmatpush.bf16.msra.mxu0 %v423
        %437 = vmatpush.bf16.msra.mxu0 %v422
        %438 = vmatpush.bf16.msra.mxu0 %v421
        %439 = vmatpush.bf16.msra.mxu0 %v420
        %440 = vmatpush.bf16.msra.mxu0 %v419
        %441 = vmatpush.bf16.msra.mxu0 %v418
        %442 = vmatmul.bf16.gmra.mxu0 %v351
        %v443 = vpop.f32.mrf.mxu0
        %v444 = vadd.f32 0.0, %v443
        %v445 = vpop.f32.mrf.mxu0
        %v446 = vadd.f32 0.0, %v445
        %447 = vmatmul.bf16.gmra.mxu0 %v352
        %v448 = vpop.f32.mrf.mxu0
        %v449 = vadd.f32 0.0, %v448
        %v450 = vpop.f32.mrf.mxu0
        %v451 = vadd.f32 0.0, %v450
        %452 = vmatmul.bf16.gmra.mxu0 %v353
        %v453 = vpop.f32.mrf.mxu0
        %v454 = vadd.f32 0.0, %v453
        %v455 = vpop.f32.mrf.mxu0
        %v456 = vadd.f32 0.0, %v455
        %457 = vmatmul.bf16.gmra.mxu0 %v354
        %v458 = vpop.f32.mrf.mxu0
        %v459 = vadd.f32 0.0, %v458
        %v460 = vpop.f32.mrf.mxu0
        %v461 = vadd.f32 0.0, %v460
        %462 = vmatmul.bf16.gmra.mxu0 %v355
        %v463 = vpop.f32.mrf.mxu0
        %v464 = vadd.f32 0.0, %v463
        %v465 = vpop.f32.mrf.mxu0
        %v466 = vadd.f32 0.0, %v465
        %467 = vmatmul.bf16.gmra.mxu0 %v356
        %v468 = vpop.f32.mrf.mxu0
        %v469 = vadd.f32 0.0, %v468
        %v470 = vpop.f32.mrf.mxu0
        %v471 = vadd.f32 0.0, %v470
        %472 = vmatmul.bf16.gmra.mxu0 %v357
        %v473 = vpop.f32.mrf.mxu0
        %v474 = vadd.f32 0.0, %v473
        %v475 = vpop.f32.mrf.mxu0
        %v476 = vadd.f32 0.0, %v475
        %477 = vmatmul.bf16.gmra.mxu0 %v358
        %v478 = vpop.f32.mrf.mxu0
        %v479 = vadd.f32 0.0, %v478
        %v480 = vpop.f32.mrf.mxu0
        %v481 = vadd.f32 0.0, %v480
        %482 = vmatmul.bf16.gmra.mxu0 %v359
        %v483 = vpop.f32.mrf.mxu0
        %v484 = vadd.f32 0.0, %v483
        %v485 = vpop.f32.mrf.mxu0
        %v486 = vadd.f32 0.0, %v485
        %487 = vmatmul.bf16.gmra.mxu0 %v360
        %v488 = vpop.f32.mrf.mxu0
        %v489 = vadd.f32 0.0, %v488
        %v490 = vpop.f32.mrf.mxu0
        %v491 = vadd.f32 0.0, %v490
        %492 = vmatmul.bf16.gmra.mxu0 %v361
        %v493 = vpop.f32.mrf.mxu0
        %v494 = vadd.f32 0.0, %v493
        %v495 = vpop.f32.mrf.mxu0
        %v496 = vadd.f32 0.0, %v495
        %497 = vmatmul.bf16.gmra.mxu0 %v362
        %v498 = vpop.f32.mrf.mxu0
        %v499 = vadd.f32 0.0, %v498
        %v500 = vpop.f32.mrf.mxu0
        %v501 = vadd.f32 0.0, %v500
        %502 = vmatmul.bf16.gmra.mxu0 %v363
        %v503 = vpop.f32.mrf.mxu0
        %v504 = vadd.f32 0.0, %v503
        %v505 = vpop.f32.mrf.mxu0
        %v506 = vadd.f32 0.0, %v505
        %507 = vmatmul.bf16.gmra.mxu0 %v364
        %v508 = vpop.f32.mrf.mxu0
        %v509 = vadd.f32 0.0, %v508
        %v510 = vpop.f32.mrf.mxu0
        %v511 = vadd.f32 0.0, %v510
        %512 = vmatmul.bf16.gmra.mxu0 %v365
        %v513 = vpop.f32.mrf.mxu0
        %v514 = vadd.f32 0.0, %v513
        %v515 = vpop.f32.mrf.mxu0
        %v516 = vadd.f32 0.0, %v515
        %517 = vmatmul.bf16.gmra.mxu0 %v366
        %v518 = vpop.f32.mrf.mxu0
        %v519 = vadd.f32 0.0, %v518
        %v520 = vpop.f32.mrf.mxu0
        %v521 = vadd.f32 0.0, %v520
        %522 = vmatmul.bf16.gmra.mxu0 %v367
        %v523 = vpop.f32.mrf.mxu0
        %v524 = vadd.f32 0.0, %v523
        %v525 = vpop.f32.mrf.mxu0
        %v526 = vadd.f32 0.0, %v525
        %527 = vmatmul.bf16.gmra.mxu0 %v368
        %v528 = vpop.f32.mrf.mxu0
        %v529 = vadd.f32 0.0, %v528
        %v530 = vpop.f32.mrf.mxu0
        %v531 = vadd.f32 0.0, %v530
        %532 = vdwg.mxu0
        %v549 = vunpack.c.l.b16 %v299
        %v550 = vunpack.c.l.b16 %v300
        %v551 = vunpack.c.l.b16 %v301
        %v552 = vunpack.c.l.b16 %v302
        %v553 = vunpack.c.l.b16 %v303
        %v554 = vunpack.c.l.b16 %v304
        %v555 = vunpack.c.l.b16 %v305
        %v556 = vunpack.c.l.b16 %v306
        %v557 = vunpack.c.l.b16 %v307
        %v558 = vunpack.c.l.b16 %v308
        %v559 = vunpack.c.l.b16 %v309
        %v560 = vunpack.c.l.b16 %v310
        %v561 = vunpack.c.l.b16 %v311
        %v562 = vunpack.c.l.b16 %v312
        %v563 = vunpack.c.l.b16 %v313
        %v564 = vunpack.c.l.b16 %v314
        %v565 = vpack.c.b16 %v550, %v549
        %v566 = vpack.c.b16 %v552, %v551
        %v567 = vpack.c.b16 %v554, %v553
        %v568 = vpack.c.b16 %v556, %v555
        %v569 = vpack.c.b16 %v558, %v557
        %v570 = vpack.c.b16 %v560, %v559
        %v571 = vpack.c.b16 %v562, %v561
        %v572 = vpack.c.b16 %v564, %v563
        %581 = vmatpush.bf16.msra.mxu0 %v572
        %582 = vmatpush.bf16.msra.mxu0 %v571
        %583 = vmatpush.bf16.msra.mxu0 %v570
        %584 = vmatpush.bf16.msra.mxu0 %v569
        %585 = vmatpush.bf16.msra.mxu0 %v568
        %586 = vmatpush.bf16.msra.mxu0 %v567
        %587 = vmatpush.bf16.msra.mxu0 %v566
        %588 = vmatpush.bf16.msra.mxu0 %v565
        %589 = vmatmul.bf16.gmra.mxu0 %v281
        %v590 = vpop.f32.mrf.mxu0
        %v591 = vadd.f32 %v444, %v590
        %v592 = vpop.f32.mrf.mxu0
        %v593 = vadd.f32 %v446, %v592
        %594 = vmatmul.bf16.gmra.mxu0 %v282
        %v595 = vpop.f32.mrf.mxu0
        %v596 = vadd.f32 %v449, %v595
        %v597 = vpop.f32.mrf.mxu0
        %v598 = vadd.f32 %v451, %v597
        %599 = vmatmul.bf16.gmra.mxu0 %v283
        %v600 = vpop.f32.mrf.mxu0
        %v601 = vadd.f32 %v454, %v600
        %v602 = vpop.f32.mrf.mxu0
        %v603 = vadd.f32 %v456, %v602
        %604 = vmatmul.bf16.gmra.mxu0 %v284
        %v605 = vpop.f32.mrf.mxu0
        %v606 = vadd.f32 %v459, %v605
        %v607 = vpop.f32.mrf.mxu0
        %v608 = vadd.f32 %v461, %v607
        %609 = vmatmul.bf16.gmra.mxu0 %v285
        %v610 = vpop.f32.mrf.mxu0
        %v611 = vadd.f32 %v464, %v610
        %v612 = vpop.f32.mrf.mxu0
        %v613 = vadd.f32 %v466, %v612
        %614 = vmatmul.bf16.gmra.mxu0 %v286
        %v615 = vpop.f32.mrf.mxu0
        %v616 = vadd.f32 %v469, %v615
        %v617 = vpop.f32.mrf.mxu0
        %v618 = vadd.f32 %v471, %v617
        %619 = vmatmul.bf16.gmra.mxu0 %v287
        %v620 = vpop.f32.mrf.mxu0
        %v621 = vadd.f32 %v474, %v620
        %v622 = vpop.f32.mrf.mxu0
        %v623 = vadd.f32 %v476, %v622
        %624 = vmatmul.bf16.gmra.mxu0 %v288
        %v625 = vpop.f32.mrf.mxu0
        %v626 = vadd.f32 %v479, %v625
        %v627 = vpop.f32.mrf.mxu0
        %v628 = vadd.f32 %v481, %v627
        %629 = vmatmul.bf16.gmra.mxu0 %v289
        %v630 = vpop.f32.mrf.mxu0
        %v631 = vadd.f32 %v484, %v630
        %v632 = vpop.f32.mrf.mxu0
        %v633 = vadd.f32 %v486, %v632
        %634 = vmatmul.bf16.gmra.mxu0 %v290
        %v635 = vpop.f32.mrf.mxu0
        %v636 = vadd.f32 %v489, %v635
        %v637 = vpop.f32.mrf.mxu0
        %v638 = vadd.f32 %v491, %v637
        %639 = vmatmul.bf16.gmra.mxu0 %v291
        %v640 = vpop.f32.mrf.mxu0
        %v641 = vadd.f32 %v494, %v640
        %v642 = vpop.f32.mrf.mxu0
        %v643 = vadd.f32 %v496, %v642
        %644 = vmatmul.bf16.gmra.mxu0 %v292
        %v645 = vpop.f32.mrf.mxu0
        %v646 = vadd.f32 %v499, %v645
        %v647 = vpop.f32.mrf.mxu0
        %v648 = vadd.f32 %v501, %v647
        %649 = vmatmul.bf16.gmra.mxu0 %v293
        %v650 = vpop.f32.mrf.mxu0
        %v651 = vadd.f32 %v504, %v650
        %v652 = vpop.f32.mrf.mxu0
        %v653 = vadd.f32 %v506, %v652
        %654 = vmatmul.bf16.gmra.mxu0 %v294
        %v655 = vpop.f32.mrf.mxu0
        %v656 = vadd.f32 %v509, %v655
        %v657 = vpop.f32.mrf.mxu0
        %v658 = vadd.f32 %v511, %v657
        %659 = vmatmul.bf16.gmra.mxu0 %v295
        %v660 = vpop.f32.mrf.mxu0
        %v661 = vadd.f32 %v514, %v660
        %v662 = vpop.f32.mrf.mxu0
        %v663 = vadd.f32 %v516, %v662
        %664 = vmatmul.bf16.gmra.mxu0 %v296
        %v665 = vpop.f32.mrf.mxu0
        %v666 = vadd.f32 %v519, %v665
        %v667 = vpop.f32.mrf.mxu0
        %v668 = vadd.f32 %v521, %v667
        %669 = vmatmul.bf16.gmra.mxu0 %v297
        %v670 = vpop.f32.mrf.mxu0
        %v671 = vadd.f32 %v524, %v670
        %v672 = vpop.f32.mrf.mxu0
        %v673 = vadd.f32 %v526, %v672
        %674 = vmatmul.bf16.gmra.mxu0 %v298
        %v675 = vpop.f32.mrf.mxu0
        %v676 = vadd.f32 %v529, %v675
        %v677 = vpop.f32.mrf.mxu0
        %v678 = vadd.f32 %v531, %v677
        %679 = vdwg.mxu0
        %v680 = vld [vmem:[%s242 + $0x3] sm:$0xff]
        %v681 = vld [vmem:[%s242 + $0xb] sm:$0xff]
        %v682 = vld [vmem:[%s242 + $0x1b] sm:$0xff]
        %v683 = vld [vmem:[%s242 + $0x23] sm:$0xff]
        %v684 = vld [vmem:[%s242 + $0x33] sm:$0xff]
        %v685 = vld [vmem:[%s242 + $0x3b] sm:$0xff]
        %v686 = vld [vmem:[%s242 + $0x4b] sm:$0xff]
        %v687 = vld [vmem:[%s242 + $0x53] sm:$0xff]
        %v688 = vld [vmem:[%s242 + $0x63] sm:$0xff]
        %v689 = vld [vmem:[%s242 + $0x6b] sm:$0xff]
        %v690 = vld [vmem:[%s242 + $0x7b] sm:$0xff]
        %v691 = vld [vmem:[%s242 + $0x83] sm:$0xff]
        %v692 = vld [vmem:[%s242 + $0x93] sm:$0xff]
        %v693 = vld [vmem:[%s242 + $0x9b] sm:$0xff]
        %v694 = vld [vmem:[%s242 + $0xab] sm:$0xff]
        %v695 = vld [vmem:[%s242 + $0xb3] sm:$0xff]
        %v696 = vld [vmem:[%s242 + $0xc3] sm:$0xff]
        %v697 = vld [vmem:[%s242 + $0xcb] sm:$0xff]
        %v698 = vld [vmem:[%s242 + $0xdb] sm:$0xff]
        %v699 = vld [vmem:[%s242 + $0xe3] sm:$0xff]
        %v700 = vld [vmem:[%s242 + $0xf3] sm:$0xff]
        %v701 = vld [vmem:[%s242 + $0xfb] sm:$0xff]
        %v702 = vld [vmem:[%s242 + $0x10b] sm:$0xff]
        %v703 = vld [vmem:[%s242 + $0x113] sm:$0xff]
        %v704 = vld [vmem:[%s242 + $0x123] sm:$0xff]
        %v705 = vld [vmem:[%s242 + $0x12b] sm:$0xff]
        %v706 = vld [vmem:[%s242 + $0x13b] sm:$0xff]
        %v707 = vld [vmem:[%s242 + $0x143] sm:$0xff]
        %v708 = vld [vmem:[%s242 + $0x153] sm:$0xff]
        %v709 = vld [vmem:[%s242 + $0x15b] sm:$0xff]
        %v710 = vld [vmem:[%s242 + $0x16b] sm:$0xff]
        %v711 = vld [vmem:[%s242 + $0x173] sm:$0xff]
        %v712 = vld [vmem:[%s242 + $0x183] sm:$0xff]
        %v713 = vld [vmem:[%s242 + $0x18b] sm:$0xff]
        %v714 = vld [vmem:[%s242 + $0x19b] sm:$0xff]
        %v715 = vld [vmem:[%s242 + $0x1a3] sm:$0xff]
        %v716 = vpack.c.bf16 %v681, %v680
        %v717 = vpack.c.bf16 %v683, %v682
        %v718 = vpack.c.bf16 %v685, %v684
        %v719 = vpack.c.bf16 %v687, %v686
        %v720 = vpack.c.bf16 %v689, %v688
        %v721 = vpack.c.bf16 %v691, %v690
        %v722 = vpack.c.bf16 %v693, %v692
        %v723 = vpack.c.bf16 %v695, %v694
        %v724 = vpack.c.bf16 %v697, %v696
        %v725 = vpack.c.bf16 %v699, %v698
        %v726 = vpack.c.bf16 %v701, %v700
        %v727 = vpack.c.bf16 %v703, %v702
        %v728 = vpack.c.bf16 %v705, %v704
        %v729 = vpack.c.bf16 %v707, %v706
        %v730 = vpack.c.bf16 %v709, %v708
        %v731 = vpack.c.bf16 %v711, %v710
        %v732 = vpack.c.bf16 %v713, %v712
        %v733 = vpack.c.bf16 %v715, %v714
        %s734 = scalar_lea.vmem %s1, 128
        %v735 = vld [vmem:[%s734] sm:$0xf]
        %v736 = vld [vmem:[%s734 + $0x4] sm:$0xf]
        %v737 = vld [vmem:[%s734 + $0x8] sm:$0xf]
        %v738 = vld [vmem:[%s734 + $0xc] sm:$0xf]
        %v739 = vld [vmem:[%s734 + $0x10] sm:$0xf]
        %v740 = vld [vmem:[%s734 + $0x14] sm:$0xf]
        %v741 = vld [vmem:[%s734 + $0x18] sm:$0xf]
        %v742 = vld [vmem:[%s734 + $0x1c] sm:$0xf]
        %v743 = vld [vmem:[%s734 + $0x20] sm:$0xf]
        %v744 = vld [vmem:[%s734 + $0x24] sm:$0xf]
        %v745 = vld [vmem:[%s734 + $0x28] sm:$0xf]
        %v746 = vld [vmem:[%s734 + $0x2c] sm:$0xf]
        %v747 = vld [vmem:[%s734 + $0x30] sm:$0xf]
        %v748 = vld [vmem:[%s734 + $0x34] sm:$0xf]
        %v749 = vld [vmem:[%s734 + $0x38] sm:$0xf]
        %v750 = vld [vmem:[%s734 + $0x3c] sm:$0xf]
        %v767 = vunpack.c.l.b16 %v735
        %v768 = vunpack.c.l.b16 %v736
        %v769 = vunpack.c.l.b16 %v737
        %v770 = vunpack.c.l.b16 %v738
        %v771 = vunpack.c.l.b16 %v739
        %v772 = vunpack.c.l.b16 %v740
        %v773 = vunpack.c.l.b16 %v741
        %v774 = vunpack.c.l.b16 %v742
        %v775 = vunpack.c.l.b16 %v743
        %v776 = vunpack.c.l.b16 %v744
        %v777 = vunpack.c.l.b16 %v745
        %v778 = vunpack.c.l.b16 %v746
        %v779 = vunpack.c.l.b16 %v747
        %v780 = vunpack.c.l.b16 %v748
        %v781 = vunpack.c.l.b16 %v749
        %v782 = vunpack.c.l.b16 %v750
        %v783 = vpack.c.b16 %v768, %v767
        %v784 = vpack.c.b16 %v770, %v769
        %v785 = vpack.c.b16 %v772, %v771
        %v786 = vpack.c.b16 %v774, %v773
        %v787 = vpack.c.b16 %v776, %v775
        %v788 = vpack.c.b16 %v778, %v777
        %v789 = vpack.c.b16 %v780, %v779
        %v790 = vpack.c.b16 %v782, %v781
        %799 = vmatpush.bf16.msra.mxu0 %v790
        %800 = vmatpush.bf16.msra.mxu0 %v789
        %801 = vmatpush.bf16.msra.mxu0 %v788
        %802 = vmatpush.bf16.msra.mxu0 %v787
        %803 = vmatpush.bf16.msra.mxu0 %v786
        %804 = vmatpush.bf16.msra.mxu0 %v785
        %805 = vmatpush.bf16.msra.mxu0 %v784
        %806 = vmatpush.bf16.msra.mxu0 %v783
        %807 = vmatmul.bf16.gmra.mxu0 %v716
        %v808 = vpop.f32.mrf.mxu0
        %v809 = vadd.f32 0.0, %v808
        %v810 = vpop.f32.mrf.mxu0
        %v811 = vadd.f32 0.0, %v810
        %812 = vmatmul.bf16.gmra.mxu0 %v717
        %v813 = vpop.f32.mrf.mxu0
        %v814 = vadd.f32 0.0, %v813
        %v815 = vpop.f32.mrf.mxu0
        %v816 = vadd.f32 0.0, %v815
        %817 = vmatmul.bf16.gmra.mxu0 %v718
        %v818 = vpop.f32.mrf.mxu0
        %v819 = vadd.f32 0.0, %v818
        %v820 = vpop.f32.mrf.mxu0
        %v821 = vadd.f32 0.0, %v820
        %822 = vmatmul.bf16.gmra.mxu0 %v719
        %v823 = vpop.f32.mrf.mxu0
        %v824 = vadd.f32 0.0, %v823
        %v825 = vpop.f32.mrf.mxu0
        %v826 = vadd.f32 0.0, %v825
        %827 = vmatmul.bf16.gmra.mxu0 %v720
        %v828 = vpop.f32.mrf.mxu0
        %v829 = vadd.f32 0.0, %v828
        %v830 = vpop.f32.mrf.mxu0
        %v831 = vadd.f32 0.0, %v830
        %832 = vmatmul.bf16.gmra.mxu0 %v721
        %v833 = vpop.f32.mrf.mxu0
        %v834 = vadd.f32 0.0, %v833
        %v835 = vpop.f32.mrf.mxu0
        %v836 = vadd.f32 0.0, %v835
        %837 = vmatmul.bf16.gmra.mxu0 %v722
        %v838 = vpop.f32.mrf.mxu0
        %v839 = vadd.f32 0.0, %v838
        %v840 = vpop.f32.mrf.mxu0
        %v841 = vadd.f32 0.0, %v840
        %842 = vmatmul.bf16.gmra.mxu0 %v723
        %v843 = vpop.f32.mrf.mxu0
        %v844 = vadd.f32 0.0, %v843
        %v845 = vpop.f32.mrf.mxu0
        %v846 = vadd.f32 0.0, %v845
        %847 = vmatmul.bf16.gmra.mxu0 %v724
        %v848 = vpop.f32.mrf.mxu0
        %v849 = vadd.f32 0.0, %v848
        %v850 = vpop.f32.mrf.mxu0
        %v851 = vadd.f32 0.0, %v850
        %852 = vmatmul.bf16.gmra.mxu0 %v725
        %v853 = vpop.f32.mrf.mxu0
        %v854 = vadd.f32 0.0, %v853
        %v855 = vpop.f32.mrf.mxu0
        %v856 = vadd.f32 0.0, %v855
        %857 = vmatmul.bf16.gmra.mxu0 %v726
        %v858 = vpop.f32.mrf.mxu0
        %v859 = vadd.f32 0.0, %v858
        %v860 = vpop.f32.mrf.mxu0
        %v861 = vadd.f32 0.0, %v860
        %862 = vmatmul.bf16.gmra.mxu0 %v727
        %v863 = vpop.f32.mrf.mxu0
        %v864 = vadd.f32 0.0, %v863
        %v865 = vpop.f32.mrf.mxu0
        %v866 = vadd.f32 0.0, %v865
        %867 = vmatmul.bf16.gmra.mxu0 %v728
        %v868 = vpop.f32.mrf.mxu0
        %v869 = vadd.f32 0.0, %v868
        %v870 = vpop.f32.mrf.mxu0
        %v871 = vadd.f32 0.0, %v870
        %872 = vmatmul.bf16.gmra.mxu0 %v729
        %v873 = vpop.f32.mrf.mxu0
        %v874 = vadd.f32 0.0, %v873
        %v875 = vpop.f32.mrf.mxu0
        %v876 = vadd.f32 0.0, %v875
        %877 = vmatmul.bf16.gmra.mxu0 %v730
        %v878 = vpop.f32.mrf.mxu0
        %v879 = vadd.f32 0.0, %v878
        %v880 = vpop.f32.mrf.mxu0
        %v881 = vadd.f32 0.0, %v880
        %882 = vmatmul.bf16.gmra.mxu0 %v731
        %v883 = vpop.f32.mrf.mxu0
        %v884 = vadd.f32 0.0, %v883
        %v885 = vpop.f32.mrf.mxu0
        %v886 = vadd.f32 0.0, %v885
        %887 = vmatmul.bf16.gmra.mxu0 %v732
        %v888 = vpop.f32.mrf.mxu0
        %v889 = vadd.f32 0.0, %v888
        %v890 = vpop.f32.mrf.mxu0
        %v891 = vadd.f32 0.0, %v890
        %892 = vmatmul.bf16.gmra.mxu0 %v733
        %v893 = vpop.f32.mrf.mxu0
        %v894 = vadd.f32 0.0, %v893
        %v895 = vpop.f32.mrf.mxu0
        %v896 = vadd.f32 0.0, %v895
        %897 = vdwg.mxu0
        %v898 = vadd.f32 %v591, %v809
        %v899 = vadd.f32 %v593, %v811
        %v900 = vadd.f32 %v596, %v814
        %v901 = vadd.f32 %v598, %v816
        %v902 = vadd.f32 %v601, %v819
        %v903 = vadd.f32 %v603, %v821
        %v904 = vadd.f32 %v606, %v824
        %v905 = vadd.f32 %v608, %v826
        %v906 = vadd.f32 %v611, %v829
        %v907 = vadd.f32 %v613, %v831
        %v908 = vadd.f32 %v616, %v834
        %v909 = vadd.f32 %v618, %v836
        %v910 = vadd.f32 %v621, %v839
        %v911 = vadd.f32 %v623, %v841
        %v912 = vadd.f32 %v626, %v844
        %v913 = vadd.f32 %v628, %v846
        %v914 = vadd.f32 %v631, %v849
        %v915 = vadd.f32 %v633, %v851
        %v916 = vadd.f32 %v636, %v854
        %v917 = vadd.f32 %v638, %v856
        %v918 = vadd.f32 %v641, %v859
        %v919 = vadd.f32 %v643, %v861
        %v920 = vadd.f32 %v646, %v864
        %v921 = vadd.f32 %v648, %v866
        %v922 = vadd.f32 %v651, %v869
        %v923 = vadd.f32 %v653, %v871
        %v924 = vadd.f32 %v656, %v874
        %v925 = vadd.f32 %v658, %v876
        %v926 = vadd.f32 %v661, %v879
        %v927 = vadd.f32 %v663, %v881
        %v928 = vadd.f32 %v666, %v884
        %v929 = vadd.f32 %v668, %v886
        %v930 = vadd.f32 %v671, %v889
        %v931 = vadd.f32 %v673, %v891
        %v932 = vadd.f32 %v676, %v894
        %v933 = vadd.f32 %v678, %v896
        %s934 = scalar_lea.vmem %s242, 24
        %v935 = vld [vmem:[%s934 + $0x1] sm:$0xff]
        %v936 = vld [vmem:[%s934 + $0x9] sm:$0xff]
        %v937 = vld [vmem:[%s934 + $0x19] sm:$0xff]
        %v938 = vld [vmem:[%s934 + $0x21] sm:$0xff]
        %v939 = vld [vmem:[%s934 + $0x31] sm:$0xff]
        %v940 = vld [vmem:[%s934 + $0x39] sm:$0xff]
        %v941 = vld [vmem:[%s934 + $0x49] sm:$0xff]
        %v942 = vld [vmem:[%s934 + $0x51] sm:$0xff]
        %v943 = vld [vmem:[%s934 + $0x61] sm:$0xff]
        %v944 = vld [vmem:[%s934 + $0x69] sm:$0xff]
        %v945 = vld [vmem:[%s934 + $0x79] sm:$0xff]
        %v946 = vld [vmem:[%s934 + $0x81] sm:$0xff]
        %v947 = vld [vmem:[%s934 + $0x91] sm:$0xff]
        %v948 = vld [vmem:[%s934 + $0x99] sm:$0xff]
        %v949 = vld [vmem:[%s934 + $0xa9] sm:$0xff]
        %v950 = vld [vmem:[%s934 + $0xb1] sm:$0xff]
        %v951 = vld [vmem:[%s934 + $0xc1] sm:$0xff]
        %v952 = vld [vmem:[%s934 + $0xc9] sm:$0xff]
        %v953 = vld [vmem:[%s934 + $0xd9] sm:$0xff]
        %v954 = vld [vmem:[%s934 + $0xe1] sm:$0xff]
        %v955 = vld [vmem:[%s934 + $0xf1] sm:$0xff]
        %v956 = vld [vmem:[%s934 + $0xf9] sm:$0xff]
        %v957 = vld [vmem:[%s934 + $0x109] sm:$0xff]
        %v958 = vld [vmem:[%s934 + $0x111] sm:$0xff]
        %v959 = vld [vmem:[%s934 + $0x121] sm:$0xff]
        %v960 = vld [vmem:[%s934 + $0x129] sm:$0xff]
        %v961 = vld [vmem:[%s934 + $0x139] sm:$0xff]
        %v962 = vld [vmem:[%s934 + $0x141] sm:$0xff]
        %v963 = vld [vmem:[%s934 + $0x151] sm:$0xff]
        %v964 = vld [vmem:[%s934 + $0x159] sm:$0xff]
        %v965 = vld [vmem:[%s934 + $0x169] sm:$0xff]
        %v966 = vld [vmem:[%s934 + $0x171] sm:$0xff]
        %v967 = vld [vmem:[%s934 + $0x181] sm:$0xff]
        %v968 = vld [vmem:[%s934 + $0x189] sm:$0xff]
        %v969 = vld [vmem:[%s934 + $0x199] sm:$0xff]
        %v970 = vld [vmem:[%s934 + $0x1a1] sm:$0xff]
        %v971 = vpack.c.bf16 %v936, %v935
        %v972 = vpack.c.bf16 %v938, %v937
        %v973 = vpack.c.bf16 %v940, %v939
        %v974 = vpack.c.bf16 %v942, %v941
        %v975 = vpack.c.bf16 %v944, %v943
        %v976 = vpack.c.bf16 %v946, %v945
        %v977 = vpack.c.bf16 %v948, %v947
        %v978 = vpack.c.bf16 %v950, %v949
        %v979 = vpack.c.bf16 %v952, %v951
        %v980 = vpack.c.bf16 %v954, %v953
        %v981 = vpack.c.bf16 %v956, %v955
        %v982 = vpack.c.bf16 %v958, %v957
        %v983 = vpack.c.bf16 %v960, %v959
        %v984 = vpack.c.bf16 %v962, %v961
        %v985 = vpack.c.bf16 %v964, %v963
        %v986 = vpack.c.bf16 %v966, %v965
        %v987 = vpack.c.bf16 %v968, %v967
        %v988 = vpack.c.bf16 %v970, %v969
        %s989 = scalar_lea.vmem %s1, 192
        %v990 = vld [vmem:[%s989] sm:$0xf]
        %v991 = vld [vmem:[%s989 + $0x4] sm:$0xf]
        %v992 = vld [vmem:[%s989 + $0x8] sm:$0xf]
        %v993 = vld [vmem:[%s989 + $0xc] sm:$0xf]
        %v994 = vld [vmem:[%s989 + $0x10] sm:$0xf]
        %v995 = vld [vmem:[%s989 + $0x14] sm:$0xf]
        %v996 = vld [vmem:[%s989 + $0x18] sm:$0xf]
        %v997 = vld [vmem:[%s989 + $0x1c] sm:$0xf]
        %v998 = vld [vmem:[%s989 + $0x20] sm:$0xf]
        %v999 = vld [vmem:[%s989 + $0x24] sm:$0xf]
        %v1000 = vld [vmem:[%s989 + $0x28] sm:$0xf]
        %v1001 = vld [vmem:[%s989 + $0x2c] sm:$0xf]
        %v1002 = vld [vmem:[%s989 + $0x30] sm:$0xf]
        %v1003 = vld [vmem:[%s989 + $0x34] sm:$0xf]
        %v1004 = vld [vmem:[%s989 + $0x38] sm:$0xf]
        %v1005 = vld [vmem:[%s989 + $0x3c] sm:$0xf]
        %v1022 = vunpack.c.l.b16 %v990
        %v1023 = vunpack.c.l.b16 %v991
        %v1024 = vunpack.c.l.b16 %v992
        %v1025 = vunpack.c.l.b16 %v993
        %v1026 = vunpack.c.l.b16 %v994
        %v1027 = vunpack.c.l.b16 %v995
        %v1028 = vunpack.c.l.b16 %v996
        %v1029 = vunpack.c.l.b16 %v997
        %v1030 = vunpack.c.l.b16 %v998
        %v1031 = vunpack.c.l.b16 %v999
        %v1032 = vunpack.c.l.b16 %v1000
        %v1033 = vunpack.c.l.b16 %v1001
        %v1034 = vunpack.c.l.b16 %v1002
        %v1035 = vunpack.c.l.b16 %v1003
        %v1036 = vunpack.c.l.b16 %v1004
        %v1037 = vunpack.c.l.b16 %v1005
        %v1038 = vpack.c.b16 %v1023, %v1022
        %v1039 = vpack.c.b16 %v1025, %v1024
        %v1040 = vpack.c.b16 %v1027, %v1026
        %v1041 = vpack.c.b16 %v1029, %v1028
        %v1042 = vpack.c.b16 %v1031, %v1030
        %v1043 = vpack.c.b16 %v1033, %v1032
        %v1044 = vpack.c.b16 %v1035, %v1034
        %v1045 = vpack.c.b16 %v1037, %v1036
        %1054 = vmatpush.bf16.msra.mxu0 %v1045
        %1055 = vmatpush.bf16.msra.mxu0 %v1044
        %1056 = vmatpush.bf16.msra.mxu0 %v1043
        %1057 = vmatpush.bf16.msra.mxu0 %v1042
        %1058 = vmatpush.bf16.msra.mxu0 %v1041
        %1059 = vmatpush.bf16.msra.mxu0 %v1040
        %1060 = vmatpush.bf16.msra.mxu0 %v1039
        %1061 = vmatpush.bf16.msra.mxu0 %v1038
        %1062 = vmatmul.bf16.gmra.mxu0 %v971
        %v1063 = vpop.f32.mrf.mxu0
        %v1064 = vadd.f32 0.0, %v1063
        %v1065 = vpop.f32.mrf.mxu0
        %v1066 = vadd.f32 0.0, %v1065
        %1067 = vmatmul.bf16.gmra.mxu0 %v972
        %v1068 = vpop.f32.mrf.mxu0
        %v1069 = vadd.f32 0.0, %v1068
        %v1070 = vpop.f32.mrf.mxu0
        %v1071 = vadd.f32 0.0, %v1070
        %1072 = vmatmul.bf16.gmra.mxu0 %v973
        %v1073 = vpop.f32.mrf.mxu0
        %v1074 = vadd.f32 0.0, %v1073
        %v1075 = vpop.f32.mrf.mxu0
        %v1076 = vadd.f32 0.0, %v1075
        %1077 = vmatmul.bf16.gmra.mxu0 %v974
        %v1078 = vpop.f32.mrf.mxu0
        %v1079 = vadd.f32 0.0, %v1078
        %v1080 = vpop.f32.mrf.mxu0
        %v1081 = vadd.f32 0.0, %v1080
        %1082 = vmatmul.bf16.gmra.mxu0 %v975
        %v1083 = vpop.f32.mrf.mxu0
        %v1084 = vadd.f32 0.0, %v1083
        %v1085 = vpop.f32.mrf.mxu0
        %v1086 = vadd.f32 0.0, %v1085
        %1087 = vmatmul.bf16.gmra.mxu0 %v976
        %v1088 = vpop.f32.mrf.mxu0
        %v1089 = vadd.f32 0.0, %v1088
        %v1090 = vpop.f32.mrf.mxu0
        %v1091 = vadd.f32 0.0, %v1090
        %1092 = vmatmul.bf16.gmra.mxu0 %v977
        %v1093 = vpop.f32.mrf.mxu0
        %v1094 = vadd.f32 0.0, %v1093
        %v1095 = vpop.f32.mrf.mxu0
        %v1096 = vadd.f32 0.0, %v1095
        %1097 = vmatmul.bf16.gmra.mxu0 %v978
        %v1098 = vpop.f32.mrf.mxu0
        %v1099 = vadd.f32 0.0, %v1098
        %v1100 = vpop.f32.mrf.mxu0
        %v1101 = vadd.f32 0.0, %v1100
        %1102 = vmatmul.bf16.gmra.mxu0 %v979
        %v1103 = vpop.f32.mrf.mxu0
        %v1104 = vadd.f32 0.0, %v1103
        %v1105 = vpop.f32.mrf.mxu0
        %v1106 = vadd.f32 0.0, %v1105
        %1107 = vmatmul.bf16.gmra.mxu0 %v980
        %v1108 = vpop.f32.mrf.mxu0
        %v1109 = vadd.f32 0.0, %v1108
        %v1110 = vpop.f32.mrf.mxu0
        %v1111 = vadd.f32 0.0, %v1110
        %1112 = vmatmul.bf16.gmra.mxu0 %v981
        %v1113 = vpop.f32.mrf.mxu0
        %v1114 = vadd.f32 0.0, %v1113
        %v1115 = vpop.f32.mrf.mxu0
        %v1116 = vadd.f32 0.0, %v1115
        %1117 = vmatmul.bf16.gmra.mxu0 %v982
        %v1118 = vpop.f32.mrf.mxu0
        %v1119 = vadd.f32 0.0, %v1118
        %v1120 = vpop.f32.mrf.mxu0
        %v1121 = vadd.f32 0.0, %v1120
        %1122 = vmatmul.bf16.gmra.mxu0 %v983
        %v1123 = vpop.f32.mrf.mxu0
        %v1124 = vadd.f32 0.0, %v1123
        %v1125 = vpop.f32.mrf.mxu0
        %v1126 = vadd.f32 0.0, %v1125
        %1127 = vmatmul.bf16.gmra.mxu0 %v984
        %v1128 = vpop.f32.mrf.mxu0
        %v1129 = vadd.f32 0.0, %v1128
        %v1130 = vpop.f32.mrf.mxu0
        %v1131 = vadd.f32 0.0, %v1130
        %1132 = vmatmul.bf16.gmra.mxu0 %v985
        %v1133 = vpop.f32.mrf.mxu0
        %v1134 = vadd.f32 0.0, %v1133
        %v1135 = vpop.f32.mrf.mxu0
        %v1136 = vadd.f32 0.0, %v1135
        %1137 = vmatmul.bf16.gmra.mxu0 %v986
        %v1138 = vpop.f32.mrf.mxu0
        %v1139 = vadd.f32 0.0, %v1138
        %v1140 = vpop.f32.mrf.mxu0
        %v1141 = vadd.f32 0.0, %v1140
        %1142 = vmatmul.bf16.gmra.mxu0 %v987
        %v1143 = vpop.f32.mrf.mxu0
        %v1144 = vadd.f32 0.0, %v1143
        %v1145 = vpop.f32.mrf.mxu0
        %v1146 = vadd.f32 0.0, %v1145
        %1147 = vmatmul.bf16.gmra.mxu0 %v988
        %v1148 = vpop.f32.mrf.mxu0
        %v1149 = vadd.f32 0.0, %v1148
        %v1150 = vpop.f32.mrf.mxu0
        %v1151 = vadd.f32 0.0, %v1150
        %1152 = vdwg.mxu0
        %v1153 = vadd.f32 %v898, %v1064
        %v1154 = vadd.f32 %v899, %v1066
        %v1155 = vadd.f32 %v900, %v1069
        %v1156 = vadd.f32 %v901, %v1071
        %v1157 = vadd.f32 %v902, %v1074
        %v1158 = vadd.f32 %v903, %v1076
        %v1159 = vadd.f32 %v904, %v1079
        %v1160 = vadd.f32 %v905, %v1081
        %v1161 = vadd.f32 %v906, %v1084
        %v1162 = vadd.f32 %v907, %v1086
        %v1163 = vadd.f32 %v908, %v1089
        %v1164 = vadd.f32 %v909, %v1091
        %v1165 = vadd.f32 %v910, %v1094
        %v1166 = vadd.f32 %v911, %v1096
        %v1167 = vadd.f32 %v912, %v1099
        %v1168 = vadd.f32 %v913, %v1101
        %v1169 = vadd.f32 %v914, %v1104
        %v1170 = vadd.f32 %v915, %v1106
        %v1171 = vadd.f32 %v916, %v1109
        %v1172 = vadd.f32 %v917, %v1111
        %v1173 = vadd.f32 %v918, %v1114
        %v1174 = vadd.f32 %v919, %v1116
        %v1175 = vadd.f32 %v920, %v1119
        %v1176 = vadd.f32 %v921, %v1121
        %v1177 = vadd.f32 %v922, %v1124
        %v1178 = vadd.f32 %v923, %v1126
        %v1179 = vadd.f32 %v924, %v1129
        %v1180 = vadd.f32 %v925, %v1131
        %v1181 = vadd.f32 %v926, %v1134
        %v1182 = vadd.f32 %v927, %v1136
        %v1183 = vadd.f32 %v928, %v1139
        %v1184 = vadd.f32 %v929, %v1141
        %v1185 = vadd.f32 %v930, %v1144
        %v1186 = vadd.f32 %v931, %v1146
        %v1187 = vadd.f32 %v932, %v1149
        %v1188 = vadd.f32 %v933, %v1151
        %v1189 = vld [vmem:[%s934 + $0x2] sm:$0xff]
        %v1190 = vld [vmem:[%s934 + $0xa] sm:$0xff]
        %v1191 = vld [vmem:[%s934 + $0x1a] sm:$0xff]
        %v1192 = vld [vmem:[%s934 + $0x22] sm:$0xff]
        %v1193 = vld [vmem:[%s934 + $0x32] sm:$0xff]
        %v1194 = vld [vmem:[%s934 + $0x3a] sm:$0xff]
        %v1195 = vld [vmem:[%s934 + $0x4a] sm:$0xff]
        %v1196 = vld [vmem:[%s934 + $0x52] sm:$0xff]
        %v1197 = vld [vmem:[%s934 + $0x62] sm:$0xff]
        %v1198 = vld [vmem:[%s934 + $0x6a] sm:$0xff]
        %v1199 = vld [vmem:[%s934 + $0x7a] sm:$0xff]
        %v1200 = vld [vmem:[%s934 + $0x82] sm:$0xff]
        %v1201 = vld [vmem:[%s934 + $0x92] sm:$0xff]
        %v1202 = vld [vmem:[%s934 + $0x9a] sm:$0xff]
        %v1203 = vld [vmem:[%s934 + $0xaa] sm:$0xff]
        %v1204 = vld [vmem:[%s934 + $0xb2] sm:$0xff]
        %v1205 = vld [vmem:[%s934 + $0xc2] sm:$0xff]
        %v1206 = vld [vmem:[%s934 + $0xca] sm:$0xff]
        %v1207 = vld [vmem:[%s934 + $0xda] sm:$0xff]
        %v1208 = vld [vmem:[%s934 + $0xe2] sm:$0xff]
        %v1209 = vld [vmem:[%s934 + $0xf2] sm:$0xff]
        %v1210 = vld [vmem:[%s934 + $0xfa] sm:$0xff]
        %v1211 = vld [vmem:[%s934 + $0x10a] sm:$0xff]
        %v1212 = vld [vmem:[%s934 + $0x112] sm:$0xff]
        %v1213 = vld [vmem:[%s934 + $0x122] sm:$0xff]
        %v1214 = vld [vmem:[%s934 + $0x12a] sm:$0xff]
        %v1215 = vld [vmem:[%s934 + $0x13a] sm:$0xff]
        %v1216 = vld [vmem:[%s934 + $0x142] sm:$0xff]
        %v1217 = vld [vmem:[%s934 + $0x152] sm:$0xff]
        %v1218 = vld [vmem:[%s934 + $0x15a] sm:$0xff]
        %v1219 = vld [vmem:[%s934 + $0x16a] sm:$0xff]
        %v1220 = vld [vmem:[%s934 + $0x172] sm:$0xff]
        %v1221 = vld [vmem:[%s934 + $0x182] sm:$0xff]
        %v1222 = vld [vmem:[%s934 + $0x18a] sm:$0xff]
        %v1223 = vld [vmem:[%s934 + $0x19a] sm:$0xff]
        %v1224 = vld [vmem:[%s934 + $0x1a2] sm:$0xff]
        %v1225 = vpack.c.bf16 %v1190, %v1189
        %v1226 = vpack.c.bf16 %v1192, %v1191
        %v1227 = vpack.c.bf16 %v1194, %v1193
        %v1228 = vpack.c.bf16 %v1196, %v1195
        %v1229 = vpack.c.bf16 %v1198, %v1197
        %v1230 = vpack.c.bf16 %v1200, %v1199
        %v1231 = vpack.c.bf16 %v1202, %v1201
        %v1232 = vpack.c.bf16 %v1204, %v1203
        %v1233 = vpack.c.bf16 %v1206, %v1205
        %v1234 = vpack.c.bf16 %v1208, %v1207
        %v1235 = vpack.c.bf16 %v1210, %v1209
        %v1236 = vpack.c.bf16 %v1212, %v1211
        %v1237 = vpack.c.bf16 %v1214, %v1213
        %v1238 = vpack.c.bf16 %v1216, %v1215
        %v1239 = vpack.c.bf16 %v1218, %v1217
        %v1240 = vpack.c.bf16 %v1220, %v1219
        %v1241 = vpack.c.bf16 %v1222, %v1221
        %v1242 = vpack.c.bf16 %v1224, %v1223
        %s1243 = scalar_lea.vmem %s1, 256
        %v1244 = vld [vmem:[%s1243] sm:$0xf]
        %v1245 = vld [vmem:[%s1243 + $0x4] sm:$0xf]
        %v1246 = vld [vmem:[%s1243 + $0x8] sm:$0xf]
        %v1247 = vld [vmem:[%s1243 + $0xc] sm:$0xf]
        %v1248 = vld [vmem:[%s1243 + $0x10] sm:$0xf]
        %v1249 = vld [vmem:[%s1243 + $0x14] sm:$0xf]
        %v1250 = vld [vmem:[%s1243 + $0x18] sm:$0xf]
        %v1251 = vld [vmem:[%s1243 + $0x1c] sm:$0xf]
        %v1252 = vld [vmem:[%s1243 + $0x20] sm:$0xf]
        %v1253 = vld [vmem:[%s1243 + $0x24] sm:$0xf]
        %v1254 = vld [vmem:[%s1243 + $0x28] sm:$0xf]
        %v1255 = vld [vmem:[%s1243 + $0x2c] sm:$0xf]
        %v1256 = vld [vmem:[%s1243 + $0x30] sm:$0xf]
        %v1257 = vld [vmem:[%s1243 + $0x34] sm:$0xf]
        %v1258 = vld [vmem:[%s1243 + $0x38] sm:$0xf]
        %v1259 = vld [vmem:[%s1243 + $0x3c] sm:$0xf]
        %v1276 = vunpack.c.l.b16 %v1244
        %v1277 = vunpack.c.l.b16 %v1245
        %v1278 = vunpack.c.l.b16 %v1246
        %v1279 = vunpack.c.l.b16 %v1247
        %v1280 = vunpack.c.l.b16 %v1248
        %v1281 = vunpack.c.l.b16 %v1249
        %v1282 = vunpack.c.l.b16 %v1250
        %v1283 = vunpack.c.l.b16 %v1251
        %v1284 = vunpack.c.l.b16 %v1252
        %v1285 = vunpack.c.l.b16 %v1253
        %v1286 = vunpack.c.l.b16 %v1254
        %v1287 = vunpack.c.l.b16 %v1255
        %v1288 = vunpack.c.l.b16 %v1256
        %v1289 = vunpack.c.l.b16 %v1257
        %v1290 = vunpack.c.l.b16 %v1258
        %v1291 = vunpack.c.l.b16 %v1259
        %v1292 = vpack.c.b16 %v1277, %v1276
        %v1293 = vpack.c.b16 %v1279, %v1278
        %v1294 = vpack.c.b16 %v1281, %v1280
        %v1295 = vpack.c.b16 %v1283, %v1282
        %v1296 = vpack.c.b16 %v1285, %v1284
        %v1297 = vpack.c.b16 %v1287, %v1286
        %v1298 = vpack.c.b16 %v1289, %v1288
        %v1299 = vpack.c.b16 %v1291, %v1290
        %1308 = vmatpush.bf16.msra.mxu0 %v1299
        %1309 = vmatpush.bf16.msra.mxu0 %v1298
        %1310 = vmatpush.bf16.msra.mxu0 %v1297
        %1311 = vmatpush.bf16.msra.mxu0 %v1296
        %1312 = vmatpush.bf16.msra.mxu0 %v1295
        %1313 = vmatpush.bf16.msra.mxu0 %v1294
        %1314 = vmatpush.bf16.msra.mxu0 %v1293
        %1315 = vmatpush.bf16.msra.mxu0 %v1292
        %1316 = vmatmul.bf16.gmra.mxu0 %v1225
        %v1317 = vpop.f32.mrf.mxu0
        %v1318 = vadd.f32 0.0, %v1317
        %v1319 = vpop.f32.mrf.mxu0
        %v1320 = vadd.f32 0.0, %v1319
        %1321 = vmatmul.bf16.gmra.mxu0 %v1226
        %v1322 = vpop.f32.mrf.mxu0
        %v1323 = vadd.f32 0.0, %v1322
        %v1324 = vpop.f32.mrf.mxu0
        %v1325 = vadd.f32 0.0, %v1324
        %1326 = vmatmul.bf16.gmra.mxu0 %v1227
        %v1327 = vpop.f32.mrf.mxu0
        %v1328 = vadd.f32 0.0, %v1327
        %v1329 = vpop.f32.mrf.mxu0
        %v1330 = vadd.f32 0.0, %v1329
        %1331 = vmatmul.bf16.gmra.mxu0 %v1228
        %v1332 = vpop.f32.mrf.mxu0
        %v1333 = vadd.f32 0.0, %v1332
        %v1334 = vpop.f32.mrf.mxu0
        %v1335 = vadd.f32 0.0, %v1334
        %1336 = vmatmul.bf16.gmra.mxu0 %v1229
        %v1337 = vpop.f32.mrf.mxu0
        %v1338 = vadd.f32 0.0, %v1337
        %v1339 = vpop.f32.mrf.mxu0
        %v1340 = vadd.f32 0.0, %v1339
        %1341 = vmatmul.bf16.gmra.mxu0 %v1230
        %v1342 = vpop.f32.mrf.mxu0
        %v1343 = vadd.f32 0.0, %v1342
        %v1344 = vpop.f32.mrf.mxu0
        %v1345 = vadd.f32 0.0, %v1344
        %1346 = vmatmul.bf16.gmra.mxu0 %v1231
        %v1347 = vpop.f32.mrf.mxu0
        %v1348 = vadd.f32 0.0, %v1347
        %v1349 = vpop.f32.mrf.mxu0
        %v1350 = vadd.f32 0.0, %v1349
        %1351 = vmatmul.bf16.gmra.mxu0 %v1232
        %v1352 = vpop.f32.mrf.mxu0
        %v1353 = vadd.f32 0.0, %v1352
        %v1354 = vpop.f32.mrf.mxu0
        %v1355 = vadd.f32 0.0, %v1354
        %1356 = vmatmul.bf16.gmra.mxu0 %v1233
        %v1357 = vpop.f32.mrf.mxu0
        %v1358 = vadd.f32 0.0, %v1357
        %v1359 = vpop.f32.mrf.mxu0
        %v1360 = vadd.f32 0.0, %v1359
        %1361 = vmatmul.bf16.gmra.mxu0 %v1234
        %v1362 = vpop.f32.mrf.mxu0
        %v1363 = vadd.f32 0.0, %v1362
        %v1364 = vpop.f32.mrf.mxu0
        %v1365 = vadd.f32 0.0, %v1364
        %1366 = vmatmul.bf16.gmra.mxu0 %v1235
        %v1367 = vpop.f32.mrf.mxu0
        %v1368 = vadd.f32 0.0, %v1367
        %v1369 = vpop.f32.mrf.mxu0
        %v1370 = vadd.f32 0.0, %v1369
        %1371 = vmatmul.bf16.gmra.mxu0 %v1236
        %v1372 = vpop.f32.mrf.mxu0
        %v1373 = vadd.f32 0.0, %v1372
        %v1374 = vpop.f32.mrf.mxu0
        %v1375 = vadd.f32 0.0, %v1374
        %1376 = vmatmul.bf16.gmra.mxu0 %v1237
        %v1377 = vpop.f32.mrf.mxu0
        %v1378 = vadd.f32 0.0, %v1377
        %v1379 = vpop.f32.mrf.mxu0
        %v1380 = vadd.f32 0.0, %v1379
        %1381 = vmatmul.bf16.gmra.mxu0 %v1238
        %v1382 = vpop.f32.mrf.mxu0
        %v1383 = vadd.f32 0.0, %v1382
        %v1384 = vpop.f32.mrf.mxu0
        %v1385 = vadd.f32 0.0, %v1384
        %1386 = vmatmul.bf16.gmra.mxu0 %v1239
        %v1387 = vpop.f32.mrf.mxu0
        %v1388 = vadd.f32 0.0, %v1387
        %v1389 = vpop.f32.mrf.mxu0
        %v1390 = vadd.f32 0.0, %v1389
        %1391 = vmatmul.bf16.gmra.mxu0 %v1240
        %v1392 = vpop.f32.mrf.mxu0
        %v1393 = vadd.f32 0.0, %v1392
        %v1394 = vpop.f32.mrf.mxu0
        %v1395 = vadd.f32 0.0, %v1394
        %1396 = vmatmul.bf16.gmra.mxu0 %v1241
        %v1397 = vpop.f32.mrf.mxu0
        %v1398 = vadd.f32 0.0, %v1397
        %v1399 = vpop.f32.mrf.mxu0
        %v1400 = vadd.f32 0.0, %v1399
        %1401 = vmatmul.bf16.gmra.mxu0 %v1242
        %v1402 = vpop.f32.mrf.mxu0
        %v1403 = vadd.f32 0.0, %v1402
        %v1404 = vpop.f32.mrf.mxu0
        %v1405 = vadd.f32 0.0, %v1404
        %1406 = vdwg.mxu0
        %v1407 = vadd.f32 %v1153, %v1318
        %v1408 = vadd.f32 %v1154, %v1320
        %v1409 = vadd.f32 %v1155, %v1323
        %v1410 = vadd.f32 %v1156, %v1325
        %v1411 = vadd.f32 %v1157, %v1328
        %v1412 = vadd.f32 %v1158, %v1330
        %v1413 = vadd.f32 %v1159, %v1333
        %v1414 = vadd.f32 %v1160, %v1335
        %v1415 = vadd.f32 %v1161, %v1338
        %v1416 = vadd.f32 %v1162, %v1340
        %v1417 = vadd.f32 %v1163, %v1343
        %v1418 = vadd.f32 %v1164, %v1345
        %v1419 = vadd.f32 %v1165, %v1348
        %v1420 = vadd.f32 %v1166, %v1350
        %v1421 = vadd.f32 %v1167, %v1353
        %v1422 = vadd.f32 %v1168, %v1355
        %v1423 = vadd.f32 %v1169, %v1358
        %v1424 = vadd.f32 %v1170, %v1360
        %v1425 = vadd.f32 %v1171, %v1363
        %v1426 = vadd.f32 %v1172, %v1365
        %v1427 = vadd.f32 %v1173, %v1368
        %v1428 = vadd.f32 %v1174, %v1370
        %v1429 = vadd.f32 %v1175, %v1373
        %v1430 = vadd.f32 %v1176, %v1375
        %v1431 = vadd.f32 %v1177, %v1378
        %v1432 = vadd.f32 %v1178, %v1380
        %v1433 = vadd.f32 %v1179, %v1383
        %v1434 = vadd.f32 %v1180, %v1385
        %v1435 = vadd.f32 %v1181, %v1388
        %v1436 = vadd.f32 %v1182, %v1390
        %v1437 = vadd.f32 %v1183, %v1393
        %v1438 = vadd.f32 %v1184, %v1395
        %v1439 = vadd.f32 %v1185, %v1398
        %v1440 = vadd.f32 %v1186, %v1400
        %v1441 = vadd.f32 %v1187, %v1403
        %v1442 = vadd.f32 %v1188, %v1405
        %v1443 = vld [vmem:[%s934 + $0x3] sm:$0xff]
        %v1444 = vld [vmem:[%s934 + $0xb] sm:$0xff]
        %v1445 = vld [vmem:[%s934 + $0x1b] sm:$0xff]
        %v1446 = vld [vmem:[%s934 + $0x23] sm:$0xff]
        %v1447 = vld [vmem:[%s934 + $0x33] sm:$0xff]
        %v1448 = vld [vmem:[%s934 + $0x3b] sm:$0xff]
        %v1449 = vld [vmem:[%s934 + $0x4b] sm:$0xff]
        %v1450 = vld [vmem:[%s934 + $0x53] sm:$0xff]
        %v1451 = vld [vmem:[%s934 + $0x63] sm:$0xff]
        %v1452 = vld [vmem:[%s934 + $0x6b] sm:$0xff]
        %v1453 = vld [vmem:[%s934 + $0x7b] sm:$0xff]
        %v1454 = vld [vmem:[%s934 + $0x83] sm:$0xff]
        %v1455 = vld [vmem:[%s934 + $0x93] sm:$0xff]
        %v1456 = vld [vmem:[%s934 + $0x9b] sm:$0xff]
        %v1457 = vld [vmem:[%s934 + $0xab] sm:$0xff]
        %v1458 = vld [vmem:[%s934 + $0xb3] sm:$0xff]
        %v1459 = vld [vmem:[%s934 + $0xc3] sm:$0xff]
        %v1460 = vld [vmem:[%s934 + $0xcb] sm:$0xff]
        %v1461 = vld [vmem:[%s934 + $0xdb] sm:$0xff]
        %v1462 = vld [vmem:[%s934 + $0xe3] sm:$0xff]
        %v1463 = vld [vmem:[%s934 + $0xf3] sm:$0xff]
        %v1464 = vld [vmem:[%s934 + $0xfb] sm:$0xff]
        %v1465 = vld [vmem:[%s934 + $0x10b] sm:$0xff]
        %v1466 = vld [vmem:[%s934 + $0x113] sm:$0xff]
        %v1467 = vld [vmem:[%s934 + $0x123] sm:$0xff]
        %v1468 = vld [vmem:[%s934 + $0x12b] sm:$0xff]
        %v1469 = vld [vmem:[%s934 + $0x13b] sm:$0xff]
        %v1470 = vld [vmem:[%s934 + $0x143] sm:$0xff]
        %v1471 = vld [vmem:[%s934 + $0x153] sm:$0xff]
        %v1472 = vld [vmem:[%s934 + $0x15b] sm:$0xff]
        %v1473 = vld [vmem:[%s934 + $0x16b] sm:$0xff]
        %v1474 = vld [vmem:[%s934 + $0x173] sm:$0xff]
        %v1475 = vld [vmem:[%s934 + $0x183] sm:$0xff]
        %v1476 = vld [vmem:[%s934 + $0x18b] sm:$0xff]
        %v1477 = vld [vmem:[%s934 + $0x19b] sm:$0xff]
        %v1478 = vld [vmem:[%s934 + $0x1a3] sm:$0xff]
        %v1479 = vpack.c.bf16 %v1444, %v1443
        %v1480 = vpack.c.bf16 %v1446, %v1445
        %v1481 = vpack.c.bf16 %v1448, %v1447
        %v1482 = vpack.c.bf16 %v1450, %v1449
        %v1483 = vpack.c.bf16 %v1452, %v1451
        %v1484 = vpack.c.bf16 %v1454, %v1453
        %v1485 = vpack.c.bf16 %v1456, %v1455
        %v1486 = vpack.c.bf16 %v1458, %v1457
        %v1487 = vpack.c.bf16 %v1460, %v1459
        %v1488 = vpack.c.bf16 %v1462, %v1461
        %v1489 = vpack.c.bf16 %v1464, %v1463
        %v1490 = vpack.c.bf16 %v1466, %v1465
        %v1491 = vpack.c.bf16 %v1468, %v1467
        %v1492 = vpack.c.bf16 %v1470, %v1469
        %v1493 = vpack.c.bf16 %v1472, %v1471
        %v1494 = vpack.c.bf16 %v1474, %v1473
        %v1495 = vpack.c.bf16 %v1476, %v1475
        %v1496 = vpack.c.bf16 %v1478, %v1477
        %s1497 = scalar_lea.vmem %s1, 320
        %v1498 = vld [vmem:[%s1497] sm:$0xf]
        %v1499 = vld [vmem:[%s1497 + $0x4] sm:$0xf]
        %v1500 = vld [vmem:[%s1497 + $0x8] sm:$0xf]
        %v1501 = vld [vmem:[%s1497 + $0xc] sm:$0xf]
        %v1502 = vld [vmem:[%s1497 + $0x10] sm:$0xf]
        %v1503 = vld [vmem:[%s1497 + $0x14] sm:$0xf]
        %v1504 = vld [vmem:[%s1497 + $0x18] sm:$0xf]
        %v1505 = vld [vmem:[%s1497 + $0x1c] sm:$0xf]
        %v1506 = vld [vmem:[%s1497 + $0x20] sm:$0xf]
        %v1507 = vld [vmem:[%s1497 + $0x24] sm:$0xf]
        %v1508 = vld [vmem:[%s1497 + $0x28] sm:$0xf]
        %v1509 = vld [vmem:[%s1497 + $0x2c] sm:$0xf]
        %v1510 = vld [vmem:[%s1497 + $0x30] sm:$0xf]
        %v1511 = vld [vmem:[%s1497 + $0x34] sm:$0xf]
        %v1512 = vld [vmem:[%s1497 + $0x38] sm:$0xf]
        %v1513 = vld [vmem:[%s1497 + $0x3c] sm:$0xf]
        %v1530 = vunpack.c.l.b16 %v1498
        %v1531 = vunpack.c.l.b16 %v1499
        %v1532 = vunpack.c.l.b16 %v1500
        %v1533 = vunpack.c.l.b16 %v1501
        %v1534 = vunpack.c.l.b16 %v1502
        %v1535 = vunpack.c.l.b16 %v1503
        %v1536 = vunpack.c.l.b16 %v1504
        %v1537 = vunpack.c.l.b16 %v1505
        %v1538 = vunpack.c.l.b16 %v1506
        %v1539 = vunpack.c.l.b16 %v1507
        %v1540 = vunpack.c.l.b16 %v1508
        %v1541 = vunpack.c.l.b16 %v1509
        %v1542 = vunpack.c.l.b16 %v1510
        %v1543 = vunpack.c.l.b16 %v1511
        %v1544 = vunpack.c.l.b16 %v1512
        %v1545 = vunpack.c.l.b16 %v1513
        %v1546 = vpack.c.b16 %v1531, %v1530
        %v1547 = vpack.c.b16 %v1533, %v1532
        %v1548 = vpack.c.b16 %v1535, %v1534
        %v1549 = vpack.c.b16 %v1537, %v1536
        %v1550 = vpack.c.b16 %v1539, %v1538
        %v1551 = vpack.c.b16 %v1541, %v1540
        %v1552 = vpack.c.b16 %v1543, %v1542
        %v1553 = vpack.c.b16 %v1545, %v1544
        %1562 = vmatpush.bf16.msra.mxu0 %v1553
        %1563 = vmatpush.bf16.msra.mxu0 %v1552
        %1564 = vmatpush.bf16.msra.mxu0 %v1551
        %1565 = vmatpush.bf16.msra.mxu0 %v1550
        %1566 = vmatpush.bf16.msra.mxu0 %v1549
        %1567 = vmatpush.bf16.msra.mxu0 %v1548
        %1568 = vmatpush.bf16.msra.mxu0 %v1547
        %1569 = vmatpush.bf16.msra.mxu0 %v1546
        %1570 = vmatmul.bf16.gmra.mxu0 %v1479
        %v1571 = vpop.f32.mrf.mxu0
        %v1572 = vadd.f32 0.0, %v1571
        %v1573 = vpop.f32.mrf.mxu0
        %v1574 = vadd.f32 0.0, %v1573
        %1575 = vmatmul.bf16.gmra.mxu0 %v1480
        %v1576 = vpop.f32.mrf.mxu0
        %v1577 = vadd.f32 0.0, %v1576
        %v1578 = vpop.f32.mrf.mxu0
        %v1579 = vadd.f32 0.0, %v1578
        %1580 = vmatmul.bf16.gmra.mxu0 %v1481
        %v1581 = vpop.f32.mrf.mxu0
        %v1582 = vadd.f32 0.0, %v1581
        %v1583 = vpop.f32.mrf.mxu0
        %v1584 = vadd.f32 0.0, %v1583
        %1585 = vmatmul.bf16.gmra.mxu0 %v1482
        %v1586 = vpop.f32.mrf.mxu0
        %v1587 = vadd.f32 0.0, %v1586
        %v1588 = vpop.f32.mrf.mxu0
        %v1589 = vadd.f32 0.0, %v1588
        %1590 = vmatmul.bf16.gmra.mxu0 %v1483
        %v1591 = vpop.f32.mrf.mxu0
        %v1592 = vadd.f32 0.0, %v1591
        %v1593 = vpop.f32.mrf.mxu0
        %v1594 = vadd.f32 0.0, %v1593
        %1595 = vmatmul.bf16.gmra.mxu0 %v1484
        %v1596 = vpop.f32.mrf.mxu0
        %v1597 = vadd.f32 0.0, %v1596
        %v1598 = vpop.f32.mrf.mxu0
        %v1599 = vadd.f32 0.0, %v1598
        %1600 = vmatmul.bf16.gmra.mxu0 %v1485
        %v1601 = vpop.f32.mrf.mxu0
        %v1602 = vadd.f32 0.0, %v1601
        %v1603 = vpop.f32.mrf.mxu0
        %v1604 = vadd.f32 0.0, %v1603
        %1605 = vmatmul.bf16.gmra.mxu0 %v1486
        %v1606 = vpop.f32.mrf.mxu0
        %v1607 = vadd.f32 0.0, %v1606
        %v1608 = vpop.f32.mrf.mxu0
        %v1609 = vadd.f32 0.0, %v1608
        %1610 = vmatmul.bf16.gmra.mxu0 %v1487
        %v1611 = vpop.f32.mrf.mxu0
        %v1612 = vadd.f32 0.0, %v1611
        %v1613 = vpop.f32.mrf.mxu0
        %v1614 = vadd.f32 0.0, %v1613
        %1615 = vmatmul.bf16.gmra.mxu0 %v1488
        %v1616 = vpop.f32.mrf.mxu0
        %v1617 = vadd.f32 0.0, %v1616
        %v1618 = vpop.f32.mrf.mxu0
        %v1619 = vadd.f32 0.0, %v1618
        %1620 = vmatmul.bf16.gmra.mxu0 %v1489
        %v1621 = vpop.f32.mrf.mxu0
        %v1622 = vadd.f32 0.0, %v1621
        %v1623 = vpop.f32.mrf.mxu0
        %v1624 = vadd.f32 0.0, %v1623
        %1625 = vmatmul.bf16.gmra.mxu0 %v1490
        %v1626 = vpop.f32.mrf.mxu0
        %v1627 = vadd.f32 0.0, %v1626
        %v1628 = vpop.f32.mrf.mxu0
        %v1629 = vadd.f32 0.0, %v1628
        %1630 = vmatmul.bf16.gmra.mxu0 %v1491
        %v1631 = vpop.f32.mrf.mxu0
        %v1632 = vadd.f32 0.0, %v1631
        %v1633 = vpop.f32.mrf.mxu0
        %v1634 = vadd.f32 0.0, %v1633
        %1635 = vmatmul.bf16.gmra.mxu0 %v1492
        %v1636 = vpop.f32.mrf.mxu0
        %v1637 = vadd.f32 0.0, %v1636
        %v1638 = vpop.f32.mrf.mxu0
        %v1639 = vadd.f32 0.0, %v1638
        %1640 = vmatmul.bf16.gmra.mxu0 %v1493
        %v1641 = vpop.f32.mrf.mxu0
        %v1642 = vadd.f32 0.0, %v1641
        %v1643 = vpop.f32.mrf.mxu0
        %v1644 = vadd.f32 0.0, %v1643
        %1645 = vmatmul.bf16.gmra.mxu0 %v1494
        %v1646 = vpop.f32.mrf.mxu0
        %v1647 = vadd.f32 0.0, %v1646
        %v1648 = vpop.f32.mrf.mxu0
        %v1649 = vadd.f32 0.0, %v1648
        %1650 = vmatmul.bf16.gmra.mxu0 %v1495
        %v1651 = vpop.f32.mrf.mxu0
        %v1652 = vadd.f32 0.0, %v1651
        %v1653 = vpop.f32.mrf.mxu0
        %v1654 = vadd.f32 0.0, %v1653
        %1655 = vmatmul.bf16.gmra.mxu0 %v1496
        %v1656 = vpop.f32.mrf.mxu0
        %v1657 = vadd.f32 0.0, %v1656
        %v1658 = vpop.f32.mrf.mxu0
        %v1659 = vadd.f32 0.0, %v1658
        %1660 = vdwg.mxu0
        %v1661 = vadd.f32 %v1407, %v1572
        %v1662 = vadd.f32 %v1408, %v1574
        %v1663 = vadd.f32 %v1409, %v1577
        %v1664 = vadd.f32 %v1410, %v1579
        %v1665 = vadd.f32 %v1411, %v1582
        %v1666 = vadd.f32 %v1412, %v1584
        %v1667 = vadd.f32 %v1413, %v1587
        %v1668 = vadd.f32 %v1414, %v1589
        %v1669 = vadd.f32 %v1415, %v1592
        %v1670 = vadd.f32 %v1416, %v1594
        %v1671 = vadd.f32 %v1417, %v1597
        %v1672 = vadd.f32 %v1418, %v1599
        %v1673 = vadd.f32 %v1419, %v1602
        %v1674 = vadd.f32 %v1420, %v1604
        %v1675 = vadd.f32 %v1421, %v1607
        %v1676 = vadd.f32 %v1422, %v1609
        %v1677 = vadd.f32 %v1423, %v1612
        %v1678 = vadd.f32 %v1424, %v1614
        %v1679 = vadd.f32 %v1425, %v1617
        %v1680 = vadd.f32 %v1426, %v1619
        %v1681 = vadd.f32 %v1427, %v1622
        %v1682 = vadd.f32 %v1428, %v1624
        %v1683 = vadd.f32 %v1429, %v1627
        %v1684 = vadd.f32 %v1430, %v1629
        %v1685 = vadd.f32 %v1431, %v1632
        %v1686 = vadd.f32 %v1432, %v1634
        %v1687 = vadd.f32 %v1433, %v1637
        %v1688 = vadd.f32 %v1434, %v1639
        %v1689 = vadd.f32 %v1435, %v1642
        %v1690 = vadd.f32 %v1436, %v1644
        %v1691 = vadd.f32 %v1437, %v1647
        %v1692 = vadd.f32 %v1438, %v1649
        %v1693 = vadd.f32 %v1439, %v1652
        %v1694 = vadd.f32 %v1440, %v1654
        %v1695 = vadd.f32 %v1441, %v1657
        %v1696 = vadd.f32 %v1442, %v1659
        %s1697 = scalar_lea.vmem %s242, 48
        %v1698 = vld [vmem:[%s1697 + $0x1] sm:$0xff]
        %v1699 = vld [vmem:[%s1697 + $0x9] sm:$0xff]
        %v1700 = vld [vmem:[%s1697 + $0x19] sm:$0xff]
        %v1701 = vld [vmem:[%s1697 + $0x21] sm:$0xff]
        %v1702 = vld [vmem:[%s1697 + $0x31] sm:$0xff]
        %v1703 = vld [vmem:[%s1697 + $0x39] sm:$0xff]
        %v1704 = vld [vmem:[%s1697 + $0x49] sm:$0xff]
        %v1705 = vld [vmem:[%s1697 + $0x51] sm:$0xff]
        %v1706 = vld [vmem:[%s1697 + $0x61] sm:$0xff]
        %v1707 = vld [vmem:[%s1697 + $0x69] sm:$0xff]
        %v1708 = vld [vmem:[%s1697 + $0x79] sm:$0xff]
        %v1709 = vld [vmem:[%s1697 + $0x81] sm:$0xff]
        %v1710 = vld [vmem:[%s1697 + $0x91] sm:$0xff]
        %v1711 = vld [vmem:[%s1697 + $0x99] sm:$0xff]
        %v1712 = vld [vmem:[%s1697 + $0xa9] sm:$0xff]
        %v1713 = vld [vmem:[%s1697 + $0xb1] sm:$0xff]
        %v1714 = vld [vmem:[%s1697 + $0xc1] sm:$0xff]
        %v1715 = vld [vmem:[%s1697 + $0xc9] sm:$0xff]
        %v1716 = vld [vmem:[%s1697 + $0xd9] sm:$0xff]
        %v1717 = vld [vmem:[%s1697 + $0xe1] sm:$0xff]
        %v1718 = vld [vmem:[%s1697 + $0xf1] sm:$0xff]
        %v1719 = vld [vmem:[%s1697 + $0xf9] sm:$0xff]
        %v1720 = vld [vmem:[%s1697 + $0x109] sm:$0xff]
        %v1721 = vld [vmem:[%s1697 + $0x111] sm:$0xff]
        %v1722 = vld [vmem:[%s1697 + $0x121] sm:$0xff]
        %v1723 = vld [vmem:[%s1697 + $0x129] sm:$0xff]
        %v1724 = vld [vmem:[%s1697 + $0x139] sm:$0xff]
        %v1725 = vld [vmem:[%s1697 + $0x141] sm:$0xff]
        %v1726 = vld [vmem:[%s1697 + $0x151] sm:$0xff]
        %v1727 = vld [vmem:[%s1697 + $0x159] sm:$0xff]
        %v1728 = vld [vmem:[%s1697 + $0x169] sm:$0xff]
        %v1729 = vld [vmem:[%s1697 + $0x171] sm:$0xff]
        %v1730 = vld [vmem:[%s1697 + $0x181] sm:$0xff]
        %v1731 = vld [vmem:[%s1697 + $0x189] sm:$0xff]
        %v1732 = vld [vmem:[%s1697 + $0x199] sm:$0xff]
        %v1733 = vld [vmem:[%s1697 + $0x1a1] sm:$0xff]
        %v1734 = vpack.c.bf16 %v1699, %v1698
        %v1735 = vpack.c.bf16 %v1701, %v1700
        %v1736 = vpack.c.bf16 %v1703, %v1702
        %v1737 = vpack.c.bf16 %v1705, %v1704
        %v1738 = vpack.c.bf16 %v1707, %v1706
        %v1739 = vpack.c.bf16 %v1709, %v1708
        %v1740 = vpack.c.bf16 %v1711, %v1710
        %v1741 = vpack.c.bf16 %v1713, %v1712
        %v1742 = vpack.c.bf16 %v1715, %v1714
        %v1743 = vpack.c.bf16 %v1717, %v1716
        %v1744 = vpack.c.bf16 %v1719, %v1718
        %v1745 = vpack.c.bf16 %v1721, %v1720
        %v1746 = vpack.c.bf16 %v1723, %v1722
        %v1747 = vpack.c.bf16 %v1725, %v1724
        %v1748 = vpack.c.bf16 %v1727, %v1726
        %v1749 = vpack.c.bf16 %v1729, %v1728
        %v1750 = vpack.c.bf16 %v1731, %v1730
        %v1751 = vpack.c.bf16 %v1733, %v1732
        %s1752 = scalar_lea.vmem %s1, 384
        %v1753 = vld [vmem:[%s1752] sm:$0xf]
        %v1754 = vld [vmem:[%s1752 + $0x4] sm:$0xf]
        %v1755 = vld [vmem:[%s1752 + $0x8] sm:$0xf]
        %v1756 = vld [vmem:[%s1752 + $0xc] sm:$0xf]
        %v1757 = vld [vmem:[%s1752 + $0x10] sm:$0xf]
        %v1758 = vld [vmem:[%s1752 + $0x14] sm:$0xf]
        %v1759 = vld [vmem:[%s1752 + $0x18] sm:$0xf]
        %v1760 = vld [vmem:[%s1752 + $0x1c] sm:$0xf]
        %v1761 = vld [vmem:[%s1752 + $0x20] sm:$0xf]
        %v1762 = vld [vmem:[%s1752 + $0x24] sm:$0xf]
        %v1763 = vld [vmem:[%s1752 + $0x28] sm:$0xf]
        %v1764 = vld [vmem:[%s1752 + $0x2c] sm:$0xf]
        %v1765 = vld [vmem:[%s1752 + $0x30] sm:$0xf]
        %v1766 = vld [vmem:[%s1752 + $0x34] sm:$0xf]
        %v1767 = vld [vmem:[%s1752 + $0x38] sm:$0xf]
        %v1768 = vld [vmem:[%s1752 + $0x3c] sm:$0xf]
        %v1785 = vunpack.c.l.b16 %v1753
        %v1786 = vunpack.c.l.b16 %v1754
        %v1787 = vunpack.c.l.b16 %v1755
        %v1788 = vunpack.c.l.b16 %v1756
        %v1789 = vunpack.c.l.b16 %v1757
        %v1790 = vunpack.c.l.b16 %v1758
        %v1791 = vunpack.c.l.b16 %v1759
        %v1792 = vunpack.c.l.b16 %v1760
        %v1793 = vunpack.c.l.b16 %v1761
        %v1794 = vunpack.c.l.b16 %v1762
        %v1795 = vunpack.c.l.b16 %v1763
        %v1796 = vunpack.c.l.b16 %v1764
        %v1797 = vunpack.c.l.b16 %v1765
        %v1798 = vunpack.c.l.b16 %v1766
        %v1799 = vunpack.c.l.b16 %v1767
        %v1800 = vunpack.c.l.b16 %v1768
        %v1801 = vpack.c.b16 %v1786, %v1785
        %v1802 = vpack.c.b16 %v1788, %v1787
        %v1803 = vpack.c.b16 %v1790, %v1789
        %v1804 = vpack.c.b16 %v1792, %v1791
        %v1805 = vpack.c.b16 %v1794, %v1793
        %v1806 = vpack.c.b16 %v1796, %v1795
        %v1807 = vpack.c.b16 %v1798, %v1797
        %v1808 = vpack.c.b16 %v1800, %v1799
        %1817 = vmatpush.bf16.msra.mxu0 %v1808
        %1818 = vmatpush.bf16.msra.mxu0 %v1807
        %1819 = vmatpush.bf16.msra.mxu0 %v1806
        %1820 = vmatpush.bf16.msra.mxu0 %v1805
        %1821 = vmatpush.bf16.msra.mxu0 %v1804
        %1822 = vmatpush.bf16.msra.mxu0 %v1803
        %1823 = vmatpush.bf16.msra.mxu0 %v1802
        %1824 = vmatpush.bf16.msra.mxu0 %v1801
        %1825 = vmatmul.bf16.gmra.mxu0 %v1734
        %v1826 = vpop.f32.mrf.mxu0
        %v1827 = vadd.f32 0.0, %v1826
        %v1828 = vpop.f32.mrf.mxu0
        %v1829 = vadd.f32 0.0, %v1828
        %1830 = vmatmul.bf16.gmra.mxu0 %v1735
        %v1831 = vpop.f32.mrf.mxu0
        %v1832 = vadd.f32 0.0, %v1831
        %v1833 = vpop.f32.mrf.mxu0
        %v1834 = vadd.f32 0.0, %v1833
        %1835 = vmatmul.bf16.gmra.mxu0 %v1736
        %v1836 = vpop.f32.mrf.mxu0
        %v1837 = vadd.f32 0.0, %v1836
        %v1838 = vpop.f32.mrf.mxu0
        %v1839 = vadd.f32 0.0, %v1838
        %1840 = vmatmul.bf16.gmra.mxu0 %v1737
        %v1841 = vpop.f32.mrf.mxu0
        %v1842 = vadd.f32 0.0, %v1841
        %v1843 = vpop.f32.mrf.mxu0
        %v1844 = vadd.f32 0.0, %v1843
        %1845 = vmatmul.bf16.gmra.mxu0 %v1738
        %v1846 = vpop.f32.mrf.mxu0
        %v1847 = vadd.f32 0.0, %v1846
        %v1848 = vpop.f32.mrf.mxu0
        %v1849 = vadd.f32 0.0, %v1848
        %1850 = vmatmul.bf16.gmra.mxu0 %v1739
        %v1851 = vpop.f32.mrf.mxu0
        %v1852 = vadd.f32 0.0, %v1851
        %v1853 = vpop.f32.mrf.mxu0
        %v1854 = vadd.f32 0.0, %v1853
        %1855 = vmatmul.bf16.gmra.mxu0 %v1740
        %v1856 = vpop.f32.mrf.mxu0
        %v1857 = vadd.f32 0.0, %v1856
        %v1858 = vpop.f32.mrf.mxu0
        %v1859 = vadd.f32 0.0, %v1858
        %1860 = vmatmul.bf16.gmra.mxu0 %v1741
        %v1861 = vpop.f32.mrf.mxu0
        %v1862 = vadd.f32 0.0, %v1861
        %v1863 = vpop.f32.mrf.mxu0
        %v1864 = vadd.f32 0.0, %v1863
        %1865 = vmatmul.bf16.gmra.mxu0 %v1742
        %v1866 = vpop.f32.mrf.mxu0
        %v1867 = vadd.f32 0.0, %v1866
        %v1868 = vpop.f32.mrf.mxu0
        %v1869 = vadd.f32 0.0, %v1868
        %1870 = vmatmul.bf16.gmra.mxu0 %v1743
        %v1871 = vpop.f32.mrf.mxu0
        %v1872 = vadd.f32 0.0, %v1871
        %v1873 = vpop.f32.mrf.mxu0
        %v1874 = vadd.f32 0.0, %v1873
        %1875 = vmatmul.bf16.gmra.mxu0 %v1744
        %v1876 = vpop.f32.mrf.mxu0
        %v1877 = vadd.f32 0.0, %v1876
        %v1878 = vpop.f32.mrf.mxu0
        %v1879 = vadd.f32 0.0, %v1878
        %1880 = vmatmul.bf16.gmra.mxu0 %v1745
        %v1881 = vpop.f32.mrf.mxu0
        %v1882 = vadd.f32 0.0, %v1881
        %v1883 = vpop.f32.mrf.mxu0
        %v1884 = vadd.f32 0.0, %v1883
        %1885 = vmatmul.bf16.gmra.mxu0 %v1746
        %v1886 = vpop.f32.mrf.mxu0
        %v1887 = vadd.f32 0.0, %v1886
        %v1888 = vpop.f32.mrf.mxu0
        %v1889 = vadd.f32 0.0, %v1888
        %1890 = vmatmul.bf16.gmra.mxu0 %v1747
        %v1891 = vpop.f32.mrf.mxu0
        %v1892 = vadd.f32 0.0, %v1891
        %v1893 = vpop.f32.mrf.mxu0
        %v1894 = vadd.f32 0.0, %v1893
        %1895 = vmatmul.bf16.gmra.mxu0 %v1748
        %v1896 = vpop.f32.mrf.mxu0
        %v1897 = vadd.f32 0.0, %v1896
        %v1898 = vpop.f32.mrf.mxu0
        %v1899 = vadd.f32 0.0, %v1898
        %1900 = vmatmul.bf16.gmra.mxu0 %v1749
        %v1901 = vpop.f32.mrf.mxu0
        %v1902 = vadd.f32 0.0, %v1901
        %v1903 = vpop.f32.mrf.mxu0
        %v1904 = vadd.f32 0.0, %v1903
        %1905 = vmatmul.bf16.gmra.mxu0 %v1750
        %v1906 = vpop.f32.mrf.mxu0
        %v1907 = vadd.f32 0.0, %v1906
        %v1908 = vpop.f32.mrf.mxu0
        %v1909 = vadd.f32 0.0, %v1908
        %1910 = vmatmul.bf16.gmra.mxu0 %v1751
        %v1911 = vpop.f32.mrf.mxu0
        %v1912 = vadd.f32 0.0, %v1911
        %v1913 = vpop.f32.mrf.mxu0
        %v1914 = vadd.f32 0.0, %v1913
        %1915 = vdwg.mxu0
        %v1916 = vadd.f32 %v1661, %v1827
        %v1917 = vadd.f32 %v1662, %v1829
        %v1918 = vadd.f32 %v1663, %v1832
        %v1919 = vadd.f32 %v1664, %v1834
        %v1920 = vadd.f32 %v1665, %v1837
        %v1921 = vadd.f32 %v1666, %v1839
        %v1922 = vadd.f32 %v1667, %v1842
        %v1923 = vadd.f32 %v1668, %v1844
        %v1924 = vadd.f32 %v1669, %v1847
        %v1925 = vadd.f32 %v1670, %v1849
        %v1926 = vadd.f32 %v1671, %v1852
        %v1927 = vadd.f32 %v1672, %v1854
        %v1928 = vadd.f32 %v1673, %v1857
        %v1929 = vadd.f32 %v1674, %v1859
        %v1930 = vadd.f32 %v1675, %v1862
        %v1931 = vadd.f32 %v1676, %v1864
        %v1932 = vadd.f32 %v1677, %v1867
        %v1933 = vadd.f32 %v1678, %v1869
        %v1934 = vadd.f32 %v1679, %v1872
        %v1935 = vadd.f32 %v1680, %v1874
        %v1936 = vadd.f32 %v1681, %v1877
        %v1937 = vadd.f32 %v1682, %v1879
        %v1938 = vadd.f32 %v1683, %v1882
        %v1939 = vadd.f32 %v1684, %v1884
        %v1940 = vadd.f32 %v1685, %v1887
        %v1941 = vadd.f32 %v1686, %v1889
        %v1942 = vadd.f32 %v1687, %v1892
        %v1943 = vadd.f32 %v1688, %v1894
        %v1944 = vadd.f32 %v1689, %v1897
        %v1945 = vadd.f32 %v1690, %v1899
        %v1946 = vadd.f32 %v1691, %v1902
        %v1947 = vadd.f32 %v1692, %v1904
        %v1948 = vadd.f32 %v1693, %v1907
        %v1949 = vadd.f32 %v1694, %v1909
        %v1950 = vadd.f32 %v1695, %v1912
        %v1951 = vadd.f32 %v1696, %v1914
        %v1952 = vld [vmem:[%s1697 + $0x2] sm:$0xff]
        %v1953 = vld [vmem:[%s1697 + $0xa] sm:$0xff]
        %v1954 = vld [vmem:[%s1697 + $0x1a] sm:$0xff]
        %v1955 = vld [vmem:[%s1697 + $0x22] sm:$0xff]
        %v1956 = vld [vmem:[%s1697 + $0x32] sm:$0xff]
        %v1957 = vld [vmem:[%s1697 + $0x3a] sm:$0xff]
        %v1958 = vld [vmem:[%s1697 + $0x4a] sm:$0xff]
        %v1959 = vld [vmem:[%s1697 + $0x52] sm:$0xff]
        %v1960 = vld [vmem:[%s1697 + $0x62] sm:$0xff]
        %v1961 = vld [vmem:[%s1697 + $0x6a] sm:$0xff]
        %v1962 = vld [vmem:[%s1697 + $0x7a] sm:$0xff]
        %v1963 = vld [vmem:[%s1697 + $0x82] sm:$0xff]
        %v1964 = vld [vmem:[%s1697 + $0x92] sm:$0xff]
        %v1965 = vld [vmem:[%s1697 + $0x9a] sm:$0xff]
        %v1966 = vld [vmem:[%s1697 + $0xaa] sm:$0xff]
        %v1967 = vld [vmem:[%s1697 + $0xb2] sm:$0xff]
        %v1968 = vld [vmem:[%s1697 + $0xc2] sm:$0xff]
        %v1969 = vld [vmem:[%s1697 + $0xca] sm:$0xff]
        %v1970 = vld [vmem:[%s1697 + $0xda] sm:$0xff]
        %v1971 = vld [vmem:[%s1697 + $0xe2] sm:$0xff]
        %v1972 = vld [vmem:[%s1697 + $0xf2] sm:$0xff]
        %v1973 = vld [vmem:[%s1697 + $0xfa] sm:$0xff]
        %v1974 = vld [vmem:[%s1697 + $0x10a] sm:$0xff]
        %v1975 = vld [vmem:[%s1697 + $0x112] sm:$0xff]
        %v1976 = vld [vmem:[%s1697 + $0x122] sm:$0xff]
        %v1977 = vld [vmem:[%s1697 + $0x12a] sm:$0xff]
        %v1978 = vld [vmem:[%s1697 + $0x13a] sm:$0xff]
        %v1979 = vld [vmem:[%s1697 + $0x142] sm:$0xff]
        %v1980 = vld [vmem:[%s1697 + $0x152] sm:$0xff]
        %v1981 = vld [vmem:[%s1697 + $0x15a] sm:$0xff]
        %v1982 = vld [vmem:[%s1697 + $0x16a] sm:$0xff]
        %v1983 = vld [vmem:[%s1697 + $0x172] sm:$0xff]
        %v1984 = vld [vmem:[%s1697 + $0x182] sm:$0xff]
        %v1985 = vld [vmem:[%s1697 + $0x18a] sm:$0xff]
        %v1986 = vld [vmem:[%s1697 + $0x19a] sm:$0xff]
        %v1987 = vld [vmem:[%s1697 + $0x1a2] sm:$0xff]
        %v1988 = vpack.c.bf16 %v1953, %v1952
        %v1989 = vpack.c.bf16 %v1955, %v1954
        %v1990 = vpack.c.bf16 %v1957, %v1956
        %v1991 = vpack.c.bf16 %v1959, %v1958
        %v1992 = vpack.c.bf16 %v1961, %v1960
        %v1993 = vpack.c.bf16 %v1963, %v1962
        %v1994 = vpack.c.bf16 %v1965, %v1964
        %v1995 = vpack.c.bf16 %v1967, %v1966
        %v1996 = vpack.c.bf16 %v1969, %v1968
        %v1997 = vpack.c.bf16 %v1971, %v1970
        %v1998 = vpack.c.bf16 %v1973, %v1972
        %v1999 = vpack.c.bf16 %v1975, %v1974
        %v2000 = vpack.c.bf16 %v1977, %v1976
        %v2001 = vpack.c.bf16 %v1979, %v1978
        %v2002 = vpack.c.bf16 %v1981, %v1980
        %v2003 = vpack.c.bf16 %v1983, %v1982
        %v2004 = vpack.c.bf16 %v1985, %v1984
        %v2005 = vpack.c.bf16 %v1987, %v1986
        %s2006 = scalar_lea.vmem %s1, 448
        %v2007 = vld [vmem:[%s2006] sm:$0xf]
        %v2008 = vld [vmem:[%s2006 + $0x4] sm:$0xf]
        %v2009 = vld [vmem:[%s2006 + $0x8] sm:$0xf]
        %v2010 = vld [vmem:[%s2006 + $0xc] sm:$0xf]
        %v2011 = vld [vmem:[%s2006 + $0x10] sm:$0xf]
        %v2012 = vld [vmem:[%s2006 + $0x14] sm:$0xf]
        %v2013 = vld [vmem:[%s2006 + $0x18] sm:$0xf]
        %v2014 = vld [vmem:[%s2006 + $0x1c] sm:$0xf]
        %v2015 = vld [vmem:[%s2006 + $0x20] sm:$0xf]
        %v2016 = vld [vmem:[%s2006 + $0x24] sm:$0xf]
        %v2017 = vld [vmem:[%s2006 + $0x28] sm:$0xf]
        %v2018 = vld [vmem:[%s2006 + $0x2c] sm:$0xf]
        %v2019 = vld [vmem:[%s2006 + $0x30] sm:$0xf]
        %v2020 = vld [vmem:[%s2006 + $0x34] sm:$0xf]
        %v2021 = vld [vmem:[%s2006 + $0x38] sm:$0xf]
        %v2022 = vld [vmem:[%s2006 + $0x3c] sm:$0xf]
        %v2039 = vunpack.c.l.b16 %v2007
        %v2040 = vunpack.c.l.b16 %v2008
        %v2041 = vunpack.c.l.b16 %v2009
        %v2042 = vunpack.c.l.b16 %v2010
        %v2043 = vunpack.c.l.b16 %v2011
        %v2044 = vunpack.c.l.b16 %v2012
        %v2045 = vunpack.c.l.b16 %v2013
        %v2046 = vunpack.c.l.b16 %v2014
        %v2047 = vunpack.c.l.b16 %v2015
        %v2048 = vunpack.c.l.b16 %v2016
        %v2049 = vunpack.c.l.b16 %v2017
        %v2050 = vunpack.c.l.b16 %v2018
        %v2051 = vunpack.c.l.b16 %v2019
        %v2052 = vunpack.c.l.b16 %v2020
        %v2053 = vunpack.c.l.b16 %v2021
        %v2054 = vunpack.c.l.b16 %v2022
        %v2055 = vpack.c.b16 %v2040, %v2039
        %v2056 = vpack.c.b16 %v2042, %v2041
        %v2057 = vpack.c.b16 %v2044, %v2043
        %v2058 = vpack.c.b16 %v2046, %v2045
        %v2059 = vpack.c.b16 %v2048, %v2047
        %v2060 = vpack.c.b16 %v2050, %v2049
        %v2061 = vpack.c.b16 %v2052, %v2051
        %v2062 = vpack.c.b16 %v2054, %v2053
        %2071 = vmatpush.bf16.msra.mxu0 %v2062
        %2072 = vmatpush.bf16.msra.mxu0 %v2061
        %2073 = vmatpush.bf16.msra.mxu0 %v2060
        %2074 = vmatpush.bf16.msra.mxu0 %v2059
        %2075 = vmatpush.bf16.msra.mxu0 %v2058
        %2076 = vmatpush.bf16.msra.mxu0 %v2057
        %2077 = vmatpush.bf16.msra.mxu0 %v2056
        %2078 = vmatpush.bf16.msra.mxu0 %v2055
        %2079 = vmatmul.bf16.gmra.mxu0 %v1988
        %v2080 = vpop.f32.mrf.mxu0
        %v2081 = vadd.f32 0.0, %v2080
        %v2082 = vpop.f32.mrf.mxu0
        %v2083 = vadd.f32 0.0, %v2082
        %2084 = vmatmul.bf16.gmra.mxu0 %v1989
        %v2085 = vpop.f32.mrf.mxu0
        %v2086 = vadd.f32 0.0, %v2085
        %v2087 = vpop.f32.mrf.mxu0
        %v2088 = vadd.f32 0.0, %v2087
        %2089 = vmatmul.bf16.gmra.mxu0 %v1990
        %v2090 = vpop.f32.mrf.mxu0
        %v2091 = vadd.f32 0.0, %v2090
        %v2092 = vpop.f32.mrf.mxu0
        %v2093 = vadd.f32 0.0, %v2092
        %2094 = vmatmul.bf16.gmra.mxu0 %v1991
        %v2095 = vpop.f32.mrf.mxu0
        %v2096 = vadd.f32 0.0, %v2095
        %v2097 = vpop.f32.mrf.mxu0
        %v2098 = vadd.f32 0.0, %v2097
        %2099 = vmatmul.bf16.gmra.mxu0 %v1992
        %v2100 = vpop.f32.mrf.mxu0
        %v2101 = vadd.f32 0.0, %v2100
        %v2102 = vpop.f32.mrf.mxu0
        %v2103 = vadd.f32 0.0, %v2102
        %2104 = vmatmul.bf16.gmra.mxu0 %v1993
        %v2105 = vpop.f32.mrf.mxu0
        %v2106 = vadd.f32 0.0, %v2105
        %v2107 = vpop.f32.mrf.mxu0
        %v2108 = vadd.f32 0.0, %v2107
        %2109 = vmatmul.bf16.gmra.mxu0 %v1994
        %v2110 = vpop.f32.mrf.mxu0
        %v2111 = vadd.f32 0.0, %v2110
        %v2112 = vpop.f32.mrf.mxu0
        %v2113 = vadd.f32 0.0, %v2112
        %2114 = vmatmul.bf16.gmra.mxu0 %v1995
        %v2115 = vpop.f32.mrf.mxu0
        %v2116 = vadd.f32 0.0, %v2115
        %v2117 = vpop.f32.mrf.mxu0
        %v2118 = vadd.f32 0.0, %v2117
        %2119 = vmatmul.bf16.gmra.mxu0 %v1996
        %v2120 = vpop.f32.mrf.mxu0
        %v2121 = vadd.f32 0.0, %v2120
        %v2122 = vpop.f32.mrf.mxu0
        %v2123 = vadd.f32 0.0, %v2122
        %2124 = vmatmul.bf16.gmra.mxu0 %v1997
        %v2125 = vpop.f32.mrf.mxu0
        %v2126 = vadd.f32 0.0, %v2125
        %v2127 = vpop.f32.mrf.mxu0
        %v2128 = vadd.f32 0.0, %v2127
        %2129 = vmatmul.bf16.gmra.mxu0 %v1998
        %v2130 = vpop.f32.mrf.mxu0
        %v2131 = vadd.f32 0.0, %v2130
        %v2132 = vpop.f32.mrf.mxu0
        %v2133 = vadd.f32 0.0, %v2132
        %2134 = vmatmul.bf16.gmra.mxu0 %v1999
        %v2135 = vpop.f32.mrf.mxu0
        %v2136 = vadd.f32 0.0, %v2135
        %v2137 = vpop.f32.mrf.mxu0
        %v2138 = vadd.f32 0.0, %v2137
        %2139 = vmatmul.bf16.gmra.mxu0 %v2000
        %v2140 = vpop.f32.mrf.mxu0
        %v2141 = vadd.f32 0.0, %v2140
        %v2142 = vpop.f32.mrf.mxu0
        %v2143 = vadd.f32 0.0, %v2142
        %2144 = vmatmul.bf16.gmra.mxu0 %v2001
        %v2145 = vpop.f32.mrf.mxu0
        %v2146 = vadd.f32 0.0, %v2145
        %v2147 = vpop.f32.mrf.mxu0
        %v2148 = vadd.f32 0.0, %v2147
        %2149 = vmatmul.bf16.gmra.mxu0 %v2002
        %v2150 = vpop.f32.mrf.mxu0
        %v2151 = vadd.f32 0.0, %v2150
        %v2152 = vpop.f32.mrf.mxu0
        %v2153 = vadd.f32 0.0, %v2152
        %2154 = vmatmul.bf16.gmra.mxu0 %v2003
        %v2155 = vpop.f32.mrf.mxu0
        %v2156 = vadd.f32 0.0, %v2155
        %v2157 = vpop.f32.mrf.mxu0
        %v2158 = vadd.f32 0.0, %v2157
        %2159 = vmatmul.bf16.gmra.mxu0 %v2004
        %v2160 = vpop.f32.mrf.mxu0
        %v2161 = vadd.f32 0.0, %v2160
        %v2162 = vpop.f32.mrf.mxu0
        %v2163 = vadd.f32 0.0, %v2162
        %2164 = vmatmul.bf16.gmra.mxu0 %v2005
        %v2165 = vpop.f32.mrf.mxu0
        %v2166 = vadd.f32 0.0, %v2165
        %v2167 = vpop.f32.mrf.mxu0
        %v2168 = vadd.f32 0.0, %v2167
        %2169 = vdwg.mxu0
        %v2170 = vadd.f32 %v1916, %v2081
        %v2171 = vadd.f32 %v1917, %v2083
        %v2172 = vadd.f32 %v1918, %v2086
        %v2173 = vadd.f32 %v1919, %v2088
        %v2174 = vadd.f32 %v1920, %v2091
        %v2175 = vadd.f32 %v1921, %v2093
        %v2176 = vadd.f32 %v1922, %v2096
        %v2177 = vadd.f32 %v1923, %v2098
        %v2178 = vadd.f32 %v1924, %v2101
        %v2179 = vadd.f32 %v1925, %v2103
        %v2180 = vadd.f32 %v1926, %v2106
        %v2181 = vadd.f32 %v1927, %v2108
        %v2182 = vadd.f32 %v1928, %v2111
        %v2183 = vadd.f32 %v1929, %v2113
        %v2184 = vadd.f32 %v1930, %v2116
        %v2185 = vadd.f32 %v1931, %v2118
        %v2186 = vadd.f32 %v1932, %v2121
        %v2187 = vadd.f32 %v1933, %v2123
        %v2188 = vadd.f32 %v1934, %v2126
        %v2189 = vadd.f32 %v1935, %v2128
        %v2190 = vadd.f32 %v1936, %v2131
        %v2191 = vadd.f32 %v1937, %v2133
        %v2192 = vadd.f32 %v1938, %v2136
        %v2193 = vadd.f32 %v1939, %v2138
        %v2194 = vadd.f32 %v1940, %v2141
        %v2195 = vadd.f32 %v1941, %v2143
        %v2196 = vadd.f32 %v1942, %v2146
        %v2197 = vadd.f32 %v1943, %v2148
        %v2198 = vadd.f32 %v1944, %v2151
        %v2199 = vadd.f32 %v1945, %v2153
        %v2200 = vadd.f32 %v1946, %v2156
        %v2201 = vadd.f32 %v1947, %v2158
        %v2202 = vadd.f32 %v1948, %v2161
        %v2203 = vadd.f32 %v1949, %v2163
        %v2204 = vadd.f32 %v1950, %v2166
        %v2205 = vadd.f32 %v1951, %v2168
        %v2206 = vld [vmem:[%s1697 + $0x3] sm:$0xff]
        %v2207 = vld [vmem:[%s1697 + $0xb] sm:$0xff]
        %v2208 = vld [vmem:[%s1697 + $0x1b] sm:$0xff]
        %v2209 = vld [vmem:[%s1697 + $0x23] sm:$0xff]
        %v2210 = vld [vmem:[%s1697 + $0x33] sm:$0xff]
        %v2211 = vld [vmem:[%s1697 + $0x3b] sm:$0xff]
        %v2212 = vld [vmem:[%s1697 + $0x4b] sm:$0xff]
        %v2213 = vld [vmem:[%s1697 + $0x53] sm:$0xff]
        %v2214 = vld [vmem:[%s1697 + $0x63] sm:$0xff]
        %v2215 = vld [vmem:[%s1697 + $0x6b] sm:$0xff]
        %v2216 = vld [vmem:[%s1697 + $0x7b] sm:$0xff]
        %v2217 = vld [vmem:[%s1697 + $0x83] sm:$0xff]
        %v2218 = vld [vmem:[%s1697 + $0x93] sm:$0xff]
        %v2219 = vld [vmem:[%s1697 + $0x9b] sm:$0xff]
        %v2220 = vld [vmem:[%s1697 + $0xab] sm:$0xff]
        %v2221 = vld [vmem:[%s1697 + $0xb3] sm:$0xff]
        %v2222 = vld [vmem:[%s1697 + $0xc3] sm:$0xff]
        %v2223 = vld [vmem:[%s1697 + $0xcb] sm:$0xff]
        %v2224 = vld [vmem:[%s1697 + $0xdb] sm:$0xff]
        %v2225 = vld [vmem:[%s1697 + $0xe3] sm:$0xff]
        %v2226 = vld [vmem:[%s1697 + $0xf3] sm:$0xff]
        %v2227 = vld [vmem:[%s1697 + $0xfb] sm:$0xff]
        %v2228 = vld [vmem:[%s1697 + $0x10b] sm:$0xff]
        %v2229 = vld [vmem:[%s1697 + $0x113] sm:$0xff]
        %v2230 = vld [vmem:[%s1697 + $0x123] sm:$0xff]
        %v2231 = vld [vmem:[%s1697 + $0x12b] sm:$0xff]
        %v2232 = vld [vmem:[%s1697 + $0x13b] sm:$0xff]
        %v2233 = vld [vmem:[%s1697 + $0x143] sm:$0xff]
        %v2234 = vld [vmem:[%s1697 + $0x153] sm:$0xff]
        %v2235 = vld [vmem:[%s1697 + $0x15b] sm:$0xff]
        %v2236 = vld [vmem:[%s1697 + $0x16b] sm:$0xff]
        %v2237 = vld [vmem:[%s1697 + $0x173] sm:$0xff]
        %v2238 = vld [vmem:[%s1697 + $0x183] sm:$0xff]
        %v2239 = vld [vmem:[%s1697 + $0x18b] sm:$0xff]
        %v2240 = vld [vmem:[%s1697 + $0x19b] sm:$0xff]
        %v2241 = vld [vmem:[%s1697 + $0x1a3] sm:$0xff]
        %v2242 = vpack.c.bf16 %v2207, %v2206
        %v2243 = vpack.c.bf16 %v2209, %v2208
        %v2244 = vpack.c.bf16 %v2211, %v2210
        %v2245 = vpack.c.bf16 %v2213, %v2212
        %v2246 = vpack.c.bf16 %v2215, %v2214
        %v2247 = vpack.c.bf16 %v2217, %v2216
        %v2248 = vpack.c.bf16 %v2219, %v2218
        %v2249 = vpack.c.bf16 %v2221, %v2220
        %v2250 = vpack.c.bf16 %v2223, %v2222
        %v2251 = vpack.c.bf16 %v2225, %v2224
        %v2252 = vpack.c.bf16 %v2227, %v2226
        %v2253 = vpack.c.bf16 %v2229, %v2228
        %v2254 = vpack.c.bf16 %v2231, %v2230
        %v2255 = vpack.c.bf16 %v2233, %v2232
        %v2256 = vpack.c.bf16 %v2235, %v2234
        %v2257 = vpack.c.bf16 %v2237, %v2236
        %v2258 = vpack.c.bf16 %v2239, %v2238
        %v2259 = vpack.c.bf16 %v2241, %v2240
        %s2260 = scalar_lea.vmem %s1, 512
        %v2261 = vld [vmem:[%s2260] sm:$0xf]
        %v2262 = vld [vmem:[%s2260 + $0x4] sm:$0xf]
        %v2263 = vld [vmem:[%s2260 + $0x8] sm:$0xf]
        %v2264 = vld [vmem:[%s2260 + $0xc] sm:$0xf]
        %v2265 = vld [vmem:[%s2260 + $0x10] sm:$0xf]
        %v2266 = vld [vmem:[%s2260 + $0x14] sm:$0xf]
        %v2267 = vld [vmem:[%s2260 + $0x18] sm:$0xf]
        %v2268 = vld [vmem:[%s2260 + $0x1c] sm:$0xf]
        %v2269 = vld [vmem:[%s2260 + $0x20] sm:$0xf]
        %v2270 = vld [vmem:[%s2260 + $0x24] sm:$0xf]
        %v2271 = vld [vmem:[%s2260 + $0x28] sm:$0xf]
        %v2272 = vld [vmem:[%s2260 + $0x2c] sm:$0xf]
        %v2273 = vld [vmem:[%s2260 + $0x30] sm:$0xf]
        %v2274 = vld [vmem:[%s2260 + $0x34] sm:$0xf]
        %v2275 = vld [vmem:[%s2260 + $0x38] sm:$0xf]
        %v2276 = vld [vmem:[%s2260 + $0x3c] sm:$0xf]
        %v2293 = vunpack.c.l.b16 %v2261
        %v2294 = vunpack.c.l.b16 %v2262
        %v2295 = vunpack.c.l.b16 %v2263
        %v2296 = vunpack.c.l.b16 %v2264
        %v2297 = vunpack.c.l.b16 %v2265
        %v2298 = vunpack.c.l.b16 %v2266
        %v2299 = vunpack.c.l.b16 %v2267
        %v2300 = vunpack.c.l.b16 %v2268
        %v2301 = vunpack.c.l.b16 %v2269
        %v2302 = vunpack.c.l.b16 %v2270
        %v2303 = vunpack.c.l.b16 %v2271
        %v2304 = vunpack.c.l.b16 %v2272
        %v2305 = vunpack.c.l.b16 %v2273
        %v2306 = vunpack.c.l.b16 %v2274
        %v2307 = vunpack.c.l.b16 %v2275
        %v2308 = vunpack.c.l.b16 %v2276
        %v2309 = vpack.c.b16 %v2294, %v2293
        %v2310 = vpack.c.b16 %v2296, %v2295
        %v2311 = vpack.c.b16 %v2298, %v2297
        %v2312 = vpack.c.b16 %v2300, %v2299
        %v2313 = vpack.c.b16 %v2302, %v2301
        %v2314 = vpack.c.b16 %v2304, %v2303
        %v2315 = vpack.c.b16 %v2306, %v2305
        %v2316 = vpack.c.b16 %v2308, %v2307
        %2325 = vmatpush.bf16.msra.mxu0 %v2316
        %2326 = vmatpush.bf16.msra.mxu0 %v2315
        %2327 = vmatpush.bf16.msra.mxu0 %v2314
        %2328 = vmatpush.bf16.msra.mxu0 %v2313
        %2329 = vmatpush.bf16.msra.mxu0 %v2312
        %2330 = vmatpush.bf16.msra.mxu0 %v2311
        %2331 = vmatpush.bf16.msra.mxu0 %v2310
        %2332 = vmatpush.bf16.msra.mxu0 %v2309
        %2333 = vmatmul.bf16.gmra.mxu0 %v2242
        %v2334 = vpop.f32.mrf.mxu0
        %v2335 = vadd.f32 0.0, %v2334
        %v2336 = vpop.f32.mrf.mxu0
        %v2337 = vadd.f32 0.0, %v2336
        %2338 = vmatmul.bf16.gmra.mxu0 %v2243
        %v2339 = vpop.f32.mrf.mxu0
        %v2340 = vadd.f32 0.0, %v2339
        %v2341 = vpop.f32.mrf.mxu0
        %v2342 = vadd.f32 0.0, %v2341
        %2343 = vmatmul.bf16.gmra.mxu0 %v2244
        %v2344 = vpop.f32.mrf.mxu0
        %v2345 = vadd.f32 0.0, %v2344
        %v2346 = vpop.f32.mrf.mxu0
        %v2347 = vadd.f32 0.0, %v2346
        %2348 = vmatmul.bf16.gmra.mxu0 %v2245
        %v2349 = vpop.f32.mrf.mxu0
        %v2350 = vadd.f32 0.0, %v2349
        %v2351 = vpop.f32.mrf.mxu0
        %v2352 = vadd.f32 0.0, %v2351
        %2353 = vmatmul.bf16.gmra.mxu0 %v2246
        %v2354 = vpop.f32.mrf.mxu0
        %v2355 = vadd.f32 0.0, %v2354
        %v2356 = vpop.f32.mrf.mxu0
        %v2357 = vadd.f32 0.0, %v2356
        %2358 = vmatmul.bf16.gmra.mxu0 %v2247
        %v2359 = vpop.f32.mrf.mxu0
        %v2360 = vadd.f32 0.0, %v2359
        %v2361 = vpop.f32.mrf.mxu0
        %v2362 = vadd.f32 0.0, %v2361
        %2363 = vmatmul.bf16.gmra.mxu0 %v2248
        %v2364 = vpop.f32.mrf.mxu0
        %v2365 = vadd.f32 0.0, %v2364
        %v2366 = vpop.f32.mrf.mxu0
        %v2367 = vadd.f32 0.0, %v2366
        %2368 = vmatmul.bf16.gmra.mxu0 %v2249
        %v2369 = vpop.f32.mrf.mxu0
        %v2370 = vadd.f32 0.0, %v2369
        %v2371 = vpop.f32.mrf.mxu0
        %v2372 = vadd.f32 0.0, %v2371
        %2373 = vmatmul.bf16.gmra.mxu0 %v2250
        %v2374 = vpop.f32.mrf.mxu0
        %v2375 = vadd.f32 0.0, %v2374
        %v2376 = vpop.f32.mrf.mxu0
        %v2377 = vadd.f32 0.0, %v2376
        %2378 = vmatmul.bf16.gmra.mxu0 %v2251
        %v2379 = vpop.f32.mrf.mxu0
        %v2380 = vadd.f32 0.0, %v2379
        %v2381 = vpop.f32.mrf.mxu0
        %v2382 = vadd.f32 0.0, %v2381
        %2383 = vmatmul.bf16.gmra.mxu0 %v2252
        %v2384 = vpop.f32.mrf.mxu0
        %v2385 = vadd.f32 0.0, %v2384
        %v2386 = vpop.f32.mrf.mxu0
        %v2387 = vadd.f32 0.0, %v2386
        %2388 = vmatmul.bf16.gmra.mxu0 %v2253
        %v2389 = vpop.f32.mrf.mxu0
        %v2390 = vadd.f32 0.0, %v2389
        %v2391 = vpop.f32.mrf.mxu0
        %v2392 = vadd.f32 0.0, %v2391
        %2393 = vmatmul.bf16.gmra.mxu0 %v2254
        %v2394 = vpop.f32.mrf.mxu0
        %v2395 = vadd.f32 0.0, %v2394
        %v2396 = vpop.f32.mrf.mxu0
        %v2397 = vadd.f32 0.0, %v2396
        %2398 = vmatmul.bf16.gmra.mxu0 %v2255
        %v2399 = vpop.f32.mrf.mxu0
        %v2400 = vadd.f32 0.0, %v2399
        %v2401 = vpop.f32.mrf.mxu0
        %v2402 = vadd.f32 0.0, %v2401
        %2403 = vmatmul.bf16.gmra.mxu0 %v2256
        %v2404 = vpop.f32.mrf.mxu0
        %v2405 = vadd.f32 0.0, %v2404
        %v2406 = vpop.f32.mrf.mxu0
        %v2407 = vadd.f32 0.0, %v2406
        %2408 = vmatmul.bf16.gmra.mxu0 %v2257
        %v2409 = vpop.f32.mrf.mxu0
        %v2410 = vadd.f32 0.0, %v2409
        %v2411 = vpop.f32.mrf.mxu0
        %v2412 = vadd.f32 0.0, %v2411
        %2413 = vmatmul.bf16.gmra.mxu0 %v2258
        %v2414 = vpop.f32.mrf.mxu0
        %v2415 = vadd.f32 0.0, %v2414
        %v2416 = vpop.f32.mrf.mxu0
        %v2417 = vadd.f32 0.0, %v2416
        %2418 = vmatmul.bf16.gmra.mxu0 %v2259
        %v2419 = vpop.f32.mrf.mxu0
        %v2420 = vadd.f32 0.0, %v2419
        %v2421 = vpop.f32.mrf.mxu0
        %v2422 = vadd.f32 0.0, %v2421
        %2423 = vdwg.mxu0
        %v2424 = vadd.f32 %v2170, %v2335
        %v2425 = vadd.f32 %v2171, %v2337
        %v2426 = vadd.f32 %v2172, %v2340
        %v2427 = vadd.f32 %v2173, %v2342
        %v2428 = vadd.f32 %v2174, %v2345
        %v2429 = vadd.f32 %v2175, %v2347
        %v2430 = vadd.f32 %v2176, %v2350
        %v2431 = vadd.f32 %v2177, %v2352
        %v2432 = vadd.f32 %v2178, %v2355
        %v2433 = vadd.f32 %v2179, %v2357
        %v2434 = vadd.f32 %v2180, %v2360
        %v2435 = vadd.f32 %v2181, %v2362
        %v2436 = vadd.f32 %v2182, %v2365
        %v2437 = vadd.f32 %v2183, %v2367
        %v2438 = vadd.f32 %v2184, %v2370
        %v2439 = vadd.f32 %v2185, %v2372
        %v2440 = vadd.f32 %v2186, %v2375
        %v2441 = vadd.f32 %v2187, %v2377
        %v2442 = vadd.f32 %v2188, %v2380
        %v2443 = vadd.f32 %v2189, %v2382
        %v2444 = vadd.f32 %v2190, %v2385
        %v2445 = vadd.f32 %v2191, %v2387
        %v2446 = vadd.f32 %v2192, %v2390
        %v2447 = vadd.f32 %v2193, %v2392
        %v2448 = vadd.f32 %v2194, %v2395
        %v2449 = vadd.f32 %v2195, %v2397
        %v2450 = vadd.f32 %v2196, %v2400
        %v2451 = vadd.f32 %v2197, %v2402
        %v2452 = vadd.f32 %v2198, %v2405
        %v2453 = vadd.f32 %v2199, %v2407
        %v2454 = vadd.f32 %v2200, %v2410
        %v2455 = vadd.f32 %v2201, %v2412
        %v2456 = vadd.f32 %v2202, %v2415
        %v2457 = vadd.f32 %v2203, %v2417
        %v2458 = vadd.f32 %v2204, %v2420
        %v2459 = vadd.f32 %v2205, %v2422
        %v2460 = vld [vmem:[%s2] sm:$0x1]
        %v2462 = vperm.slane %v2460, 0
        %v2464 = vadd.f32 %v2424, %v2462
        %v2465 = vadd.f32 %v2425, %v2462
        %v2466 = vadd.f32 %v2426, %v2462
        %v2467 = vadd.f32 %v2427, %v2462
        %v2468 = vadd.f32 %v2428, %v2462
        %v2469 = vadd.f32 %v2429, %v2462
        %v2470 = vadd.f32 %v2430, %v2462
        %v2471 = vadd.f32 %v2431, %v2462
        %v2472 = vadd.f32 %v2432, %v2462
        %v2473 = vadd.f32 %v2433, %v2462
        %v2474 = vadd.f32 %v2434, %v2462
        %v2475 = vadd.f32 %v2435, %v2462
        %v2476 = vadd.f32 %v2436, %v2462
        %v2477 = vadd.f32 %v2437, %v2462
        %v2478 = vadd.f32 %v2438, %v2462
        %v2479 = vadd.f32 %v2439, %v2462
        %v2480 = vadd.f32 %v2440, %v2462
        %v2481 = vadd.f32 %v2441, %v2462
        %v2482 = vadd.f32 %v2442, %v2462
        %v2483 = vadd.f32 %v2443, %v2462
        %v2484 = vadd.f32 %v2444, %v2462
        %v2485 = vadd.f32 %v2445, %v2462
        %v2486 = vadd.f32 %v2446, %v2462
        %v2487 = vadd.f32 %v2447, %v2462
        %v2488 = vadd.f32 %v2448, %v2462
        %v2489 = vadd.f32 %v2449, %v2462
        %v2490 = vadd.f32 %v2450, %v2462
        %v2491 = vadd.f32 %v2451, %v2462
        %v2492 = vadd.f32 %v2452, %v2462
        %v2493 = vadd.f32 %v2453, %v2462
        %v2494 = vadd.f32 %v2454, %v2462
        %v2495 = vadd.f32 %v2455, %v2462
        %v2496 = vadd.f32 %v2456, %v2462
        %v2497 = vadd.f32 %v2457, %v2462
        %v2498 = vadd.f32 %v2458, %v2462
        %v2499 = vadd.f32 %v2459, %v2462
        %vm2500 = vcmp.ge.f32.partialorder %v2464, 0.0
        %vm2501 = vcmp.ge.f32.partialorder %v2465, 0.0
        %vm2502 = vcmp.ge.f32.partialorder %v2466, 0.0
        %vm2503 = vcmp.ge.f32.partialorder %v2467, 0.0
        %vm2504 = vcmp.ge.f32.partialorder %v2468, 0.0
        %vm2505 = vcmp.ge.f32.partialorder %v2469, 0.0
        %vm2506 = vcmp.ge.f32.partialorder %v2470, 0.0
        %vm2507 = vcmp.ge.f32.partialorder %v2471, 0.0
        %vm2508 = vcmp.ge.f32.partialorder %v2472, 0.0
        %vm2509 = vcmp.ge.f32.partialorder %v2473, 0.0
        %vm2510 = vcmp.ge.f32.partialorder %v2474, 0.0
        %vm2511 = vcmp.ge.f32.partialorder %v2475, 0.0
        %vm2512 = vcmp.ge.f32.partialorder %v2476, 0.0
        %vm2513 = vcmp.ge.f32.partialorder %v2477, 0.0
        %vm2514 = vcmp.ge.f32.partialorder %v2478, 0.0
        %vm2515 = vcmp.ge.f32.partialorder %v2479, 0.0
        %vm2516 = vcmp.ge.f32.partialorder %v2480, 0.0
        %vm2517 = vcmp.ge.f32.partialorder %v2481, 0.0
        %vm2518 = vcmp.ge.f32.partialorder %v2482, 0.0
        %vm2519 = vcmp.ge.f32.partialorder %v2483, 0.0
        %vm2520 = vcmp.ge.f32.partialorder %v2484, 0.0
        %vm2521 = vcmp.ge.f32.partialorder %v2485, 0.0
        %vm2522 = vcmp.ge.f32.partialorder %v2486, 0.0
        %vm2523 = vcmp.ge.f32.partialorder %v2487, 0.0
        %vm2524 = vcmp.ge.f32.partialorder %v2488, 0.0
        %vm2525 = vcmp.ge.f32.partialorder %v2489, 0.0
        %vm2526 = vcmp.ge.f32.partialorder %v2490, 0.0
        %vm2527 = vcmp.ge.f32.partialorder %v2491, 0.0
        %vm2528 = vcmp.ge.f32.partialorder %v2492, 0.0
        %vm2529 = vcmp.ge.f32.partialorder %v2493, 0.0
        %vm2530 = vcmp.ge.f32.partialorder %v2494, 0.0
        %vm2531 = vcmp.ge.f32.partialorder %v2495, 0.0
        %vm2532 = vcmp.ge.f32.partialorder %v2496, 0.0
        %vm2533 = vcmp.ge.f32.partialorder %v2497, 0.0
        %vm2534 = vcmp.ge.f32.partialorder %v2498, 0.0
        %vm2535 = vcmp.ge.f32.partialorder %v2499, 0.0
        %v2536 = vmul.f32 %v2464, 0.01
        %v2537 = vmul.f32 %v2465, 0.01
        %v2538 = vmul.f32 %v2466, 0.01
        %v2539 = vmul.f32 %v2467, 0.01
        %v2540 = vmul.f32 %v2468, 0.01
        %v2541 = vmul.f32 %v2469, 0.01
        %v2542 = vmul.f32 %v2470, 0.01
        %v2543 = vmul.f32 %v2471, 0.01
        %v2544 = vmul.f32 %v2472, 0.01
        %v2545 = vmul.f32 %v2473, 0.01
        %v2546 = vmul.f32 %v2474, 0.01
        %v2547 = vmul.f32 %v2475, 0.01
        %v2548 = vmul.f32 %v2476, 0.01
        %v2549 = vmul.f32 %v2477, 0.01
        %v2550 = vmul.f32 %v2478, 0.01
        %v2551 = vmul.f32 %v2479, 0.01
        %v2552 = vmul.f32 %v2480, 0.01
        %v2553 = vmul.f32 %v2481, 0.01
        %v2554 = vmul.f32 %v2482, 0.01
        %v2555 = vmul.f32 %v2483, 0.01
        %v2556 = vmul.f32 %v2484, 0.01
        %v2557 = vmul.f32 %v2485, 0.01
        %v2558 = vmul.f32 %v2486, 0.01
        %v2559 = vmul.f32 %v2487, 0.01
        %v2560 = vmul.f32 %v2488, 0.01
        %v2561 = vmul.f32 %v2489, 0.01
        %v2562 = vmul.f32 %v2490, 0.01
        %v2563 = vmul.f32 %v2491, 0.01
        %v2564 = vmul.f32 %v2492, 0.01
        %v2565 = vmul.f32 %v2493, 0.01
        %v2566 = vmul.f32 %v2494, 0.01
        %v2567 = vmul.f32 %v2495, 0.01
        %v2568 = vmul.f32 %v2496, 0.01
        %v2569 = vmul.f32 %v2497, 0.01
        %v2570 = vmul.f32 %v2498, 0.01
        %v2571 = vmul.f32 %v2499, 0.01
        %v2572 = vsel %vm2500, %v2464, %v2536
        %v2573 = vsel %vm2501, %v2465, %v2537
        %v2574 = vsel %vm2502, %v2466, %v2538
        %v2575 = vsel %vm2503, %v2467, %v2539
        %v2576 = vsel %vm2504, %v2468, %v2540
        %v2577 = vsel %vm2505, %v2469, %v2541
        %v2578 = vsel %vm2506, %v2470, %v2542
        %v2579 = vsel %vm2507, %v2471, %v2543
        %v2580 = vsel %vm2508, %v2472, %v2544
        %v2581 = vsel %vm2509, %v2473, %v2545
        %v2582 = vsel %vm2510, %v2474, %v2546
        %v2583 = vsel %vm2511, %v2475, %v2547
        %v2584 = vsel %vm2512, %v2476, %v2548
        %v2585 = vsel %vm2513, %v2477, %v2549
        %v2586 = vsel %vm2514, %v2478, %v2550
        %v2587 = vsel %vm2515, %v2479, %v2551
        %v2588 = vsel %vm2516, %v2480, %v2552
        %v2589 = vsel %vm2517, %v2481, %v2553
        %v2590 = vsel %vm2518, %v2482, %v2554
        %v2591 = vsel %vm2519, %v2483, %v2555
        %v2592 = vsel %vm2520, %v2484, %v2556
        %v2593 = vsel %vm2521, %v2485, %v2557
        %v2594 = vsel %vm2522, %v2486, %v2558
        %v2595 = vsel %vm2523, %v2487, %v2559
        %v2596 = vsel %vm2524, %v2488, %v2560
        %v2597 = vsel %vm2525, %v2489, %v2561
        %v2598 = vsel %vm2526, %v2490, %v2562
        %v2599 = vsel %vm2527, %v2491, %v2563
        %v2600 = vsel %vm2528, %v2492, %v2564
        %v2601 = vsel %vm2529, %v2493, %v2565
        %v2602 = vsel %vm2530, %v2494, %v2566
        %v2603 = vsel %vm2531, %v2495, %v2567
        %v2604 = vsel %vm2532, %v2496, %v2568
        %v2605 = vsel %vm2533, %v2497, %v2569
        %v2606 = vsel %vm2534, %v2498, %v2570
        %v2607 = vsel %vm2535, %v2499, %v2571
        %2608 = vst [vmem:[#allocation2 + $0x1] sm:$0xff] %v2572
        %2609 = vst [vmem:[#allocation2 + $0x9] sm:$0xff] %v2573
        %2610 = vst [vmem:[#allocation2 + $0x19] sm:$0xff] %v2574
        %2611 = vst [vmem:[#allocation2 + $0x21] sm:$0xff] %v2575
        %2612 = vst [vmem:[#allocation2 + $0x31] sm:$0xff] %v2576
        %2613 = vst [vmem:[#allocation2 + $0x39] sm:$0xff] %v2577
        %2614 = vst [vmem:[#allocation2 + $0x49] sm:$0xff] %v2578
        %2615 = vst [vmem:[#allocation2 + $0x51] sm:$0xff] %v2579
        %2616 = vst [vmem:[#allocation2 + $0x61] sm:$0xff] %v2580
        %2617 = vst [vmem:[#allocation2 + $0x69] sm:$0xff] %v2581
        %2618 = vst [vmem:[#allocation2 + $0x79] sm:$0xff] %v2582
        %2619 = vst [vmem:[#allocation2 + $0x81] sm:$0xff] %v2583
        %2620 = vst [vmem:[#allocation2 + $0x91] sm:$0xff] %v2584
        %2621 = vst [vmem:[#allocation2 + $0x99] sm:$0xff] %v2585
        %2622 = vst [vmem:[#allocation2 + $0xa9] sm:$0xff] %v2586
        %2623 = vst [vmem:[#allocation2 + $0xb1] sm:$0xff] %v2587
        %2624 = vst [vmem:[#allocation2 + $0xc1] sm:$0xff] %v2588
        %2625 = vst [vmem:[#allocation2 + $0xc9] sm:$0xff] %v2589
        %2626 = vst [vmem:[#allocation2 + $0xd9] sm:$0xff] %v2590
        %2627 = vst [vmem:[#allocation2 + $0xe1] sm:$0xff] %v2591
        %2628 = vst [vmem:[#allocation2 + $0xf1] sm:$0xff] %v2592
        %2629 = vst [vmem:[#allocation2 + $0xf9] sm:$0xff] %v2593
        %2630 = vst [vmem:[#allocation2 + $0x109] sm:$0xff] %v2594
        %2631 = vst [vmem:[#allocation2 + $0x111] sm:$0xff] %v2595
        %2632 = vst [vmem:[#allocation2 + $0x121] sm:$0xff] %v2596
        %2633 = vst [vmem:[#allocation2 + $0x129] sm:$0xff] %v2597
        %2634 = vst [vmem:[#allocation2 + $0x139] sm:$0xff] %v2598
        %2635 = vst [vmem:[#allocation2 + $0x141] sm:$0xff] %v2599
        %2636 = vst [vmem:[#allocation2 + $0x151] sm:$0xff] %v2600
        %2637 = vst [vmem:[#allocation2 + $0x159] sm:$0xff] %v2601
        %2638 = vst [vmem:[#allocation2 + $0x169] sm:$0xff] %v2602
        %2639 = vst [vmem:[#allocation2 + $0x171] sm:$0xff] %v2603
        %2640 = vst [vmem:[#allocation2 + $0x181] sm:$0xff] %v2604
        %2641 = vst [vmem:[#allocation2 + $0x189] sm:$0xff] %v2605
        %2642 = vst [vmem:[#allocation2 + $0x199] sm:$0xff] %v2606
        %2643 = vst [vmem:[#allocation2 + $0x1a1] sm:$0xff] %v2607
        %2644 = vst [vmem:[#allocation2] sm:$0x1] 0.0
        %2645 = vst [vmem:[#allocation2 + $0x18] sm:$0x1] 0.0
        %2646 = vst [vmem:[#allocation2 + $0x30] sm:$0x1] 0.0
        %2647 = vst [vmem:[#allocation2 + $0x48] sm:$0x1] 0.0
        %2648 = vst [vmem:[#allocation2 + $0x60] sm:$0x1] 0.0
        %2649 = vst [vmem:[#allocation2 + $0x78] sm:$0x1] 0.0
        %2650 = vst [vmem:[#allocation2 + $0x90] sm:$0x1] 0.0
        %2651 = vst [vmem:[#allocation2 + $0xa8] sm:$0x1] 0.0
        %2652 = vst [vmem:[#allocation2 + $0xc0] sm:$0x1] 0.0
        %2653 = vst [vmem:[#allocation2 + $0xd8] sm:$0x1] 0.0
        %2654 = vst [vmem:[#allocation2 + $0xf0] sm:$0x1] 0.0
        %2655 = vst [vmem:[#allocation2 + $0x108] sm:$0x1] 0.0
        %2656 = vst [vmem:[#allocation2 + $0x120] sm:$0x1] 0.0
        %2657 = vst [vmem:[#allocation2 + $0x138] sm:$0x1] 0.0
        %2658 = vst [vmem:[#allocation2 + $0x150] sm:$0x1] 0.0
        %2659 = vst [vmem:[#allocation2 + $0x168] sm:$0x1] 0.0
        %2660 = vst [vmem:[#allocation2 + $0x180] sm:$0x1] 0.0
        %2661 = vst [vmem:[#allocation2 + $0x198] sm:$0x1] 0.0
        %2662 = vst [vmem:[#allocation2 + $0x11] sm:$0x1] 0.0
        %2663 = vst [vmem:[#allocation2 + $0x29] sm:$0x1] 0.0
        %2664 = vst [vmem:[#allocation2 + $0x41] sm:$0x1] 0.0
        %2665 = vst [vmem:[#allocation2 + $0x59] sm:$0x1] 0.0
        %2666 = vst [vmem:[#allocation2 + $0x71] sm:$0x1] 0.0
        %2667 = vst [vmem:[#allocation2 + $0x89] sm:$0x1] 0.0
        %2668 = vst [vmem:[#allocation2 + $0xa1] sm:$0x1] 0.0
        %2669 = vst [vmem:[#allocation2 + $0xb9] sm:$0x1] 0.0
        %2670 = vst [vmem:[#allocation2 + $0xd1] sm:$0x1] 0.0
        %2671 = vst [vmem:[#allocation2 + $0xe9] sm:$0x1] 0.0
        %2672 = vst [vmem:[#allocation2 + $0x101] sm:$0x1] 0.0
        %2673 = vst [vmem:[#allocation2 + $0x119] sm:$0x1] 0.0
        %2674 = vst [vmem:[#allocation2 + $0x131] sm:$0x1] 0.0
        %2675 = vst [vmem:[#allocation2 + $0x149] sm:$0x1] 0.0
        %2676 = vst [vmem:[#allocation2 + $0x161] sm:$0x1] 0.0
        %2677 = vst [vmem:[#allocation2 + $0x179] sm:$0x1] 0.0
        %2678 = vst [vmem:[#allocation2 + $0x191] sm:$0x1] 0.0
        %2679 = vst [vmem:[#allocation2 + $0x1a9] sm:$0x1] 0.0
        %p2680 = scmp.eq.s32.totalorder %s24, 0
        // Predicated region
        $region41: #{tpu_custom_call.1} parent=39 // pred_check
          %p2681 = pneg %p2680
        $region42: #{tpu_custom_call.1} parent=39 // pred_check_branch
          %2683 = sbr.rel (%p2681) target = $region44
        $region43: #{tpu_custom_call.1} parent=39 // pred_region
          %2684 = vst [vmem:[#allocation2] sm:$0xff] 0.0
          %2685 = vst [vmem:[#allocation2 + $0x8] sm:$0xff] 0.0
          %2686 = vst [vmem:[#allocation2 + $0x10] sm:$0x3] 0.0
          %s2687 = scalar_lea.vmem [#allocation2], 408
          %2688 = vst [vmem:[%s2687] sm:$0xff] 0.0
          %2689 = vst [vmem:[%s2687 + $0x8] sm:$0xff] 0.0
          %2690 = vst [vmem:[%s2687 + $0x10] sm:$0x3] 0.0
        $region44: #{tpu_custom_call.1} parent=39 // pred_fallthru
          _
        %v2691 = vld [vmem:[#allocation2] sm:$0xff]
        %v2692 = vld [vmem:[#allocation2 + $0x8] sm:$0xff]
        %v2693 = vld [vmem:[#allocation2 + $0x18] sm:$0xff]
        %v2694 = vld [vmem:[#allocation2 + $0x20] sm:$0xff]
        %v2695 = vld [vmem:[#allocation2 + $0x30] sm:$0xff]
        %v2696 = vld [vmem:[#allocation2 + $0x38] sm:$0xff]
        %v2697 = vld [vmem:[#allocation2 + $0x48] sm:$0xff]
        %v2698 = vld [vmem:[#allocation2 + $0x50] sm:$0xff]
        %v2699 = vld [vmem:[#allocation2 + $0x60] sm:$0xff]
        %v2700 = vld [vmem:[#allocation2 + $0x68] sm:$0xff]
        %v2701 = vld [vmem:[#allocation2 + $0x78] sm:$0xff]
        %v2702 = vld [vmem:[#allocation2 + $0x80] sm:$0xff]
        %v2703 = vld [vmem:[#allocation2 + $0x90] sm:$0xff]
        %v2704 = vld [vmem:[#allocation2 + $0x98] sm:$0xff]
        %v2705 = vld [vmem:[#allocation2 + $0xa8] sm:$0xff]
        %v2706 = vld [vmem:[#allocation2 + $0xb0] sm:$0xff]
        %v2707 = vld [vmem:[#allocation2 + $0xc0] sm:$0xff]
        %v2708 = vld [vmem:[#allocation2 + $0xc8] sm:$0xff]
        %v2709 = vld [vmem:[#allocation2 + $0xd8] sm:$0xff]
        %v2710 = vld [vmem:[#allocation2 + $0xe0] sm:$0xff]
        %v2711 = vld [vmem:[#allocation2 + $0xf0] sm:$0xff]
        %v2712 = vld [vmem:[#allocation2 + $0xf8] sm:$0xff]
        %v2713 = vld [vmem:[#allocation2 + $0x108] sm:$0xff]
        %v2714 = vld [vmem:[#allocation2 + $0x110] sm:$0xff]
        %v2715 = vld [vmem:[#allocation2 + $0x120] sm:$0xff]
        %v2716 = vld [vmem:[#allocation2 + $0x128] sm:$0xff]
        %v2717 = vld [vmem:[#allocation2 + $0x138] sm:$0xff]
        %v2718 = vld [vmem:[#allocation2 + $0x140] sm:$0xff]
        %v2719 = vld [vmem:[#allocation2 + $0x150] sm:$0xff]
        %v2720 = vld [vmem:[#allocation2 + $0x158] sm:$0xff]
        %v2721 = vld [vmem:[#allocation2 + $0x168] sm:$0xff]
        %v2722 = vld [vmem:[#allocation2 + $0x170] sm:$0xff]
        %v2723 = vpack.c.bf16 %v2692, %v2691
        %v2724 = vpack.c.bf16 %v2694, %v2693
        %v2725 = vpack.c.bf16 %v2696, %v2695
        %v2726 = vpack.c.bf16 %v2698, %v2697
        %v2727 = vpack.c.bf16 %v2700, %v2699
        %v2728 = vpack.c.bf16 %v2702, %v2701
        %v2729 = vpack.c.bf16 %v2704, %v2703
        %v2730 = vpack.c.bf16 %v2706, %v2705
        %v2731 = vpack.c.bf16 %v2708, %v2707
        %v2732 = vpack.c.bf16 %v2710, %v2709
        %v2733 = vpack.c.bf16 %v2712, %v2711
        %v2734 = vpack.c.bf16 %v2714, %v2713
        %v2735 = vpack.c.bf16 %v2716, %v2715
        %v2736 = vpack.c.bf16 %v2718, %v2717
        %v2737 = vpack.c.bf16 %v2720, %v2719
        %v2738 = vpack.c.bf16 %v2722, %v2721
        %v2739 = vld [vmem:[%s3] sm:$0xf]
        %v2740 = vld [vmem:[%s3 + $0x4] sm:$0xf]
        %v2741 = vld [vmem:[%s3 + $0x8] sm:$0xf]
        %v2742 = vld [vmem:[%s3 + $0xc] sm:$0xf]
        %v2743 = vld [vmem:[%s3 + $0x10] sm:$0xf]
        %v2744 = vld [vmem:[%s3 + $0x14] sm:$0xf]
        %v2745 = vld [vmem:[%s3 + $0x18] sm:$0xf]
        %v2746 = vld [vmem:[%s3 + $0x1c] sm:$0xf]
        %v2747 = vld [vmem:[%s3 + $0x20] sm:$0xf]
        %v2748 = vld [vmem:[%s3 + $0x24] sm:$0xf]
        %v2749 = vld [vmem:[%s3 + $0x28] sm:$0xf]
        %v2750 = vld [vmem:[%s3 + $0x2c] sm:$0xf]
        %v2751 = vld [vmem:[%s3 + $0x30] sm:$0xf]
        %v2752 = vld [vmem:[%s3 + $0x34] sm:$0xf]
        %v2753 = vld [vmem:[%s3 + $0x38] sm:$0xf]
        %v2754 = vld [vmem:[%s3 + $0x3c] sm:$0xf]
        %v2755 = vld [vmem:[#allocation2 + $0x1] sm:$0xff]
        %v2756 = vld [vmem:[#allocation2 + $0x9] sm:$0xff]
        %v2757 = vld [vmem:[#allocation2 + $0x19] sm:$0xff]
        %v2758 = vld [vmem:[#allocation2 + $0x21] sm:$0xff]
        %v2759 = vld [vmem:[#allocation2 + $0x31] sm:$0xff]
        %v2760 = vld [vmem:[#allocation2 + $0x39] sm:$0xff]
        %v2761 = vld [vmem:[#allocation2 + $0x49] sm:$0xff]
        %v2762 = vld [vmem:[#allocation2 + $0x51] sm:$0xff]
        %v2763 = vld [vmem:[#allocation2 + $0x61] sm:$0xff]
        %v2764 = vld [vmem:[#allocation2 + $0x69] sm:$0xff]
        %v2765 = vld [vmem:[#allocation2 + $0x79] sm:$0xff]
        %v2766 = vld [vmem:[#allocation2 + $0x81] sm:$0xff]
        %v2767 = vld [vmem:[#allocation2 + $0x91] sm:$0xff]
        %v2768 = vld [vmem:[#allocation2 + $0x99] sm:$0xff]
        %v2769 = vld [vmem:[#allocation2 + $0xa9] sm:$0xff]
        %v2770 = vld [vmem:[#allocation2 + $0xb1] sm:$0xff]
        %v2771 = vld [vmem:[#allocation2 + $0xc1] sm:$0xff]
        %v2772 = vld [vmem:[#allocation2 + $0xc9] sm:$0xff]
        %v2773 = vld [vmem:[#allocation2 + $0xd9] sm:$0xff]
        %v2774 = vld [vmem:[#allocation2 + $0xe1] sm:$0xff]
        %v2775 = vld [vmem:[#allocation2 + $0xf1] sm:$0xff]
        %v2776 = vld [vmem:[#allocation2 + $0xf9] sm:$0xff]
        %v2777 = vld [vmem:[#allocation2 + $0x109] sm:$0xff]
        %v2778 = vld [vmem:[#allocation2 + $0x111] sm:$0xff]
        %v2779 = vld [vmem:[#allocation2 + $0x121] sm:$0xff]
        %v2780 = vld [vmem:[#allocation2 + $0x129] sm:$0xff]
        %v2781 = vld [vmem:[#allocation2 + $0x139] sm:$0xff]
        %v2782 = vld [vmem:[#allocation2 + $0x141] sm:$0xff]
        %v2783 = vld [vmem:[#allocation2 + $0x151] sm:$0xff]
        %v2784 = vld [vmem:[#allocation2 + $0x159] sm:$0xff]
        %v2785 = vld [vmem:[#allocation2 + $0x169] sm:$0xff]
        %v2786 = vld [vmem:[#allocation2 + $0x171] sm:$0xff]
        %v2787 = vpack.c.bf16 %v2756, %v2755
        %v2788 = vpack.c.bf16 %v2758, %v2757
        %v2789 = vpack.c.bf16 %v2760, %v2759
        %v2790 = vpack.c.bf16 %v2762, %v2761
        %v2791 = vpack.c.bf16 %v2764, %v2763
        %v2792 = vpack.c.bf16 %v2766, %v2765
        %v2793 = vpack.c.bf16 %v2768, %v2767
        %v2794 = vpack.c.bf16 %v2770, %v2769
        %v2795 = vpack.c.bf16 %v2772, %v2771
        %v2796 = vpack.c.bf16 %v2774, %v2773
        %v2797 = vpack.c.bf16 %v2776, %v2775
        %v2798 = vpack.c.bf16 %v2778, %v2777
        %v2799 = vpack.c.bf16 %v2780, %v2779
        %v2800 = vpack.c.bf16 %v2782, %v2781
        %v2801 = vpack.c.bf16 %v2784, %v2783
        %v2802 = vpack.c.bf16 %v2786, %v2785
        %s2803 = scalar_lea.vmem %s3, 64
        %v2804 = vld [vmem:[%s2803] sm:$0xf]
        %v2805 = vld [vmem:[%s2803 + $0x4] sm:$0xf]
        %v2806 = vld [vmem:[%s2803 + $0x8] sm:$0xf]
        %v2807 = vld [vmem:[%s2803 + $0xc] sm:$0xf]
        %v2808 = vld [vmem:[%s2803 + $0x10] sm:$0xf]
        %v2809 = vld [vmem:[%s2803 + $0x14] sm:$0xf]
        %v2810 = vld [vmem:[%s2803 + $0x18] sm:$0xf]
        %v2811 = vld [vmem:[%s2803 + $0x1c] sm:$0xf]
        %v2812 = vld [vmem:[%s2803 + $0x20] sm:$0xf]
        %v2813 = vld [vmem:[%s2803 + $0x24] sm:$0xf]
        %v2814 = vld [vmem:[%s2803 + $0x28] sm:$0xf]
        %v2815 = vld [vmem:[%s2803 + $0x2c] sm:$0xf]
        %v2816 = vld [vmem:[%s2803 + $0x30] sm:$0xf]
        %v2817 = vld [vmem:[%s2803 + $0x34] sm:$0xf]
        %v2818 = vld [vmem:[%s2803 + $0x38] sm:$0xf]
        %v2819 = vld [vmem:[%s2803 + $0x3c] sm:$0xf]
        %v2836 = vunpack.c.l.b16 %v2804
        %v2837 = vunpack.c.l.b16 %v2805
        %v2838 = vunpack.c.l.b16 %v2806
        %v2839 = vunpack.c.l.b16 %v2807
        %v2840 = vunpack.c.l.b16 %v2808
        %v2841 = vunpack.c.l.b16 %v2809
        %v2842 = vunpack.c.l.b16 %v2810
        %v2843 = vunpack.c.l.b16 %v2811
        %v2844 = vunpack.c.l.b16 %v2812
        %v2845 = vunpack.c.l.b16 %v2813
        %v2846 = vunpack.c.l.b16 %v2814
        %v2847 = vunpack.c.l.b16 %v2815
        %v2848 = vunpack.c.l.b16 %v2816
        %v2849 = vunpack.c.l.b16 %v2817
        %v2850 = vunpack.c.l.b16 %v2818
        %v2851 = vunpack.c.l.b16 %v2819
        %v2852 = vpack.c.b16 %v2837, %v2836
        %v2853 = vpack.c.b16 %v2839, %v2838
        %v2854 = vpack.c.b16 %v2841, %v2840
        %v2855 = vpack.c.b16 %v2843, %v2842
        %v2856 = vpack.c.b16 %v2845, %v2844
        %v2857 = vpack.c.b16 %v2847, %v2846
        %v2858 = vpack.c.b16 %v2849, %v2848
        %v2859 = vpack.c.b16 %v2851, %v2850
        %2868 = vmatpush.bf16.msra.mxu0 %v2859
        %2869 = vmatpush.bf16.msra.mxu0 %v2858
        %2870 = vmatpush.bf16.msra.mxu0 %v2857
        %2871 = vmatpush.bf16.msra.mxu0 %v2856
        %2872 = vmatpush.bf16.msra.mxu0 %v2855
        %2873 = vmatpush.bf16.msra.mxu0 %v2854
        %2874 = vmatpush.bf16.msra.mxu0 %v2853
        %2875 = vmatpush.bf16.msra.mxu0 %v2852
        %2876 = vmatmul.bf16.gmra.mxu0 %v2787
        %v2877 = vpop.f32.mrf.mxu0
        %v2878 = vadd.f32 0.0, %v2877
        %v2879 = vpop.f32.mrf.mxu0
        %v2880 = vadd.f32 0.0, %v2879
        %2881 = vmatmul.bf16.gmra.mxu0 %v2788
        %v2882 = vpop.f32.mrf.mxu0
        %v2883 = vadd.f32 0.0, %v2882
        %v2884 = vpop.f32.mrf.mxu0
        %v2885 = vadd.f32 0.0, %v2884
        %2886 = vmatmul.bf16.gmra.mxu0 %v2789
        %v2887 = vpop.f32.mrf.mxu0
        %v2888 = vadd.f32 0.0, %v2887
        %v2889 = vpop.f32.mrf.mxu0
        %v2890 = vadd.f32 0.0, %v2889
        %2891 = vmatmul.bf16.gmra.mxu0 %v2790
        %v2892 = vpop.f32.mrf.mxu0
        %v2893 = vadd.f32 0.0, %v2892
        %v2894 = vpop.f32.mrf.mxu0
        %v2895 = vadd.f32 0.0, %v2894
        %2896 = vmatmul.bf16.gmra.mxu0 %v2791
        %v2897 = vpop.f32.mrf.mxu0
        %v2898 = vadd.f32 0.0, %v2897
        %v2899 = vpop.f32.mrf.mxu0
        %v2900 = vadd.f32 0.0, %v2899
        %2901 = vmatmul.bf16.gmra.mxu0 %v2792
        %v2902 = vpop.f32.mrf.mxu0
        %v2903 = vadd.f32 0.0, %v2902
        %v2904 = vpop.f32.mrf.mxu0
        %v2905 = vadd.f32 0.0, %v2904
        %2906 = vmatmul.bf16.gmra.mxu0 %v2793
        %v2907 = vpop.f32.mrf.mxu0
        %v2908 = vadd.f32 0.0, %v2907
        %v2909 = vpop.f32.mrf.mxu0
        %v2910 = vadd.f32 0.0, %v2909
        %2911 = vmatmul.bf16.gmra.mxu0 %v2794
        %v2912 = vpop.f32.mrf.mxu0
        %v2913 = vadd.f32 0.0, %v2912
        %v2914 = vpop.f32.mrf.mxu0
        %v2915 = vadd.f32 0.0, %v2914
        %2916 = vmatmul.bf16.gmra.mxu0 %v2795
        %v2917 = vpop.f32.mrf.mxu0
        %v2918 = vadd.f32 0.0, %v2917
        %v2919 = vpop.f32.mrf.mxu0
        %v2920 = vadd.f32 0.0, %v2919
        %2921 = vmatmul.bf16.gmra.mxu0 %v2796
        %v2922 = vpop.f32.mrf.mxu0
        %v2923 = vadd.f32 0.0, %v2922
        %v2924 = vpop.f32.mrf.mxu0
        %v2925 = vadd.f32 0.0, %v2924
        %2926 = vmatmul.bf16.gmra.mxu0 %v2797
        %v2927 = vpop.f32.mrf.mxu0
        %v2928 = vadd.f32 0.0, %v2927
        %v2929 = vpop.f32.mrf.mxu0
        %v2930 = vadd.f32 0.0, %v2929
        %2931 = vmatmul.bf16.gmra.mxu0 %v2798
        %v2932 = vpop.f32.mrf.mxu0
        %v2933 = vadd.f32 0.0, %v2932
        %v2934 = vpop.f32.mrf.mxu0
        %v2935 = vadd.f32 0.0, %v2934
        %2936 = vmatmul.bf16.gmra.mxu0 %v2799
        %v2937 = vpop.f32.mrf.mxu0
        %v2938 = vadd.f32 0.0, %v2937
        %v2939 = vpop.f32.mrf.mxu0
        %v2940 = vadd.f32 0.0, %v2939
        %2941 = vmatmul.bf16.gmra.mxu0 %v2800
        %v2942 = vpop.f32.mrf.mxu0
        %v2943 = vadd.f32 0.0, %v2942
        %v2944 = vpop.f32.mrf.mxu0
        %v2945 = vadd.f32 0.0, %v2944
        %2946 = vmatmul.bf16.gmra.mxu0 %v2801
        %v2947 = vpop.f32.mrf.mxu0
        %v2948 = vadd.f32 0.0, %v2947
        %v2949 = vpop.f32.mrf.mxu0
        %v2950 = vadd.f32 0.0, %v2949
        %2951 = vmatmul.bf16.gmra.mxu0 %v2802
        %v2952 = vpop.f32.mrf.mxu0
        %v2953 = vadd.f32 0.0, %v2952
        %v2954 = vpop.f32.mrf.mxu0
        %v2955 = vadd.f32 0.0, %v2954
        %2956 = vdwg.mxu0
        %v2973 = vunpack.c.l.b16 %v2739
        %v2974 = vunpack.c.l.b16 %v2740
        %v2975 = vunpack.c.l.b16 %v2741
        %v2976 = vunpack.c.l.b16 %v2742
        %v2977 = vunpack.c.l.b16 %v2743
        %v2978 = vunpack.c.l.b16 %v2744
        %v2979 = vunpack.c.l.b16 %v2745
        %v2980 = vunpack.c.l.b16 %v2746
        %v2981 = vunpack.c.l.b16 %v2747
        %v2982 = vunpack.c.l.b16 %v2748
        %v2983 = vunpack.c.l.b16 %v2749
        %v2984 = vunpack.c.l.b16 %v2750
        %v2985 = vunpack.c.l.b16 %v2751
        %v2986 = vunpack.c.l.b16 %v2752
        %v2987 = vunpack.c.l.b16 %v2753
        %v2988 = vunpack.c.l.b16 %v2754
        %v2989 = vpack.c.b16 %v2974, %v2973
        %v2990 = vpack.c.b16 %v2976, %v2975
        %v2991 = vpack.c.b16 %v2978, %v2977
        %v2992 = vpack.c.b16 %v2980, %v2979
        %v2993 = vpack.c.b16 %v2982, %v2981
        %v2994 = vpack.c.b16 %v2984, %v2983
        %v2995 = vpack.c.b16 %v2986, %v2985
        %v2996 = vpack.c.b16 %v2988, %v2987
        %3005 = vmatpush.bf16.msra.mxu0 %v2996
        %3006 = vmatpush.bf16.msra.mxu0 %v2995
        %3007 = vmatpush.bf16.msra.mxu0 %v2994
        %3008 = vmatpush.bf16.msra.mxu0 %v2993
        %3009 = vmatpush.bf16.msra.mxu0 %v2992
        %3010 = vmatpush.bf16.msra.mxu0 %v2991
        %3011 = vmatpush.bf16.msra.mxu0 %v2990
        %3012 = vmatpush.bf16.msra.mxu0 %v2989
        %3013 = vmatmul.bf16.gmra.mxu0 %v2723
        %v3014 = vpop.f32.mrf.mxu0
        %v3015 = vadd.f32 %v2878, %v3014
        %v3016 = vpop.f32.mrf.mxu0
        %v3017 = vadd.f32 %v2880, %v3016
        %3018 = vmatmul.bf16.gmra.mxu0 %v2724
        %v3019 = vpop.f32.mrf.mxu0
        %v3020 = vadd.f32 %v2883, %v3019
        %v3021 = vpop.f32.mrf.mxu0
        %v3022 = vadd.f32 %v2885, %v3021
        %3023 = vmatmul.bf16.gmra.mxu0 %v2725
        %v3024 = vpop.f32.mrf.mxu0
        %v3025 = vadd.f32 %v2888, %v3024
        %v3026 = vpop.f32.mrf.mxu0
        %v3027 = vadd.f32 %v2890, %v3026
        %3028 = vmatmul.bf16.gmra.mxu0 %v2726
        %v3029 = vpop.f32.mrf.mxu0
        %v3030 = vadd.f32 %v2893, %v3029
        %v3031 = vpop.f32.mrf.mxu0
        %v3032 = vadd.f32 %v2895, %v3031
        %3033 = vmatmul.bf16.gmra.mxu0 %v2727
        %v3034 = vpop.f32.mrf.mxu0
        %v3035 = vadd.f32 %v2898, %v3034
        %v3036 = vpop.f32.mrf.mxu0
        %v3037 = vadd.f32 %v2900, %v3036
        %3038 = vmatmul.bf16.gmra.mxu0 %v2728
        %v3039 = vpop.f32.mrf.mxu0
        %v3040 = vadd.f32 %v2903, %v3039
        %v3041 = vpop.f32.mrf.mxu0
        %v3042 = vadd.f32 %v2905, %v3041
        %3043 = vmatmul.bf16.gmra.mxu0 %v2729
        %v3044 = vpop.f32.mrf.mxu0
        %v3045 = vadd.f32 %v2908, %v3044
        %v3046 = vpop.f32.mrf.mxu0
        %v3047 = vadd.f32 %v2910, %v3046
        %3048 = vmatmul.bf16.gmra.mxu0 %v2730
        %v3049 = vpop.f32.mrf.mxu0
        %v3050 = vadd.f32 %v2913, %v3049
        %v3051 = vpop.f32.mrf.mxu0
        %v3052 = vadd.f32 %v2915, %v3051
        %3053 = vmatmul.bf16.gmra.mxu0 %v2731
        %v3054 = vpop.f32.mrf.mxu0
        %v3055 = vadd.f32 %v2918, %v3054
        %v3056 = vpop.f32.mrf.mxu0
        %v3057 = vadd.f32 %v2920, %v3056
        %3058 = vmatmul.bf16.gmra.mxu0 %v2732
        %v3059 = vpop.f32.mrf.mxu0
        %v3060 = vadd.f32 %v2923, %v3059
        %v3061 = vpop.f32.mrf.mxu0
        %v3062 = vadd.f32 %v2925, %v3061
        %3063 = vmatmul.bf16.gmra.mxu0 %v2733
        %v3064 = vpop.f32.mrf.mxu0
        %v3065 = vadd.f32 %v2928, %v3064
        %v3066 = vpop.f32.mrf.mxu0
        %v3067 = vadd.f32 %v2930, %v3066
        %3068 = vmatmul.bf16.gmra.mxu0 %v2734
        %v3069 = vpop.f32.mrf.mxu0
        %v3070 = vadd.f32 %v2933, %v3069
        %v3071 = vpop.f32.mrf.mxu0
        %v3072 = vadd.f32 %v2935, %v3071
        %3073 = vmatmul.bf16.gmra.mxu0 %v2735
        %v3074 = vpop.f32.mrf.mxu0
        %v3075 = vadd.f32 %v2938, %v3074
        %v3076 = vpop.f32.mrf.mxu0
        %v3077 = vadd.f32 %v2940, %v3076
        %3078 = vmatmul.bf16.gmra.mxu0 %v2736
        %v3079 = vpop.f32.mrf.mxu0
        %v3080 = vadd.f32 %v2943, %v3079
        %v3081 = vpop.f32.mrf.mxu0
        %v3082 = vadd.f32 %v2945, %v3081
        %3083 = vmatmul.bf16.gmra.mxu0 %v2737
        %v3084 = vpop.f32.mrf.mxu0
        %v3085 = vadd.f32 %v2948, %v3084
        %v3086 = vpop.f32.mrf.mxu0
        %v3087 = vadd.f32 %v2950, %v3086
        %3088 = vmatmul.bf16.gmra.mxu0 %v2738
        %v3089 = vpop.f32.mrf.mxu0
        %v3090 = vadd.f32 %v2953, %v3089
        %v3091 = vpop.f32.mrf.mxu0
        %v3092 = vadd.f32 %v2955, %v3091
        %3093 = vdwg.mxu0
        %v3094 = vld [vmem:[#allocation2 + $0x2] sm:$0xff]
        %v3095 = vld [vmem:[#allocation2 + $0xa] sm:$0xff]
        %v3096 = vld [vmem:[#allocation2 + $0x1a] sm:$0xff]
        %v3097 = vld [vmem:[#allocation2 + $0x22] sm:$0xff]
        %v3098 = vld [vmem:[#allocation2 + $0x32] sm:$0xff]
        %v3099 = vld [vmem:[#allocation2 + $0x3a] sm:$0xff]
        %v3100 = vld [vmem:[#allocation2 + $0x4a] sm:$0xff]
        %v3101 = vld [vmem:[#allocation2 + $0x52] sm:$0xff]
        %v3102 = vld [vmem:[#allocation2 + $0x62] sm:$0xff]
        %v3103 = vld [vmem:[#allocation2 + $0x6a] sm:$0xff]
        %v3104 = vld [vmem:[#allocation2 + $0x7a] sm:$0xff]
        %v3105 = vld [vmem:[#allocation2 + $0x82] sm:$0xff]
        %v3106 = vld [vmem:[#allocation2 + $0x92] sm:$0xff]
        %v3107 = vld [vmem:[#allocation2 + $0x9a] sm:$0xff]
        %v3108 = vld [vmem:[#allocation2 + $0xaa] sm:$0xff]
        %v3109 = vld [vmem:[#allocation2 + $0xb2] sm:$0xff]
        %v3110 = vld [vmem:[#allocation2 + $0xc2] sm:$0xff]
        %v3111 = vld [vmem:[#allocation2 + $0xca] sm:$0xff]
        %v3112 = vld [vmem:[#allocation2 + $0xda] sm:$0xff]
        %v3113 = vld [vmem:[#allocation2 + $0xe2] sm:$0xff]
        %v3114 = vld [vmem:[#allocation2 + $0xf2] sm:$0xff]
        %v3115 = vld [vmem:[#allocation2 + $0xfa] sm:$0xff]
        %v3116 = vld [vmem:[#allocation2 + $0x10a] sm:$0xff]
        %v3117 = vld [vmem:[#allocation2 + $0x112] sm:$0xff]
        %v3118 = vld [vmem:[#allocation2 + $0x122] sm:$0xff]
        %v3119 = vld [vmem:[#allocation2 + $0x12a] sm:$0xff]
        %v3120 = vld [vmem:[#allocation2 + $0x13a] sm:$0xff]
        %v3121 = vld [vmem:[#allocation2 + $0x142] sm:$0xff]
        %v3122 = vld [vmem:[#allocation2 + $0x152] sm:$0xff]
        %v3123 = vld [vmem:[#allocation2 + $0x15a] sm:$0xff]
        %v3124 = vld [vmem:[#allocation2 + $0x16a] sm:$0xff]
        %v3125 = vld [vmem:[#allocation2 + $0x172] sm:$0xff]
        %v3126 = vpack.c.bf16 %v3095, %v3094
        %v3127 = vpack.c.bf16 %v3097, %v3096
        %v3128 = vpack.c.bf16 %v3099, %v3098
        %v3129 = vpack.c.bf16 %v3101, %v3100
        %v3130 = vpack.c.bf16 %v3103, %v3102
        %v3131 = vpack.c.bf16 %v3105, %v3104
        %v3132 = vpack.c.bf16 %v3107, %v3106
        %v3133 = vpack.c.bf16 %v3109, %v3108
        %v3134 = vpack.c.bf16 %v3111, %v3110
        %v3135 = vpack.c.bf16 %v3113, %v3112
        %v3136 = vpack.c.bf16 %v3115, %v3114
        %v3137 = vpack.c.bf16 %v3117, %v3116
        %v3138 = vpack.c.bf16 %v3119, %v3118
        %v3139 = vpack.c.bf16 %v3121, %v3120
        %v3140 = vpack.c.bf16 %v3123, %v3122
        %v3141 = vpack.c.bf16 %v3125, %v3124
        %s3142 = scalar_lea.vmem %s3, 128
        %v3143 = vld [vmem:[%s3142] sm:$0xf]
        %v3144 = vld [vmem:[%s3142 + $0x4] sm:$0xf]
        %v3145 = vld [vmem:[%s3142 + $0x8] sm:$0xf]
        %v3146 = vld [vmem:[%s3142 + $0xc] sm:$0xf]
        %v3147 = vld [vmem:[%s3142 + $0x10] sm:$0xf]
        %v3148 = vld [vmem:[%s3142 + $0x14] sm:$0xf]
        %v3149 = vld [vmem:[%s3142 + $0x18] sm:$0xf]
        %v3150 = vld [vmem:[%s3142 + $0x1c] sm:$0xf]
        %v3151 = vld [vmem:[%s3142 + $0x20] sm:$0xf]
        %v3152 = vld [vmem:[%s3142 + $0x24] sm:$0xf]
        %v3153 = vld [vmem:[%s3142 + $0x28] sm:$0xf]
        %v3154 = vld [vmem:[%s3142 + $0x2c] sm:$0xf]
        %v3155 = vld [vmem:[%s3142 + $0x30] sm:$0xf]
        %v3156 = vld [vmem:[%s3142 + $0x34] sm:$0xf]
        %v3157 = vld [vmem:[%s3142 + $0x38] sm:$0xf]
        %v3158 = vld [vmem:[%s3142 + $0x3c] sm:$0xf]
        %v3175 = vunpack.c.l.b16 %v3143
        %v3176 = vunpack.c.l.b16 %v3144
        %v3177 = vunpack.c.l.b16 %v3145
        %v3178 = vunpack.c.l.b16 %v3146
        %v3179 = vunpack.c.l.b16 %v3147
        %v3180 = vunpack.c.l.b16 %v3148
        %v3181 = vunpack.c.l.b16 %v3149
        %v3182 = vunpack.c.l.b16 %v3150
        %v3183 = vunpack.c.l.b16 %v3151
        %v3184 = vunpack.c.l.b16 %v3152
        %v3185 = vunpack.c.l.b16 %v3153
        %v3186 = vunpack.c.l.b16 %v3154
        %v3187 = vunpack.c.l.b16 %v3155
        %v3188 = vunpack.c.l.b16 %v3156
        %v3189 = vunpack.c.l.b16 %v3157
        %v3190 = vunpack.c.l.b16 %v3158
        %v3191 = vpack.c.b16 %v3176, %v3175
        %v3192 = vpack.c.b16 %v3178, %v3177
        %v3193 = vpack.c.b16 %v3180, %v3179
        %v3194 = vpack.c.b16 %v3182, %v3181
        %v3195 = vpack.c.b16 %v3184, %v3183
        %v3196 = vpack.c.b16 %v3186, %v3185
        %v3197 = vpack.c.b16 %v3188, %v3187
        %v3198 = vpack.c.b16 %v3190, %v3189
        %3207 = vmatpush.bf16.msra.mxu0 %v3198
        %3208 = vmatpush.bf16.msra.mxu0 %v3197
        %3209 = vmatpush.bf16.msra.mxu0 %v3196
        %3210 = vmatpush.bf16.msra.mxu0 %v3195
        %3211 = vmatpush.bf16.msra.mxu0 %v3194
        %3212 = vmatpush.bf16.msra.mxu0 %v3193
        %3213 = vmatpush.bf16.msra.mxu0 %v3192
        %3214 = vmatpush.bf16.msra.mxu0 %v3191
        %3215 = vmatmul.bf16.gmra.mxu0 %v3126
        %v3216 = vpop.f32.mrf.mxu0
        %v3217 = vadd.f32 0.0, %v3216
        %v3218 = vpop.f32.mrf.mxu0
        %v3219 = vadd.f32 0.0, %v3218
        %3220 = vmatmul.bf16.gmra.mxu0 %v3127
        %v3221 = vpop.f32.mrf.mxu0
        %v3222 = vadd.f32 0.0, %v3221
        %v3223 = vpop.f32.mrf.mxu0
        %v3224 = vadd.f32 0.0, %v3223
        %3225 = vmatmul.bf16.gmra.mxu0 %v3128
        %v3226 = vpop.f32.mrf.mxu0
        %v3227 = vadd.f32 0.0, %v3226
        %v3228 = vpop.f32.mrf.mxu0
        %v3229 = vadd.f32 0.0, %v3228
        %3230 = vmatmul.bf16.gmra.mxu0 %v3129
        %v3231 = vpop.f32.mrf.mxu0
        %v3232 = vadd.f32 0.0, %v3231
        %v3233 = vpop.f32.mrf.mxu0
        %v3234 = vadd.f32 0.0, %v3233
        %3235 = vmatmul.bf16.gmra.mxu0 %v3130
        %v3236 = vpop.f32.mrf.mxu0
        %v3237 = vadd.f32 0.0, %v3236
        %v3238 = vpop.f32.mrf.mxu0
        %v3239 = vadd.f32 0.0, %v3238
        %3240 = vmatmul.bf16.gmra.mxu0 %v3131
        %v3241 = vpop.f32.mrf.mxu0
        %v3242 = vadd.f32 0.0, %v3241
        %v3243 = vpop.f32.mrf.mxu0
        %v3244 = vadd.f32 0.0, %v3243
        %3245 = vmatmul.bf16.gmra.mxu0 %v3132
        %v3246 = vpop.f32.mrf.mxu0
        %v3247 = vadd.f32 0.0, %v3246
        %v3248 = vpop.f32.mrf.mxu0
        %v3249 = vadd.f32 0.0, %v3248
        %3250 = vmatmul.bf16.gmra.mxu0 %v3133
        %v3251 = vpop.f32.mrf.mxu0
        %v3252 = vadd.f32 0.0, %v3251
        %v3253 = vpop.f32.mrf.mxu0
        %v3254 = vadd.f32 0.0, %v3253
        %3255 = vmatmul.bf16.gmra.mxu0 %v3134
        %v3256 = vpop.f32.mrf.mxu0
        %v3257 = vadd.f32 0.0, %v3256
        %v3258 = vpop.f32.mrf.mxu0
        %v3259 = vadd.f32 0.0, %v3258
        %3260 = vmatmul.bf16.gmra.mxu0 %v3135
        %v3261 = vpop.f32.mrf.mxu0
        %v3262 = vadd.f32 0.0, %v3261
        %v3263 = vpop.f32.mrf.mxu0
        %v3264 = vadd.f32 0.0, %v3263
        %3265 = vmatmul.bf16.gmra.mxu0 %v3136
        %v3266 = vpop.f32.mrf.mxu0
        %v3267 = vadd.f32 0.0, %v3266
        %v3268 = vpop.f32.mrf.mxu0
        %v3269 = vadd.f32 0.0, %v3268
        %3270 = vmatmul.bf16.gmra.mxu0 %v3137
        %v3271 = vpop.f32.mrf.mxu0
        %v3272 = vadd.f32 0.0, %v3271
        %v3273 = vpop.f32.mrf.mxu0
        %v3274 = vadd.f32 0.0, %v3273
        %3275 = vmatmul.bf16.gmra.mxu0 %v3138
        %v3276 = vpop.f32.mrf.mxu0
        %v3277 = vadd.f32 0.0, %v3276
        %v3278 = vpop.f32.mrf.mxu0
        %v3279 = vadd.f32 0.0, %v3278
        %3280 = vmatmul.bf16.gmra.mxu0 %v3139
        %v3281 = vpop.f32.mrf.mxu0
        %v3282 = vadd.f32 0.0, %v3281
        %v3283 = vpop.f32.mrf.mxu0
        %v3284 = vadd.f32 0.0, %v3283
        %3285 = vmatmul.bf16.gmra.mxu0 %v3140
        %v3286 = vpop.f32.mrf.mxu0
        %v3287 = vadd.f32 0.0, %v3286
        %v3288 = vpop.f32.mrf.mxu0
        %v3289 = vadd.f32 0.0, %v3288
        %3290 = vmatmul.bf16.gmra.mxu0 %v3141
        %v3291 = vpop.f32.mrf.mxu0
        %v3292 = vadd.f32 0.0, %v3291
        %v3293 = vpop.f32.mrf.mxu0
        %v3294 = vadd.f32 0.0, %v3293
        %3295 = vdwg.mxu0
        %v3296 = vadd.f32 %v3015, %v3217
        %v3297 = vadd.f32 %v3017, %v3219
        %v3298 = vadd.f32 %v3020, %v3222
        %v3299 = vadd.f32 %v3022, %v3224
        %v3300 = vadd.f32 %v3025, %v3227
        %v3301 = vadd.f32 %v3027, %v3229
        %v3302 = vadd.f32 %v3030, %v3232
        %v3303 = vadd.f32 %v3032, %v3234
        %v3304 = vadd.f32 %v3035, %v3237
        %v3305 = vadd.f32 %v3037, %v3239
        %v3306 = vadd.f32 %v3040, %v3242
        %v3307 = vadd.f32 %v3042, %v3244
        %v3308 = vadd.f32 %v3045, %v3247
        %v3309 = vadd.f32 %v3047, %v3249
        %v3310 = vadd.f32 %v3050, %v3252
        %v3311 = vadd.f32 %v3052, %v3254
        %v3312 = vadd.f32 %v3055, %v3257
        %v3313 = vadd.f32 %v3057, %v3259
        %v3314 = vadd.f32 %v3060, %v3262
        %v3315 = vadd.f32 %v3062, %v3264
        %v3316 = vadd.f32 %v3065, %v3267
        %v3317 = vadd.f32 %v3067, %v3269
        %v3318 = vadd.f32 %v3070, %v3272
        %v3319 = vadd.f32 %v3072, %v3274
        %v3320 = vadd.f32 %v3075, %v3277
        %v3321 = vadd.f32 %v3077, %v3279
        %v3322 = vadd.f32 %v3080, %v3282
        %v3323 = vadd.f32 %v3082, %v3284
        %v3324 = vadd.f32 %v3085, %v3287
        %v3325 = vadd.f32 %v3087, %v3289
        %v3326 = vadd.f32 %v3090, %v3292
        %v3327 = vadd.f32 %v3092, %v3294
        %s3328 = scalar_lea.vmem [#allocation2], 24
        %v3329 = vld [vmem:[%s3328] sm:$0xff]
        %v3330 = vld [vmem:[%s3328 + $0x8] sm:$0xff]
        %v3331 = vld [vmem:[%s3328 + $0x18] sm:$0xff]
        %v3332 = vld [vmem:[%s3328 + $0x20] sm:$0xff]
        %v3333 = vld [vmem:[%s3328 + $0x30] sm:$0xff]
        %v3334 = vld [vmem:[%s3328 + $0x38] sm:$0xff]
        %v3335 = vld [vmem:[%s3328 + $0x48] sm:$0xff]
        %v3336 = vld [vmem:[%s3328 + $0x50] sm:$0xff]
        %v3337 = vld [vmem:[%s3328 + $0x60] sm:$0xff]
        %v3338 = vld [vmem:[%s3328 + $0x68] sm:$0xff]
        %v3339 = vld [vmem:[%s3328 + $0x78] sm:$0xff]
        %v3340 = vld [vmem:[%s3328 + $0x80] sm:$0xff]
        %v3341 = vld [vmem:[%s3328 + $0x90] sm:$0xff]
        %v3342 = vld [vmem:[%s3328 + $0x98] sm:$0xff]
        %v3343 = vld [vmem:[%s3328 + $0xa8] sm:$0xff]
        %v3344 = vld [vmem:[%s3328 + $0xb0] sm:$0xff]
        %v3345 = vld [vmem:[%s3328 + $0xc0] sm:$0xff]
        %v3346 = vld [vmem:[%s3328 + $0xc8] sm:$0xff]
        %v3347 = vld [vmem:[%s3328 + $0xd8] sm:$0xff]
        %v3348 = vld [vmem:[%s3328 + $0xe0] sm:$0xff]
        %v3349 = vld [vmem:[%s3328 + $0xf0] sm:$0xff]
        %v3350 = vld [vmem:[%s3328 + $0xf8] sm:$0xff]
        %v3351 = vld [vmem:[%s3328 + $0x108] sm:$0xff]
        %v3352 = vld [vmem:[%s3328 + $0x110] sm:$0xff]
        %v3353 = vld [vmem:[%s3328 + $0x120] sm:$0xff]
        %v3354 = vld [vmem:[%s3328 + $0x128] sm:$0xff]
        %v3355 = vld [vmem:[%s3328 + $0x138] sm:$0xff]
        %v3356 = vld [vmem:[%s3328 + $0x140] sm:$0xff]
        %v3357 = vld [vmem:[%s3328 + $0x150] sm:$0xff]
        %v3358 = vld [vmem:[%s3328 + $0x158] sm:$0xff]
        %v3359 = vld [vmem:[%s3328 + $0x168] sm:$0xff]
        %v3360 = vld [vmem:[%s3328 + $0x170] sm:$0xff]
        %v3361 = vpack.c.bf16 %v3330, %v3329
        %v3362 = vpack.c.bf16 %v3332, %v3331
        %v3363 = vpack.c.bf16 %v3334, %v3333
        %v3364 = vpack.c.bf16 %v3336, %v3335
        %v3365 = vpack.c.bf16 %v3338, %v3337
        %v3366 = vpack.c.bf16 %v3340, %v3339
        %v3367 = vpack.c.bf16 %v3342, %v3341
        %v3368 = vpack.c.bf16 %v3344, %v3343
        %v3369 = vpack.c.bf16 %v3346, %v3345
        %v3370 = vpack.c.bf16 %v3348, %v3347
        %v3371 = vpack.c.bf16 %v3350, %v3349
        %v3372 = vpack.c.bf16 %v3352, %v3351
        %v3373 = vpack.c.bf16 %v3354, %v3353
        %v3374 = vpack.c.bf16 %v3356, %v3355
        %v3375 = vpack.c.bf16 %v3358, %v3357
        %v3376 = vpack.c.bf16 %v3360, %v3359
        %s3377 = scalar_lea.vmem %s3, 192
        %v3378 = vld [vmem:[%s3377] sm:$0xf]
        %v3379 = vld [vmem:[%s3377 + $0x4] sm:$0xf]
        %v3380 = vld [vmem:[%s3377 + $0x8] sm:$0xf]
        %v3381 = vld [vmem:[%s3377 + $0xc] sm:$0xf]
        %v3382 = vld [vmem:[%s3377 + $0x10] sm:$0xf]
        %v3383 = vld [vmem:[%s3377 + $0x14] sm:$0xf]
        %v3384 = vld [vmem:[%s3377 + $0x18] sm:$0xf]
        %v3385 = vld [vmem:[%s3377 + $0x1c] sm:$0xf]
        %v3386 = vld [vmem:[%s3377 + $0x20] sm:$0xf]
        %v3387 = vld [vmem:[%s3377 + $0x24] sm:$0xf]
        %v3388 = vld [vmem:[%s3377 + $0x28] sm:$0xf]
        %v3389 = vld [vmem:[%s3377 + $0x2c] sm:$0xf]
        %v3390 = vld [vmem:[%s3377 + $0x30] sm:$0xf]
        %v3391 = vld [vmem:[%s3377 + $0x34] sm:$0xf]
        %v3392 = vld [vmem:[%s3377 + $0x38] sm:$0xf]
        %v3393 = vld [vmem:[%s3377 + $0x3c] sm:$0xf]
        %v3410 = vunpack.c.l.b16 %v3378
        %v3411 = vunpack.c.l.b16 %v3379
        %v3412 = vunpack.c.l.b16 %v3380
        %v3413 = vunpack.c.l.b16 %v3381
        %v3414 = vunpack.c.l.b16 %v3382
        %v3415 = vunpack.c.l.b16 %v3383
        %v3416 = vunpack.c.l.b16 %v3384
        %v3417 = vunpack.c.l.b16 %v3385
        %v3418 = vunpack.c.l.b16 %v3386
        %v3419 = vunpack.c.l.b16 %v3387
        %v3420 = vunpack.c.l.b16 %v3388
        %v3421 = vunpack.c.l.b16 %v3389
        %v3422 = vunpack.c.l.b16 %v3390
        %v3423 = vunpack.c.l.b16 %v3391
        %v3424 = vunpack.c.l.b16 %v3392
        %v3425 = vunpack.c.l.b16 %v3393
        %v3426 = vpack.c.b16 %v3411, %v3410
        %v3427 = vpack.c.b16 %v3413, %v3412
        %v3428 = vpack.c.b16 %v3415, %v3414
        %v3429 = vpack.c.b16 %v3417, %v3416
        %v3430 = vpack.c.b16 %v3419, %v3418
        %v3431 = vpack.c.b16 %v3421, %v3420
        %v3432 = vpack.c.b16 %v3423, %v3422
        %v3433 = vpack.c.b16 %v3425, %v3424
        %3442 = vmatpush.bf16.msra.mxu0 %v3433
        %3443 = vmatpush.bf16.msra.mxu0 %v3432
        %3444 = vmatpush.bf16.msra.mxu0 %v3431
        %3445 = vmatpush.bf16.msra.mxu0 %v3430
        %3446 = vmatpush.bf16.msra.mxu0 %v3429
        %3447 = vmatpush.bf16.msra.mxu0 %v3428
        %3448 = vmatpush.bf16.msra.mxu0 %v3427
        %3449 = vmatpush.bf16.msra.mxu0 %v3426
        %3450 = vmatmul.bf16.gmra.mxu0 %v3361
        %v3451 = vpop.f32.mrf.mxu0
        %v3452 = vadd.f32 0.0, %v3451
        %v3453 = vpop.f32.mrf.mxu0
        %v3454 = vadd.f32 0.0, %v3453
        %3455 = vmatmul.bf16.gmra.mxu0 %v3362
        %v3456 = vpop.f32.mrf.mxu0
        %v3457 = vadd.f32 0.0, %v3456
        %v3458 = vpop.f32.mrf.mxu0
        %v3459 = vadd.f32 0.0, %v3458
        %3460 = vmatmul.bf16.gmra.mxu0 %v3363
        %v3461 = vpop.f32.mrf.mxu0
        %v3462 = vadd.f32 0.0, %v3461
        %v3463 = vpop.f32.mrf.mxu0
        %v3464 = vadd.f32 0.0, %v3463
        %3465 = vmatmul.bf16.gmra.mxu0 %v3364
        %v3466 = vpop.f32.mrf.mxu0
        %v3467 = vadd.f32 0.0, %v3466
        %v3468 = vpop.f32.mrf.mxu0
        %v3469 = vadd.f32 0.0, %v3468
        %3470 = vmatmul.bf16.gmra.mxu0 %v3365
        %v3471 = vpop.f32.mrf.mxu0
        %v3472 = vadd.f32 0.0, %v3471
        %v3473 = vpop.f32.mrf.mxu0
        %v3474 = vadd.f32 0.0, %v3473
        %3475 = vmatmul.bf16.gmra.mxu0 %v3366
        %v3476 = vpop.f32.mrf.mxu0
        %v3477 = vadd.f32 0.0, %v3476
        %v3478 = vpop.f32.mrf.mxu0
        %v3479 = vadd.f32 0.0, %v3478
        %3480 = vmatmul.bf16.gmra.mxu0 %v3367
        %v3481 = vpop.f32.mrf.mxu0
        %v3482 = vadd.f32 0.0, %v3481
        %v3483 = vpop.f32.mrf.mxu0
        %v3484 = vadd.f32 0.0, %v3483
        %3485 = vmatmul.bf16.gmra.mxu0 %v3368
        %v3486 = vpop.f32.mrf.mxu0
        %v3487 = vadd.f32 0.0, %v3486
        %v3488 = vpop.f32.mrf.mxu0
        %v3489 = vadd.f32 0.0, %v3488
        %3490 = vmatmul.bf16.gmra.mxu0 %v3369
        %v3491 = vpop.f32.mrf.mxu0
        %v3492 = vadd.f32 0.0, %v3491
        %v3493 = vpop.f32.mrf.mxu0
        %v3494 = vadd.f32 0.0, %v3493
        %3495 = vmatmul.bf16.gmra.mxu0 %v3370
        %v3496 = vpop.f32.mrf.mxu0
        %v3497 = vadd.f32 0.0, %v3496
        %v3498 = vpop.f32.mrf.mxu0
        %v3499 = vadd.f32 0.0, %v3498
        %3500 = vmatmul.bf16.gmra.mxu0 %v3371
        %v3501 = vpop.f32.mrf.mxu0
        %v3502 = vadd.f32 0.0, %v3501
        %v3503 = vpop.f32.mrf.mxu0
        %v3504 = vadd.f32 0.0, %v3503
        %3505 = vmatmul.bf16.gmra.mxu0 %v3372
        %v3506 = vpop.f32.mrf.mxu0
        %v3507 = vadd.f32 0.0, %v3506
        %v3508 = vpop.f32.mrf.mxu0
        %v3509 = vadd.f32 0.0, %v3508
        %3510 = vmatmul.bf16.gmra.mxu0 %v3373
        %v3511 = vpop.f32.mrf.mxu0
        %v3512 = vadd.f32 0.0, %v3511
        %v3513 = vpop.f32.mrf.mxu0
        %v3514 = vadd.f32 0.0, %v3513
        %3515 = vmatmul.bf16.gmra.mxu0 %v3374
        %v3516 = vpop.f32.mrf.mxu0
        %v3517 = vadd.f32 0.0, %v3516
        %v3518 = vpop.f32.mrf.mxu0
        %v3519 = vadd.f32 0.0, %v3518
        %3520 = vmatmul.bf16.gmra.mxu0 %v3375
        %v3521 = vpop.f32.mrf.mxu0
        %v3522 = vadd.f32 0.0, %v3521
        %v3523 = vpop.f32.mrf.mxu0
        %v3524 = vadd.f32 0.0, %v3523
        %3525 = vmatmul.bf16.gmra.mxu0 %v3376
        %v3526 = vpop.f32.mrf.mxu0
        %v3527 = vadd.f32 0.0, %v3526
        %v3528 = vpop.f32.mrf.mxu0
        %v3529 = vadd.f32 0.0, %v3528
        %3530 = vdwg.mxu0
        %v3531 = vadd.f32 %v3296, %v3452
        %v3532 = vadd.f32 %v3297, %v3454
        %v3533 = vadd.f32 %v3298, %v3457
        %v3534 = vadd.f32 %v3299, %v3459
        %v3535 = vadd.f32 %v3300, %v3462
        %v3536 = vadd.f32 %v3301, %v3464
        %v3537 = vadd.f32 %v3302, %v3467
        %v3538 = vadd.f32 %v3303, %v3469
        %v3539 = vadd.f32 %v3304, %v3472
        %v3540 = vadd.f32 %v3305, %v3474
        %v3541 = vadd.f32 %v3306, %v3477
        %v3542 = vadd.f32 %v3307, %v3479
        %v3543 = vadd.f32 %v3308, %v3482
        %v3544 = vadd.f32 %v3309, %v3484
        %v3545 = vadd.f32 %v3310, %v3487
        %v3546 = vadd.f32 %v3311, %v3489
        %v3547 = vadd.f32 %v3312, %v3492
        %v3548 = vadd.f32 %v3313, %v3494
        %v3549 = vadd.f32 %v3314, %v3497
        %v3550 = vadd.f32 %v3315, %v3499
        %v3551 = vadd.f32 %v3316, %v3502
        %v3552 = vadd.f32 %v3317, %v3504
        %v3553 = vadd.f32 %v3318, %v3507
        %v3554 = vadd.f32 %v3319, %v3509
        %v3555 = vadd.f32 %v3320, %v3512
        %v3556 = vadd.f32 %v3321, %v3514
        %v3557 = vadd.f32 %v3322, %v3517
        %v3558 = vadd.f32 %v3323, %v3519
        %v3559 = vadd.f32 %v3324, %v3522
        %v3560 = vadd.f32 %v3325, %v3524
        %v3561 = vadd.f32 %v3326, %v3527
        %v3562 = vadd.f32 %v3327, %v3529
        %v3563 = vld [vmem:[%s3328 + $0x1] sm:$0xff]
        %v3564 = vld [vmem:[%s3328 + $0x9] sm:$0xff]
        %v3565 = vld [vmem:[%s3328 + $0x19] sm:$0xff]
        %v3566 = vld [vmem:[%s3328 + $0x21] sm:$0xff]
        %v3567 = vld [vmem:[%s3328 + $0x31] sm:$0xff]
        %v3568 = vld [vmem:[%s3328 + $0x39] sm:$0xff]
        %v3569 = vld [vmem:[%s3328 + $0x49] sm:$0xff]
        %v3570 = vld [vmem:[%s3328 + $0x51] sm:$0xff]
        %v3571 = vld [vmem:[%s3328 + $0x61] sm:$0xff]
        %v3572 = vld [vmem:[%s3328 + $0x69] sm:$0xff]
        %v3573 = vld [vmem:[%s3328 + $0x79] sm:$0xff]
        %v3574 = vld [vmem:[%s3328 + $0x81] sm:$0xff]
        %v3575 = vld [vmem:[%s3328 + $0x91] sm:$0xff]
        %v3576 = vld [vmem:[%s3328 + $0x99] sm:$0xff]
        %v3577 = vld [vmem:[%s3328 + $0xa9] sm:$0xff]
        %v3578 = vld [vmem:[%s3328 + $0xb1] sm:$0xff]
        %v3579 = vld [vmem:[%s3328 + $0xc1] sm:$0xff]
        %v3580 = vld [vmem:[%s3328 + $0xc9] sm:$0xff]
        %v3581 = vld [vmem:[%s3328 + $0xd9] sm:$0xff]
        %v3582 = vld [vmem:[%s3328 + $0xe1] sm:$0xff]
        %v3583 = vld [vmem:[%s3328 + $0xf1] sm:$0xff]
        %v3584 = vld [vmem:[%s3328 + $0xf9] sm:$0xff]
        %v3585 = vld [vmem:[%s3328 + $0x109] sm:$0xff]
        %v3586 = vld [vmem:[%s3328 + $0x111] sm:$0xff]
        %v3587 = vld [vmem:[%s3328 + $0x121] sm:$0xff]
        %v3588 = vld [vmem:[%s3328 + $0x129] sm:$0xff]
        %v3589 = vld [vmem:[%s3328 + $0x139] sm:$0xff]
        %v3590 = vld [vmem:[%s3328 + $0x141] sm:$0xff]
        %v3591 = vld [vmem:[%s3328 + $0x151] sm:$0xff]
        %v3592 = vld [vmem:[%s3328 + $0x159] sm:$0xff]
        %v3593 = vld [vmem:[%s3328 + $0x169] sm:$0xff]
        %v3594 = vld [vmem:[%s3328 + $0x171] sm:$0xff]
        %v3595 = vpack.c.bf16 %v3564, %v3563
        %v3596 = vpack.c.bf16 %v3566, %v3565
        %v3597 = vpack.c.bf16 %v3568, %v3567
        %v3598 = vpack.c.bf16 %v3570, %v3569
        %v3599 = vpack.c.bf16 %v3572, %v3571
        %v3600 = vpack.c.bf16 %v3574, %v3573
        %v3601 = vpack.c.bf16 %v3576, %v3575
        %v3602 = vpack.c.bf16 %v3578, %v3577
        %v3603 = vpack.c.bf16 %v3580, %v3579
        %v3604 = vpack.c.bf16 %v3582, %v3581
        %v3605 = vpack.c.bf16 %v3584, %v3583
        %v3606 = vpack.c.bf16 %v3586, %v3585
        %v3607 = vpack.c.bf16 %v3588, %v3587
        %v3608 = vpack.c.bf16 %v3590, %v3589
        %v3609 = vpack.c.bf16 %v3592, %v3591
        %v3610 = vpack.c.bf16 %v3594, %v3593
        %s3611 = scalar_lea.vmem %s3, 256
        %v3612 = vld [vmem:[%s3611] sm:$0xf]
        %v3613 = vld [vmem:[%s3611 + $0x4] sm:$0xf]
        %v3614 = vld [vmem:[%s3611 + $0x8] sm:$0xf]
        %v3615 = vld [vmem:[%s3611 + $0xc] sm:$0xf]
        %v3616 = vld [vmem:[%s3611 + $0x10] sm:$0xf]
        %v3617 = vld [vmem:[%s3611 + $0x14] sm:$0xf]
        %v3618 = vld [vmem:[%s3611 + $0x18] sm:$0xf]
        %v3619 = vld [vmem:[%s3611 + $0x1c] sm:$0xf]
        %v3620 = vld [vmem:[%s3611 + $0x20] sm:$0xf]
        %v3621 = vld [vmem:[%s3611 + $0x24] sm:$0xf]
        %v3622 = vld [vmem:[%s3611 + $0x28] sm:$0xf]
        %v3623 = vld [vmem:[%s3611 + $0x2c] sm:$0xf]
        %v3624 = vld [vmem:[%s3611 + $0x30] sm:$0xf]
        %v3625 = vld [vmem:[%s3611 + $0x34] sm:$0xf]
        %v3626 = vld [vmem:[%s3611 + $0x38] sm:$0xf]
        %v3627 = vld [vmem:[%s3611 + $0x3c] sm:$0xf]
        %v3644 = vunpack.c.l.b16 %v3612
        %v3645 = vunpack.c.l.b16 %v3613
        %v3646 = vunpack.c.l.b16 %v3614
        %v3647 = vunpack.c.l.b16 %v3615
        %v3648 = vunpack.c.l.b16 %v3616
        %v3649 = vunpack.c.l.b16 %v3617
        %v3650 = vunpack.c.l.b16 %v3618
        %v3651 = vunpack.c.l.b16 %v3619
        %v3652 = vunpack.c.l.b16 %v3620
        %v3653 = vunpack.c.l.b16 %v3621
        %v3654 = vunpack.c.l.b16 %v3622
        %v3655 = vunpack.c.l.b16 %v3623
        %v3656 = vunpack.c.l.b16 %v3624
        %v3657 = vunpack.c.l.b16 %v3625
        %v3658 = vunpack.c.l.b16 %v3626
        %v3659 = vunpack.c.l.b16 %v3627
        %v3660 = vpack.c.b16 %v3645, %v3644
        %v3661 = vpack.c.b16 %v3647, %v3646
        %v3662 = vpack.c.b16 %v3649, %v3648
        %v3663 = vpack.c.b16 %v3651, %v3650
        %v3664 = vpack.c.b16 %v3653, %v3652
        %v3665 = vpack.c.b16 %v3655, %v3654
        %v3666 = vpack.c.b16 %v3657, %v3656
        %v3667 = vpack.c.b16 %v3659, %v3658
        %3676 = vmatpush.bf16.msra.mxu0 %v3667
        %3677 = vmatpush.bf16.msra.mxu0 %v3666
        %3678 = vmatpush.bf16.msra.mxu0 %v3665
        %3679 = vmatpush.bf16.msra.mxu0 %v3664
        %3680 = vmatpush.bf16.msra.mxu0 %v3663
        %3681 = vmatpush.bf16.msra.mxu0 %v3662
        %3682 = vmatpush.bf16.msra.mxu0 %v3661
        %3683 = vmatpush.bf16.msra.mxu0 %v3660
        %3684 = vmatmul.bf16.gmra.mxu0 %v3595
        %v3685 = vpop.f32.mrf.mxu0
        %v3686 = vadd.f32 0.0, %v3685
        %v3687 = vpop.f32.mrf.mxu0
        %v3688 = vadd.f32 0.0, %v3687
        %3689 = vmatmul.bf16.gmra.mxu0 %v3596
        %v3690 = vpop.f32.mrf.mxu0
        %v3691 = vadd.f32 0.0, %v3690
        %v3692 = vpop.f32.mrf.mxu0
        %v3693 = vadd.f32 0.0, %v3692
        %3694 = vmatmul.bf16.gmra.mxu0 %v3597
        %v3695 = vpop.f32.mrf.mxu0
        %v3696 = vadd.f32 0.0, %v3695
        %v3697 = vpop.f32.mrf.mxu0
        %v3698 = vadd.f32 0.0, %v3697
        %3699 = vmatmul.bf16.gmra.mxu0 %v3598
        %v3700 = vpop.f32.mrf.mxu0
        %v3701 = vadd.f32 0.0, %v3700
        %v3702 = vpop.f32.mrf.mxu0
        %v3703 = vadd.f32 0.0, %v3702
        %3704 = vmatmul.bf16.gmra.mxu0 %v3599
        %v3705 = vpop.f32.mrf.mxu0
        %v3706 = vadd.f32 0.0, %v3705
        %v3707 = vpop.f32.mrf.mxu0
        %v3708 = vadd.f32 0.0, %v3707
        %3709 = vmatmul.bf16.gmra.mxu0 %v3600
        %v3710 = vpop.f32.mrf.mxu0
        %v3711 = vadd.f32 0.0, %v3710
        %v3712 = vpop.f32.mrf.mxu0
        %v3713 = vadd.f32 0.0, %v3712
        %3714 = vmatmul.bf16.gmra.mxu0 %v3601
        %v3715 = vpop.f32.mrf.mxu0
        %v3716 = vadd.f32 0.0, %v3715
        %v3717 = vpop.f32.mrf.mxu0
        %v3718 = vadd.f32 0.0, %v3717
        %3719 = vmatmul.bf16.gmra.mxu0 %v3602
        %v3720 = vpop.f32.mrf.mxu0
        %v3721 = vadd.f32 0.0, %v3720
        %v3722 = vpop.f32.mrf.mxu0
        %v3723 = vadd.f32 0.0, %v3722
        %3724 = vmatmul.bf16.gmra.mxu0 %v3603
        %v3725 = vpop.f32.mrf.mxu0
        %v3726 = vadd.f32 0.0, %v3725
        %v3727 = vpop.f32.mrf.mxu0
        %v3728 = vadd.f32 0.0, %v3727
        %3729 = vmatmul.bf16.gmra.mxu0 %v3604
        %v3730 = vpop.f32.mrf.mxu0
        %v3731 = vadd.f32 0.0, %v3730
        %v3732 = vpop.f32.mrf.mxu0
        %v3733 = vadd.f32 0.0, %v3732
        %3734 = vmatmul.bf16.gmra.mxu0 %v3605
        %v3735 = vpop.f32.mrf.mxu0
        %v3736 = vadd.f32 0.0, %v3735
        %v3737 = vpop.f32.mrf.mxu0
        %v3738 = vadd.f32 0.0, %v3737
        %3739 = vmatmul.bf16.gmra.mxu0 %v3606
        %v3740 = vpop.f32.mrf.mxu0
        %v3741 = vadd.f32 0.0, %v3740
        %v3742 = vpop.f32.mrf.mxu0
        %v3743 = vadd.f32 0.0, %v3742
        %3744 = vmatmul.bf16.gmra.mxu0 %v3607
        %v3745 = vpop.f32.mrf.mxu0
        %v3746 = vadd.f32 0.0, %v3745
        %v3747 = vpop.f32.mrf.mxu0
        %v3748 = vadd.f32 0.0, %v3747
        %3749 = vmatmul.bf16.gmra.mxu0 %v3608
        %v3750 = vpop.f32.mrf.mxu0
        %v3751 = vadd.f32 0.0, %v3750
        %v3752 = vpop.f32.mrf.mxu0
        %v3753 = vadd.f32 0.0, %v3752
        %3754 = vmatmul.bf16.gmra.mxu0 %v3609
        %v3755 = vpop.f32.mrf.mxu0
        %v3756 = vadd.f32 0.0, %v3755
        %v3757 = vpop.f32.mrf.mxu0
        %v3758 = vadd.f32 0.0, %v3757
        %3759 = vmatmul.bf16.gmra.mxu0 %v3610
        %v3760 = vpop.f32.mrf.mxu0
        %v3761 = vadd.f32 0.0, %v3760
        %v3762 = vpop.f32.mrf.mxu0
        %v3763 = vadd.f32 0.0, %v3762
        %3764 = vdwg.mxu0
        %v3765 = vadd.f32 %v3531, %v3686
        %v3766 = vadd.f32 %v3532, %v3688
        %v3767 = vadd.f32 %v3533, %v3691
        %v3768 = vadd.f32 %v3534, %v3693
        %v3769 = vadd.f32 %v3535, %v3696
        %v3770 = vadd.f32 %v3536, %v3698
        %v3771 = vadd.f32 %v3537, %v3701
        %v3772 = vadd.f32 %v3538, %v3703
        %v3773 = vadd.f32 %v3539, %v3706
        %v3774 = vadd.f32 %v3540, %v3708
        %v3775 = vadd.f32 %v3541, %v3711
        %v3776 = vadd.f32 %v3542, %v3713
        %v3777 = vadd.f32 %v3543, %v3716
        %v3778 = vadd.f32 %v3544, %v3718
        %v3779 = vadd.f32 %v3545, %v3721
        %v3780 = vadd.f32 %v3546, %v3723
        %v3781 = vadd.f32 %v3547, %v3726
        %v3782 = vadd.f32 %v3548, %v3728
        %v3783 = vadd.f32 %v3549, %v3731
        %v3784 = vadd.f32 %v3550, %v3733
        %v3785 = vadd.f32 %v3551, %v3736
        %v3786 = vadd.f32 %v3552, %v3738
        %v3787 = vadd.f32 %v3553, %v3741
        %v3788 = vadd.f32 %v3554, %v3743
        %v3789 = vadd.f32 %v3555, %v3746
        %v3790 = vadd.f32 %v3556, %v3748
        %v3791 = vadd.f32 %v3557, %v3751
        %v3792 = vadd.f32 %v3558, %v3753
        %v3793 = vadd.f32 %v3559, %v3756
        %v3794 = vadd.f32 %v3560, %v3758
        %v3795 = vadd.f32 %v3561, %v3761
        %v3796 = vadd.f32 %v3562, %v3763
        %v3797 = vld [vmem:[%s3328 + $0x2] sm:$0xff]
        %v3798 = vld [vmem:[%s3328 + $0xa] sm:$0xff]
        %v3799 = vld [vmem:[%s3328 + $0x1a] sm:$0xff]
        %v3800 = vld [vmem:[%s3328 + $0x22] sm:$0xff]
        %v3801 = vld [vmem:[%s3328 + $0x32] sm:$0xff]
        %v3802 = vld [vmem:[%s3328 + $0x3a] sm:$0xff]
        %v3803 = vld [vmem:[%s3328 + $0x4a] sm:$0xff]
        %v3804 = vld [vmem:[%s3328 + $0x52] sm:$0xff]
        %v3805 = vld [vmem:[%s3328 + $0x62] sm:$0xff]
        %v3806 = vld [vmem:[%s3328 + $0x6a] sm:$0xff]
        %v3807 = vld [vmem:[%s3328 + $0x7a] sm:$0xff]
        %v3808 = vld [vmem:[%s3328 + $0x82] sm:$0xff]
        %v3809 = vld [vmem:[%s3328 + $0x92] sm:$0xff]
        %v3810 = vld [vmem:[%s3328 + $0x9a] sm:$0xff]
        %v3811 = vld [vmem:[%s3328 + $0xaa] sm:$0xff]
        %v3812 = vld [vmem:[%s3328 + $0xb2] sm:$0xff]
        %v3813 = vld [vmem:[%s3328 + $0xc2] sm:$0xff]
        %v3814 = vld [vmem:[%s3328 + $0xca] sm:$0xff]
        %v3815 = vld [vmem:[%s3328 + $0xda] sm:$0xff]
        %v3816 = vld [vmem:[%s3328 + $0xe2] sm:$0xff]
        %v3817 = vld [vmem:[%s3328 + $0xf2] sm:$0xff]
        %v3818 = vld [vmem:[%s3328 + $0xfa] sm:$0xff]
        %v3819 = vld [vmem:[%s3328 + $0x10a] sm:$0xff]
        %v3820 = vld [vmem:[%s3328 + $0x112] sm:$0xff]
        %v3821 = vld [vmem:[%s3328 + $0x122] sm:$0xff]
        %v3822 = vld [vmem:[%s3328 + $0x12a] sm:$0xff]
        %v3823 = vld [vmem:[%s3328 + $0x13a] sm:$0xff]
        %v3824 = vld [vmem:[%s3328 + $0x142] sm:$0xff]
        %v3825 = vld [vmem:[%s3328 + $0x152] sm:$0xff]
        %v3826 = vld [vmem:[%s3328 + $0x15a] sm:$0xff]
        %v3827 = vld [vmem:[%s3328 + $0x16a] sm:$0xff]
        %v3828 = vld [vmem:[%s3328 + $0x172] sm:$0xff]
        %v3829 = vpack.c.bf16 %v3798, %v3797
        %v3830 = vpack.c.bf16 %v3800, %v3799
        %v3831 = vpack.c.bf16 %v3802, %v3801
        %v3832 = vpack.c.bf16 %v3804, %v3803
        %v3833 = vpack.c.bf16 %v3806, %v3805
        %v3834 = vpack.c.bf16 %v3808, %v3807
        %v3835 = vpack.c.bf16 %v3810, %v3809
        %v3836 = vpack.c.bf16 %v3812, %v3811
        %v3837 = vpack.c.bf16 %v3814, %v3813
        %v3838 = vpack.c.bf16 %v3816, %v3815
        %v3839 = vpack.c.bf16 %v3818, %v3817
        %v3840 = vpack.c.bf16 %v3820, %v3819
        %v3841 = vpack.c.bf16 %v3822, %v3821
        %v3842 = vpack.c.bf16 %v3824, %v3823
        %v3843 = vpack.c.bf16 %v3826, %v3825
        %v3844 = vpack.c.bf16 %v3828, %v3827
        %s3845 = scalar_lea.vmem %s3, 320
        %v3846 = vld [vmem:[%s3845] sm:$0xf]
        %v3847 = vld [vmem:[%s3845 + $0x4] sm:$0xf]
        %v3848 = vld [vmem:[%s3845 + $0x8] sm:$0xf]
        %v3849 = vld [vmem:[%s3845 + $0xc] sm:$0xf]
        %v3850 = vld [vmem:[%s3845 + $0x10] sm:$0xf]
        %v3851 = vld [vmem:[%s3845 + $0x14] sm:$0xf]
        %v3852 = vld [vmem:[%s3845 + $0x18] sm:$0xf]
        %v3853 = vld [vmem:[%s3845 + $0x1c] sm:$0xf]
        %v3854 = vld [vmem:[%s3845 + $0x20] sm:$0xf]
        %v3855 = vld [vmem:[%s3845 + $0x24] sm:$0xf]
        %v3856 = vld [vmem:[%s3845 + $0x28] sm:$0xf]
        %v3857 = vld [vmem:[%s3845 + $0x2c] sm:$0xf]
        %v3858 = vld [vmem:[%s3845 + $0x30] sm:$0xf]
        %v3859 = vld [vmem:[%s3845 + $0x34] sm:$0xf]
        %v3860 = vld [vmem:[%s3845 + $0x38] sm:$0xf]
        %v3861 = vld [vmem:[%s3845 + $0x3c] sm:$0xf]
        %v3878 = vunpack.c.l.b16 %v3846
        %v3879 = vunpack.c.l.b16 %v3847
        %v3880 = vunpack.c.l.b16 %v3848
        %v3881 = vunpack.c.l.b16 %v3849
        %v3882 = vunpack.c.l.b16 %v3850
        %v3883 = vunpack.c.l.b16 %v3851
        %v3884 = vunpack.c.l.b16 %v3852
        %v3885 = vunpack.c.l.b16 %v3853
        %v3886 = vunpack.c.l.b16 %v3854
        %v3887 = vunpack.c.l.b16 %v3855
        %v3888 = vunpack.c.l.b16 %v3856
        %v3889 = vunpack.c.l.b16 %v3857
        %v3890 = vunpack.c.l.b16 %v3858
        %v3891 = vunpack.c.l.b16 %v3859
        %v3892 = vunpack.c.l.b16 %v3860
        %v3893 = vunpack.c.l.b16 %v3861
        %v3894 = vpack.c.b16 %v3879, %v3878
        %v3895 = vpack.c.b16 %v3881, %v3880
        %v3896 = vpack.c.b16 %v3883, %v3882
        %v3897 = vpack.c.b16 %v3885, %v3884
        %v3898 = vpack.c.b16 %v3887, %v3886
        %v3899 = vpack.c.b16 %v3889, %v3888
        %v3900 = vpack.c.b16 %v3891, %v3890
        %v3901 = vpack.c.b16 %v3893, %v3892
        %3910 = vmatpush.bf16.msra.mxu0 %v3901
        %3911 = vmatpush.bf16.msra.mxu0 %v3900
        %3912 = vmatpush.bf16.msra.mxu0 %v3899
        %3913 = vmatpush.bf16.msra.mxu0 %v3898
        %3914 = vmatpush.bf16.msra.mxu0 %v3897
        %3915 = vmatpush.bf16.msra.mxu0 %v3896
        %3916 = vmatpush.bf16.msra.mxu0 %v3895
        %3917 = vmatpush.bf16.msra.mxu0 %v3894
        %3918 = vmatmul.bf16.gmra.mxu0 %v3829
        %v3919 = vpop.f32.mrf.mxu0
        %v3920 = vadd.f32 0.0, %v3919
        %v3921 = vpop.f32.mrf.mxu0
        %v3922 = vadd.f32 0.0, %v3921
        %3923 = vmatmul.bf16.gmra.mxu0 %v3830
        %v3924 = vpop.f32.mrf.mxu0
        %v3925 = vadd.f32 0.0, %v3924
        %v3926 = vpop.f32.mrf.mxu0
        %v3927 = vadd.f32 0.0, %v3926
        %3928 = vmatmul.bf16.gmra.mxu0 %v3831
        %v3929 = vpop.f32.mrf.mxu0
        %v3930 = vadd.f32 0.0, %v3929
        %v3931 = vpop.f32.mrf.mxu0
        %v3932 = vadd.f32 0.0, %v3931
        %3933 = vmatmul.bf16.gmra.mxu0 %v3832
        %v3934 = vpop.f32.mrf.mxu0
        %v3935 = vadd.f32 0.0, %v3934
        %v3936 = vpop.f32.mrf.mxu0
        %v3937 = vadd.f32 0.0, %v3936
        %3938 = vmatmul.bf16.gmra.mxu0 %v3833
        %v3939 = vpop.f32.mrf.mxu0
        %v3940 = vadd.f32 0.0, %v3939
        %v3941 = vpop.f32.mrf.mxu0
        %v3942 = vadd.f32 0.0, %v3941
        %3943 = vmatmul.bf16.gmra.mxu0 %v3834
        %v3944 = vpop.f32.mrf.mxu0
        %v3945 = vadd.f32 0.0, %v3944
        %v3946 = vpop.f32.mrf.mxu0
        %v3947 = vadd.f32 0.0, %v3946
        %3948 = vmatmul.bf16.gmra.mxu0 %v3835
        %v3949 = vpop.f32.mrf.mxu0
        %v3950 = vadd.f32 0.0, %v3949
        %v3951 = vpop.f32.mrf.mxu0
        %v3952 = vadd.f32 0.0, %v3951
        %3953 = vmatmul.bf16.gmra.mxu0 %v3836
        %v3954 = vpop.f32.mrf.mxu0
        %v3955 = vadd.f32 0.0, %v3954
        %v3956 = vpop.f32.mrf.mxu0
        %v3957 = vadd.f32 0.0, %v3956
        %3958 = vmatmul.bf16.gmra.mxu0 %v3837
        %v3959 = vpop.f32.mrf.mxu0
        %v3960 = vadd.f32 0.0, %v3959
        %v3961 = vpop.f32.mrf.mxu0
        %v3962 = vadd.f32 0.0, %v3961
        %3963 = vmatmul.bf16.gmra.mxu0 %v3838
        %v3964 = vpop.f32.mrf.mxu0
        %v3965 = vadd.f32 0.0, %v3964
        %v3966 = vpop.f32.mrf.mxu0
        %v3967 = vadd.f32 0.0, %v3966
        %3968 = vmatmul.bf16.gmra.mxu0 %v3839
        %v3969 = vpop.f32.mrf.mxu0
        %v3970 = vadd.f32 0.0, %v3969
        %v3971 = vpop.f32.mrf.mxu0
        %v3972 = vadd.f32 0.0, %v3971
        %3973 = vmatmul.bf16.gmra.mxu0 %v3840
        %v3974 = vpop.f32.mrf.mxu0
        %v3975 = vadd.f32 0.0, %v3974
        %v3976 = vpop.f32.mrf.mxu0
        %v3977 = vadd.f32 0.0, %v3976
        %3978 = vmatmul.bf16.gmra.mxu0 %v3841
        %v3979 = vpop.f32.mrf.mxu0
        %v3980 = vadd.f32 0.0, %v3979
        %v3981 = vpop.f32.mrf.mxu0
        %v3982 = vadd.f32 0.0, %v3981
        %3983 = vmatmul.bf16.gmra.mxu0 %v3842
        %v3984 = vpop.f32.mrf.mxu0
        %v3985 = vadd.f32 0.0, %v3984
        %v3986 = vpop.f32.mrf.mxu0
        %v3987 = vadd.f32 0.0, %v3986
        %3988 = vmatmul.bf16.gmra.mxu0 %v3843
        %v3989 = vpop.f32.mrf.mxu0
        %v3990 = vadd.f32 0.0, %v3989
        %v3991 = vpop.f32.mrf.mxu0
        %v3992 = vadd.f32 0.0, %v3991
        %3993 = vmatmul.bf16.gmra.mxu0 %v3844
        %v3994 = vpop.f32.mrf.mxu0
        %v3995 = vadd.f32 0.0, %v3994
        %v3996 = vpop.f32.mrf.mxu0
        %v3997 = vadd.f32 0.0, %v3996
        %3998 = vdwg.mxu0
        %v3999 = vadd.f32 %v3765, %v3920
        %v4000 = vadd.f32 %v3766, %v3922
        %v4001 = vadd.f32 %v3767, %v3925
        %v4002 = vadd.f32 %v3768, %v3927
        %v4003 = vadd.f32 %v3769, %v3930
        %v4004 = vadd.f32 %v3770, %v3932
        %v4005 = vadd.f32 %v3771, %v3935
        %v4006 = vadd.f32 %v3772, %v3937
        %v4007 = vadd.f32 %v3773, %v3940
        %v4008 = vadd.f32 %v3774, %v3942
        %v4009 = vadd.f32 %v3775, %v3945
        %v4010 = vadd.f32 %v3776, %v3947
        %v4011 = vadd.f32 %v3777, %v3950
        %v4012 = vadd.f32 %v3778, %v3952
        %v4013 = vadd.f32 %v3779, %v3955
        %v4014 = vadd.f32 %v3780, %v3957
        %v4015 = vadd.f32 %v3781, %v3960
        %v4016 = vadd.f32 %v3782, %v3962
        %v4017 = vadd.f32 %v3783, %v3965
        %v4018 = vadd.f32 %v3784, %v3967
        %v4019 = vadd.f32 %v3785, %v3970
        %v4020 = vadd.f32 %v3786, %v3972
        %v4021 = vadd.f32 %v3787, %v3975
        %v4022 = vadd.f32 %v3788, %v3977
        %v4023 = vadd.f32 %v3789, %v3980
        %v4024 = vadd.f32 %v3790, %v3982
        %v4025 = vadd.f32 %v3791, %v3985
        %v4026 = vadd.f32 %v3792, %v3987
        %v4027 = vadd.f32 %v3793, %v3990
        %v4028 = vadd.f32 %v3794, %v3992
        %v4029 = vadd.f32 %v3795, %v3995
        %v4030 = vadd.f32 %v3796, %v3997
        %s4031 = scalar_lea.vmem [#allocation2], 48
        %v4032 = vld [vmem:[%s4031] sm:$0xff]
        %v4033 = vld [vmem:[%s4031 + $0x8] sm:$0xff]
        %v4034 = vld [vmem:[%s4031 + $0x18] sm:$0xff]
        %v4035 = vld [vmem:[%s4031 + $0x20] sm:$0xff]
        %v4036 = vld [vmem:[%s4031 + $0x30] sm:$0xff]
        %v4037 = vld [vmem:[%s4031 + $0x38] sm:$0xff]
        %v4038 = vld [vmem:[%s4031 + $0x48] sm:$0xff]
        %v4039 = vld [vmem:[%s4031 + $0x50] sm:$0xff]
        %v4040 = vld [vmem:[%s4031 + $0x60] sm:$0xff]
        %v4041 = vld [vmem:[%s4031 + $0x68] sm:$0xff]
        %v4042 = vld [vmem:[%s4031 + $0x78] sm:$0xff]
        %v4043 = vld [vmem:[%s4031 + $0x80] sm:$0xff]
        %v4044 = vld [vmem:[%s4031 + $0x90] sm:$0xff]
        %v4045 = vld [vmem:[%s4031 + $0x98] sm:$0xff]
        %v4046 = vld [vmem:[%s4031 + $0xa8] sm:$0xff]
        %v4047 = vld [vmem:[%s4031 + $0xb0] sm:$0xff]
        %v4048 = vld [vmem:[%s4031 + $0xc0] sm:$0xff]
        %v4049 = vld [vmem:[%s4031 + $0xc8] sm:$0xff]
        %v4050 = vld [vmem:[%s4031 + $0xd8] sm:$0xff]
        %v4051 = vld [vmem:[%s4031 + $0xe0] sm:$0xff]
        %v4052 = vld [vmem:[%s4031 + $0xf0] sm:$0xff]
        %v4053 = vld [vmem:[%s4031 + $0xf8] sm:$0xff]
        %v4054 = vld [vmem:[%s4031 + $0x108] sm:$0xff]
        %v4055 = vld [vmem:[%s4031 + $0x110] sm:$0xff]
        %v4056 = vld [vmem:[%s4031 + $0x120] sm:$0xff]
        %v4057 = vld [vmem:[%s4031 + $0x128] sm:$0xff]
        %v4058 = vld [vmem:[%s4031 + $0x138] sm:$0xff]
        %v4059 = vld [vmem:[%s4031 + $0x140] sm:$0xff]
        %v4060 = vld [vmem:[%s4031 + $0x150] sm:$0xff]
        %v4061 = vld [vmem:[%s4031 + $0x158] sm:$0xff]
        %v4062 = vld [vmem:[%s4031 + $0x168] sm:$0xff]
        %v4063 = vld [vmem:[%s4031 + $0x170] sm:$0xff]
        %v4064 = vpack.c.bf16 %v4033, %v4032
        %v4065 = vpack.c.bf16 %v4035, %v4034
        %v4066 = vpack.c.bf16 %v4037, %v4036
        %v4067 = vpack.c.bf16 %v4039, %v4038
        %v4068 = vpack.c.bf16 %v4041, %v4040
        %v4069 = vpack.c.bf16 %v4043, %v4042
        %v4070 = vpack.c.bf16 %v4045, %v4044
        %v4071 = vpack.c.bf16 %v4047, %v4046
        %v4072 = vpack.c.bf16 %v4049, %v4048
        %v4073 = vpack.c.bf16 %v4051, %v4050
        %v4074 = vpack.c.bf16 %v4053, %v4052
        %v4075 = vpack.c.bf16 %v4055, %v4054
        %v4076 = vpack.c.bf16 %v4057, %v4056
        %v4077 = vpack.c.bf16 %v4059, %v4058
        %v4078 = vpack.c.bf16 %v4061, %v4060
        %v4079 = vpack.c.bf16 %v4063, %v4062
        %s4080 = scalar_lea.vmem %s3, 384
        %v4081 = vld [vmem:[%s4080] sm:$0xf]
        %v4082 = vld [vmem:[%s4080 + $0x4] sm:$0xf]
        %v4083 = vld [vmem:[%s4080 + $0x8] sm:$0xf]
        %v4084 = vld [vmem:[%s4080 + $0xc] sm:$0xf]
        %v4085 = vld [vmem:[%s4080 + $0x10] sm:$0xf]
        %v4086 = vld [vmem:[%s4080 + $0x14] sm:$0xf]
        %v4087 = vld [vmem:[%s4080 + $0x18] sm:$0xf]
        %v4088 = vld [vmem:[%s4080 + $0x1c] sm:$0xf]
        %v4089 = vld [vmem:[%s4080 + $0x20] sm:$0xf]
        %v4090 = vld [vmem:[%s4080 + $0x24] sm:$0xf]
        %v4091 = vld [vmem:[%s4080 + $0x28] sm:$0xf]
        %v4092 = vld [vmem:[%s4080 + $0x2c] sm:$0xf]
        %v4093 = vld [vmem:[%s4080 + $0x30] sm:$0xf]
        %v4094 = vld [vmem:[%s4080 + $0x34] sm:$0xf]
        %v4095 = vld [vmem:[%s4080 + $0x38] sm:$0xf]
        %v4096 = vld [vmem:[%s4080 + $0x3c] sm:$0xf]
        %v4113 = vunpack.c.l.b16 %v4081
        %v4114 = vunpack.c.l.b16 %v4082
        %v4115 = vunpack.c.l.b16 %v4083
        %v4116 = vunpack.c.l.b16 %v4084
        %v4117 = vunpack.c.l.b16 %v4085
        %v4118 = vunpack.c.l.b16 %v4086
        %v4119 = vunpack.c.l.b16 %v4087
        %v4120 = vunpack.c.l.b16 %v4088
        %v4121 = vunpack.c.l.b16 %v4089
        %v4122 = vunpack.c.l.b16 %v4090
        %v4123 = vunpack.c.l.b16 %v4091
        %v4124 = vunpack.c.l.b16 %v4092
        %v4125 = vunpack.c.l.b16 %v4093
        %v4126 = vunpack.c.l.b16 %v4094
        %v4127 = vunpack.c.l.b16 %v4095
        %v4128 = vunpack.c.l.b16 %v4096
        %v4129 = vpack.c.b16 %v4114, %v4113
        %v4130 = vpack.c.b16 %v4116, %v4115
        %v4131 = vpack.c.b16 %v4118, %v4117
        %v4132 = vpack.c.b16 %v4120, %v4119
        %v4133 = vpack.c.b16 %v4122, %v4121
        %v4134 = vpack.c.b16 %v4124, %v4123
        %v4135 = vpack.c.b16 %v4126, %v4125
        %v4136 = vpack.c.b16 %v4128, %v4127
        %4145 = vmatpush.bf16.msra.mxu0 %v4136
        %4146 = vmatpush.bf16.msra.mxu0 %v4135
        %4147 = vmatpush.bf16.msra.mxu0 %v4134
        %4148 = vmatpush.bf16.msra.mxu0 %v4133
        %4149 = vmatpush.bf16.msra.mxu0 %v4132
        %4150 = vmatpush.bf16.msra.mxu0 %v4131
        %4151 = vmatpush.bf16.msra.mxu0 %v4130
        %4152 = vmatpush.bf16.msra.mxu0 %v4129
        %4153 = vmatmul.bf16.gmra.mxu0 %v4064
        %v4154 = vpop.f32.mrf.mxu0
        %v4155 = vadd.f32 0.0, %v4154
        %v4156 = vpop.f32.mrf.mxu0
        %v4157 = vadd.f32 0.0, %v4156
        %4158 = vmatmul.bf16.gmra.mxu0 %v4065
        %v4159 = vpop.f32.mrf.mxu0
        %v4160 = vadd.f32 0.0, %v4159
        %v4161 = vpop.f32.mrf.mxu0
        %v4162 = vadd.f32 0.0, %v4161
        %4163 = vmatmul.bf16.gmra.mxu0 %v4066
        %v4164 = vpop.f32.mrf.mxu0
        %v4165 = vadd.f32 0.0, %v4164
        %v4166 = vpop.f32.mrf.mxu0
        %v4167 = vadd.f32 0.0, %v4166
        %4168 = vmatmul.bf16.gmra.mxu0 %v4067
        %v4169 = vpop.f32.mrf.mxu0
        %v4170 = vadd.f32 0.0, %v4169
        %v4171 = vpop.f32.mrf.mxu0
        %v4172 = vadd.f32 0.0, %v4171
        %4173 = vmatmul.bf16.gmra.mxu0 %v4068
        %v4174 = vpop.f32.mrf.mxu0
        %v4175 = vadd.f32 0.0, %v4174
        %v4176 = vpop.f32.mrf.mxu0
        %v4177 = vadd.f32 0.0, %v4176
        %4178 = vmatmul.bf16.gmra.mxu0 %v4069
        %v4179 = vpop.f32.mrf.mxu0
        %v4180 = vadd.f32 0.0, %v4179
        %v4181 = vpop.f32.mrf.mxu0
        %v4182 = vadd.f32 0.0, %v4181
        %4183 = vmatmul.bf16.gmra.mxu0 %v4070
        %v4184 = vpop.f32.mrf.mxu0
        %v4185 = vadd.f32 0.0, %v4184
        %v4186 = vpop.f32.mrf.mxu0
        %v4187 = vadd.f32 0.0, %v4186
        %4188 = vmatmul.bf16.gmra.mxu0 %v4071
        %v4189 = vpop.f32.mrf.mxu0
        %v4190 = vadd.f32 0.0, %v4189
        %v4191 = vpop.f32.mrf.mxu0
        %v4192 = vadd.f32 0.0, %v4191
        %4193 = vmatmul.bf16.gmra.mxu0 %v4072
        %v4194 = vpop.f32.mrf.mxu0
        %v4195 = vadd.f32 0.0, %v4194
        %v4196 = vpop.f32.mrf.mxu0
        %v4197 = vadd.f32 0.0, %v4196
        %4198 = vmatmul.bf16.gmra.mxu0 %v4073
        %v4199 = vpop.f32.mrf.mxu0
        %v4200 = vadd.f32 0.0, %v4199
        %v4201 = vpop.f32.mrf.mxu0
        %v4202 = vadd.f32 0.0, %v4201
        %4203 = vmatmul.bf16.gmra.mxu0 %v4074
        %v4204 = vpop.f32.mrf.mxu0
        %v4205 = vadd.f32 0.0, %v4204
        %v4206 = vpop.f32.mrf.mxu0
        %v4207 = vadd.f32 0.0, %v4206
        %4208 = vmatmul.bf16.gmra.mxu0 %v4075
        %v4209 = vpop.f32.mrf.mxu0
        %v4210 = vadd.f32 0.0, %v4209
        %v4211 = vpop.f32.mrf.mxu0
        %v4212 = vadd.f32 0.0, %v4211
        %4213 = vmatmul.bf16.gmra.mxu0 %v4076
        %v4214 = vpop.f32.mrf.mxu0
        %v4215 = vadd.f32 0.0, %v4214
        %v4216 = vpop.f32.mrf.mxu0
        %v4217 = vadd.f32 0.0, %v4216
        %4218 = vmatmul.bf16.gmra.mxu0 %v4077
        %v4219 = vpop.f32.mrf.mxu0
        %v4220 = vadd.f32 0.0, %v4219
        %v4221 = vpop.f32.mrf.mxu0
        %v4222 = vadd.f32 0.0, %v4221
        %4223 = vmatmul.bf16.gmra.mxu0 %v4078
        %v4224 = vpop.f32.mrf.mxu0
        %v4225 = vadd.f32 0.0, %v4224
        %v4226 = vpop.f32.mrf.mxu0
        %v4227 = vadd.f32 0.0, %v4226
        %4228 = vmatmul.bf16.gmra.mxu0 %v4079
        %v4229 = vpop.f32.mrf.mxu0
        %v4230 = vadd.f32 0.0, %v4229
        %v4231 = vpop.f32.mrf.mxu0
        %v4232 = vadd.f32 0.0, %v4231
        %4233 = vdwg.mxu0
        %v4234 = vadd.f32 %v3999, %v4155
        %v4235 = vadd.f32 %v4000, %v4157
        %v4236 = vadd.f32 %v4001, %v4160
        %v4237 = vadd.f32 %v4002, %v4162
        %v4238 = vadd.f32 %v4003, %v4165
        %v4239 = vadd.f32 %v4004, %v4167
        %v4240 = vadd.f32 %v4005, %v4170
        %v4241 = vadd.f32 %v4006, %v4172
        %v4242 = vadd.f32 %v4007, %v4175
        %v4243 = vadd.f32 %v4008, %v4177
        %v4244 = vadd.f32 %v4009, %v4180
        %v4245 = vadd.f32 %v4010, %v4182
        %v4246 = vadd.f32 %v4011, %v4185
        %v4247 = vadd.f32 %v4012, %v4187
        %v4248 = vadd.f32 %v4013, %v4190
        %v4249 = vadd.f32 %v4014, %v4192
        %v4250 = vadd.f32 %v4015, %v4195
        %v4251 = vadd.f32 %v4016, %v4197
        %v4252 = vadd.f32 %v4017, %v4200
        %v4253 = vadd.f32 %v4018, %v4202
        %v4254 = vadd.f32 %v4019, %v4205
        %v4255 = vadd.f32 %v4020, %v4207
        %v4256 = vadd.f32 %v4021, %v4210
        %v4257 = vadd.f32 %v4022, %v4212
        %v4258 = vadd.f32 %v4023, %v4215
        %v4259 = vadd.f32 %v4024, %v4217
        %v4260 = vadd.f32 %v4025, %v4220
        %v4261 = vadd.f32 %v4026, %v4222
        %v4262 = vadd.f32 %v4027, %v4225
        %v4263 = vadd.f32 %v4028, %v4227
        %v4264 = vadd.f32 %v4029, %v4230
        %v4265 = vadd.f32 %v4030, %v4232
        %v4266 = vld [vmem:[%s4031 + $0x1] sm:$0xff]
        %v4267 = vld [vmem:[%s4031 + $0x9] sm:$0xff]
        %v4268 = vld [vmem:[%s4031 + $0x19] sm:$0xff]
        %v4269 = vld [vmem:[%s4031 + $0x21] sm:$0xff]
        %v4270 = vld [vmem:[%s4031 + $0x31] sm:$0xff]
        %v4271 = vld [vmem:[%s4031 + $0x39] sm:$0xff]
        %v4272 = vld [vmem:[%s4031 + $0x49] sm:$0xff]
        %v4273 = vld [vmem:[%s4031 + $0x51] sm:$0xff]
        %v4274 = vld [vmem:[%s4031 + $0x61] sm:$0xff]
        %v4275 = vld [vmem:[%s4031 + $0x69] sm:$0xff]
        %v4276 = vld [vmem:[%s4031 + $0x79] sm:$0xff]
        %v4277 = vld [vmem:[%s4031 + $0x81] sm:$0xff]
        %v4278 = vld [vmem:[%s4031 + $0x91] sm:$0xff]
        %v4279 = vld [vmem:[%s4031 + $0x99] sm:$0xff]
        %v4280 = vld [vmem:[%s4031 + $0xa9] sm:$0xff]
        %v4281 = vld [vmem:[%s4031 + $0xb1] sm:$0xff]
        %v4282 = vld [vmem:[%s4031 + $0xc1] sm:$0xff]
        %v4283 = vld [vmem:[%s4031 + $0xc9] sm:$0xff]
        %v4284 = vld [vmem:[%s4031 + $0xd9] sm:$0xff]
        %v4285 = vld [vmem:[%s4031 + $0xe1] sm:$0xff]
        %v4286 = vld [vmem:[%s4031 + $0xf1] sm:$0xff]
        %v4287 = vld [vmem:[%s4031 + $0xf9] sm:$0xff]
        %v4288 = vld [vmem:[%s4031 + $0x109] sm:$0xff]
        %v4289 = vld [vmem:[%s4031 + $0x111] sm:$0xff]
        %v4290 = vld [vmem:[%s4031 + $0x121] sm:$0xff]
        %v4291 = vld [vmem:[%s4031 + $0x129] sm:$0xff]
        %v4292 = vld [vmem:[%s4031 + $0x139] sm:$0xff]
        %v4293 = vld [vmem:[%s4031 + $0x141] sm:$0xff]
        %v4294 = vld [vmem:[%s4031 + $0x151] sm:$0xff]
        %v4295 = vld [vmem:[%s4031 + $0x159] sm:$0xff]
        %v4296 = vld [vmem:[%s4031 + $0x169] sm:$0xff]
        %v4297 = vld [vmem:[%s4031 + $0x171] sm:$0xff]
        %v4298 = vpack.c.bf16 %v4267, %v4266
        %v4299 = vpack.c.bf16 %v4269, %v4268
        %v4300 = vpack.c.bf16 %v4271, %v4270
        %v4301 = vpack.c.bf16 %v4273, %v4272
        %v4302 = vpack.c.bf16 %v4275, %v4274
        %v4303 = vpack.c.bf16 %v4277, %v4276
        %v4304 = vpack.c.bf16 %v4279, %v4278
        %v4305 = vpack.c.bf16 %v4281, %v4280
        %v4306 = vpack.c.bf16 %v4283, %v4282
        %v4307 = vpack.c.bf16 %v4285, %v4284
        %v4308 = vpack.c.bf16 %v4287, %v4286
        %v4309 = vpack.c.bf16 %v4289, %v4288
        %v4310 = vpack.c.bf16 %v4291, %v4290
        %v4311 = vpack.c.bf16 %v4293, %v4292
        %v4312 = vpack.c.bf16 %v4295, %v4294
        %v4313 = vpack.c.bf16 %v4297, %v4296
        %s4314 = scalar_lea.vmem %s3, 448
        %v4315 = vld [vmem:[%s4314] sm:$0xf]
        %v4316 = vld [vmem:[%s4314 + $0x4] sm:$0xf]
        %v4317 = vld [vmem:[%s4314 + $0x8] sm:$0xf]
        %v4318 = vld [vmem:[%s4314 + $0xc] sm:$0xf]
        %v4319 = vld [vmem:[%s4314 + $0x10] sm:$0xf]
        %v4320 = vld [vmem:[%s4314 + $0x14] sm:$0xf]
        %v4321 = vld [vmem:[%s4314 + $0x18] sm:$0xf]
        %v4322 = vld [vmem:[%s4314 + $0x1c] sm:$0xf]
        %v4323 = vld [vmem:[%s4314 + $0x20] sm:$0xf]
        %v4324 = vld [vmem:[%s4314 + $0x24] sm:$0xf]
        %v4325 = vld [vmem:[%s4314 + $0x28] sm:$0xf]
        %v4326 = vld [vmem:[%s4314 + $0x2c] sm:$0xf]
        %v4327 = vld [vmem:[%s4314 + $0x30] sm:$0xf]
        %v4328 = vld [vmem:[%s4314 + $0x34] sm:$0xf]
        %v4329 = vld [vmem:[%s4314 + $0x38] sm:$0xf]
        %v4330 = vld [vmem:[%s4314 + $0x3c] sm:$0xf]
        %v4347 = vunpack.c.l.b16 %v4315
        %v4348 = vunpack.c.l.b16 %v4316
        %v4349 = vunpack.c.l.b16 %v4317
        %v4350 = vunpack.c.l.b16 %v4318
        %v4351 = vunpack.c.l.b16 %v4319
        %v4352 = vunpack.c.l.b16 %v4320
        %v4353 = vunpack.c.l.b16 %v4321
        %v4354 = vunpack.c.l.b16 %v4322
        %v4355 = vunpack.c.l.b16 %v4323
        %v4356 = vunpack.c.l.b16 %v4324
        %v4357 = vunpack.c.l.b16 %v4325
        %v4358 = vunpack.c.l.b16 %v4326
        %v4359 = vunpack.c.l.b16 %v4327
        %v4360 = vunpack.c.l.b16 %v4328
        %v4361 = vunpack.c.l.b16 %v4329
        %v4362 = vunpack.c.l.b16 %v4330
        %v4363 = vpack.c.b16 %v4348, %v4347
        %v4364 = vpack.c.b16 %v4350, %v4349
        %v4365 = vpack.c.b16 %v4352, %v4351
        %v4366 = vpack.c.b16 %v4354, %v4353
        %v4367 = vpack.c.b16 %v4356, %v4355
        %v4368 = vpack.c.b16 %v4358, %v4357
        %v4369 = vpack.c.b16 %v4360, %v4359
        %v4370 = vpack.c.b16 %v4362, %v4361
        %4379 = vmatpush.bf16.msra.mxu0 %v4370
        %4380 = vmatpush.bf16.msra.mxu0 %v4369
        %4381 = vmatpush.bf16.msra.mxu0 %v4368
        %4382 = vmatpush.bf16.msra.mxu0 %v4367
        %4383 = vmatpush.bf16.msra.mxu0 %v4366
        %4384 = vmatpush.bf16.msra.mxu0 %v4365
        %4385 = vmatpush.bf16.msra.mxu0 %v4364
        %4386 = vmatpush.bf16.msra.mxu0 %v4363
        %4387 = vmatmul.bf16.gmra.mxu0 %v4298
        %v4388 = vpop.f32.mrf.mxu0
        %v4389 = vadd.f32 0.0, %v4388
        %v4390 = vpop.f32.mrf.mxu0
        %v4391 = vadd.f32 0.0, %v4390
        %4392 = vmatmul.bf16.gmra.mxu0 %v4299
        %v4393 = vpop.f32.mrf.mxu0
        %v4394 = vadd.f32 0.0, %v4393
        %v4395 = vpop.f32.mrf.mxu0
        %v4396 = vadd.f32 0.0, %v4395
        %4397 = vmatmul.bf16.gmra.mxu0 %v4300
        %v4398 = vpop.f32.mrf.mxu0
        %v4399 = vadd.f32 0.0, %v4398
        %v4400 = vpop.f32.mrf.mxu0
        %v4401 = vadd.f32 0.0, %v4400
        %4402 = vmatmul.bf16.gmra.mxu0 %v4301
        %v4403 = vpop.f32.mrf.mxu0
        %v4404 = vadd.f32 0.0, %v4403
        %v4405 = vpop.f32.mrf.mxu0
        %v4406 = vadd.f32 0.0, %v4405
        %4407 = vmatmul.bf16.gmra.mxu0 %v4302
        %v4408 = vpop.f32.mrf.mxu0
        %v4409 = vadd.f32 0.0, %v4408
        %v4410 = vpop.f32.mrf.mxu0
        %v4411 = vadd.f32 0.0, %v4410
        %4412 = vmatmul.bf16.gmra.mxu0 %v4303
        %v4413 = vpop.f32.mrf.mxu0
        %v4414 = vadd.f32 0.0, %v4413
        %v4415 = vpop.f32.mrf.mxu0
        %v4416 = vadd.f32 0.0, %v4415
        %4417 = vmatmul.bf16.gmra.mxu0 %v4304
        %v4418 = vpop.f32.mrf.mxu0
        %v4419 = vadd.f32 0.0, %v4418
        %v4420 = vpop.f32.mrf.mxu0
        %v4421 = vadd.f32 0.0, %v4420
        %4422 = vmatmul.bf16.gmra.mxu0 %v4305
        %v4423 = vpop.f32.mrf.mxu0
        %v4424 = vadd.f32 0.0, %v4423
        %v4425 = vpop.f32.mrf.mxu0
        %v4426 = vadd.f32 0.0, %v4425
        %4427 = vmatmul.bf16.gmra.mxu0 %v4306
        %v4428 = vpop.f32.mrf.mxu0
        %v4429 = vadd.f32 0.0, %v4428
        %v4430 = vpop.f32.mrf.mxu0
        %v4431 = vadd.f32 0.0, %v4430
        %4432 = vmatmul.bf16.gmra.mxu0 %v4307
        %v4433 = vpop.f32.mrf.mxu0
        %v4434 = vadd.f32 0.0, %v4433
        %v4435 = vpop.f32.mrf.mxu0
        %v4436 = vadd.f32 0.0, %v4435
        %4437 = vmatmul.bf16.gmra.mxu0 %v4308
        %v4438 = vpop.f32.mrf.mxu0
        %v4439 = vadd.f32 0.0, %v4438
        %v4440 = vpop.f32.mrf.mxu0
        %v4441 = vadd.f32 0.0, %v4440
        %4442 = vmatmul.bf16.gmra.mxu0 %v4309
        %v4443 = vpop.f32.mrf.mxu0
        %v4444 = vadd.f32 0.0, %v4443
        %v4445 = vpop.f32.mrf.mxu0
        %v4446 = vadd.f32 0.0, %v4445
        %4447 = vmatmul.bf16.gmra.mxu0 %v4310
        %v4448 = vpop.f32.mrf.mxu0
        %v4449 = vadd.f32 0.0, %v4448
        %v4450 = vpop.f32.mrf.mxu0
        %v4451 = vadd.f32 0.0, %v4450
        %4452 = vmatmul.bf16.gmra.mxu0 %v4311
        %v4453 = vpop.f32.mrf.mxu0
        %v4454 = vadd.f32 0.0, %v4453
        %v4455 = vpop.f32.mrf.mxu0
        %v4456 = vadd.f32 0.0, %v4455
        %4457 = vmatmul.bf16.gmra.mxu0 %v4312
        %v4458 = vpop.f32.mrf.mxu0
        %v4459 = vadd.f32 0.0, %v4458
        %v4460 = vpop.f32.mrf.mxu0
        %v4461 = vadd.f32 0.0, %v4460
        %4462 = vmatmul.bf16.gmra.mxu0 %v4313
        %v4463 = vpop.f32.mrf.mxu0
        %v4464 = vadd.f32 0.0, %v4463
        %v4465 = vpop.f32.mrf.mxu0
        %v4466 = vadd.f32 0.0, %v4465
        %4467 = vdwg.mxu0
        %v4468 = vadd.f32 %v4234, %v4389
        %v4469 = vadd.f32 %v4235, %v4391
        %v4470 = vadd.f32 %v4236, %v4394
        %v4471 = vadd.f32 %v4237, %v4396
        %v4472 = vadd.f32 %v4238, %v4399
        %v4473 = vadd.f32 %v4239, %v4401
        %v4474 = vadd.f32 %v4240, %v4404
        %v4475 = vadd.f32 %v4241, %v4406
        %v4476 = vadd.f32 %v4242, %v4409
        %v4477 = vadd.f32 %v4243, %v4411
        %v4478 = vadd.f32 %v4244, %v4414
        %v4479 = vadd.f32 %v4245, %v4416
        %v4480 = vadd.f32 %v4246, %v4419
        %v4481 = vadd.f32 %v4247, %v4421
        %v4482 = vadd.f32 %v4248, %v4424
        %v4483 = vadd.f32 %v4249, %v4426
        %v4484 = vadd.f32 %v4250, %v4429
        %v4485 = vadd.f32 %v4251, %v4431
        %v4486 = vadd.f32 %v4252, %v4434
        %v4487 = vadd.f32 %v4253, %v4436
        %v4488 = vadd.f32 %v4254, %v4439
        %v4489 = vadd.f32 %v4255, %v4441
        %v4490 = vadd.f32 %v4256, %v4444
        %v4491 = vadd.f32 %v4257, %v4446
        %v4492 = vadd.f32 %v4258, %v4449
        %v4493 = vadd.f32 %v4259, %v4451
        %v4494 = vadd.f32 %v4260, %v4454
        %v4495 = vadd.f32 %v4261, %v4456
        %v4496 = vadd.f32 %v4262, %v4459
        %v4497 = vadd.f32 %v4263, %v4461
        %v4498 = vadd.f32 %v4264, %v4464
        %v4499 = vadd.f32 %v4265, %v4466
        %v4500 = vld [vmem:[%s4031 + $0x2] sm:$0xff]
        %v4501 = vld [vmem:[%s4031 + $0xa] sm:$0xff]
        %v4502 = vld [vmem:[%s4031 + $0x1a] sm:$0xff]
        %v4503 = vld [vmem:[%s4031 + $0x22] sm:$0xff]
        %v4504 = vld [vmem:[%s4031 + $0x32] sm:$0xff]
        %v4505 = vld [vmem:[%s4031 + $0x3a] sm:$0xff]
        %v4506 = vld [vmem:[%s4031 + $0x4a] sm:$0xff]
        %v4507 = vld [vmem:[%s4031 + $0x52] sm:$0xff]
        %v4508 = vld [vmem:[%s4031 + $0x62] sm:$0xff]
        %v4509 = vld [vmem:[%s4031 + $0x6a] sm:$0xff]
        %v4510 = vld [vmem:[%s4031 + $0x7a] sm:$0xff]
        %v4511 = vld [vmem:[%s4031 + $0x82] sm:$0xff]
        %v4512 = vld [vmem:[%s4031 + $0x92] sm:$0xff]
        %v4513 = vld [vmem:[%s4031 + $0x9a] sm:$0xff]
        %v4514 = vld [vmem:[%s4031 + $0xaa] sm:$0xff]
        %v4515 = vld [vmem:[%s4031 + $0xb2] sm:$0xff]
        %v4516 = vld [vmem:[%s4031 + $0xc2] sm:$0xff]
        %v4517 = vld [vmem:[%s4031 + $0xca] sm:$0xff]
        %v4518 = vld [vmem:[%s4031 + $0xda] sm:$0xff]
        %v4519 = vld [vmem:[%s4031 + $0xe2] sm:$0xff]
        %v4520 = vld [vmem:[%s4031 + $0xf2] sm:$0xff]
        %v4521 = vld [vmem:[%s4031 + $0xfa] sm:$0xff]
        %v4522 = vld [vmem:[%s4031 + $0x10a] sm:$0xff]
        %v4523 = vld [vmem:[%s4031 + $0x112] sm:$0xff]
        %v4524 = vld [vmem:[%s4031 + $0x122] sm:$0xff]
        %v4525 = vld [vmem:[%s4031 + $0x12a] sm:$0xff]
        %v4526 = vld [vmem:[%s4031 + $0x13a] sm:$0xff]
        %v4527 = vld [vmem:[%s4031 + $0x142] sm:$0xff]
        %v4528 = vld [vmem:[%s4031 + $0x152] sm:$0xff]
        %v4529 = vld [vmem:[%s4031 + $0x15a] sm:$0xff]
        %v4530 = vld [vmem:[%s4031 + $0x16a] sm:$0xff]
        %v4531 = vld [vmem:[%s4031 + $0x172] sm:$0xff]
        %v4532 = vpack.c.bf16 %v4501, %v4500
        %v4533 = vpack.c.bf16 %v4503, %v4502
        %v4534 = vpack.c.bf16 %v4505, %v4504
        %v4535 = vpack.c.bf16 %v4507, %v4506
        %v4536 = vpack.c.bf16 %v4509, %v4508
        %v4537 = vpack.c.bf16 %v4511, %v4510
        %v4538 = vpack.c.bf16 %v4513, %v4512
        %v4539 = vpack.c.bf16 %v4515, %v4514
        %v4540 = vpack.c.bf16 %v4517, %v4516
        %v4541 = vpack.c.bf16 %v4519, %v4518
        %v4542 = vpack.c.bf16 %v4521, %v4520
        %v4543 = vpack.c.bf16 %v4523, %v4522
        %v4544 = vpack.c.bf16 %v4525, %v4524
        %v4545 = vpack.c.bf16 %v4527, %v4526
        %v4546 = vpack.c.bf16 %v4529, %v4528
        %v4547 = vpack.c.bf16 %v4531, %v4530
        %s4548 = scalar_lea.vmem %s3, 512
        %v4549 = vld [vmem:[%s4548] sm:$0xf]
        %v4550 = vld [vmem:[%s4548 + $0x4] sm:$0xf]
        %v4551 = vld [vmem:[%s4548 + $0x8] sm:$0xf]
        %v4552 = vld [vmem:[%s4548 + $0xc] sm:$0xf]
        %v4553 = vld [vmem:[%s4548 + $0x10] sm:$0xf]
        %v4554 = vld [vmem:[%s4548 + $0x14] sm:$0xf]
        %v4555 = vld [vmem:[%s4548 + $0x18] sm:$0xf]
        %v4556 = vld [vmem:[%s4548 + $0x1c] sm:$0xf]
        %v4557 = vld [vmem:[%s4548 + $0x20] sm:$0xf]
        %v4558 = vld [vmem:[%s4548 + $0x24] sm:$0xf]
        %v4559 = vld [vmem:[%s4548 + $0x28] sm:$0xf]
        %v4560 = vld [vmem:[%s4548 + $0x2c] sm:$0xf]
        %v4561 = vld [vmem:[%s4548 + $0x30] sm:$0xf]
        %v4562 = vld [vmem:[%s4548 + $0x34] sm:$0xf]
        %v4563 = vld [vmem:[%s4548 + $0x38] sm:$0xf]
        %v4564 = vld [vmem:[%s4548 + $0x3c] sm:$0xf]
        %v4581 = vunpack.c.l.b16 %v4549
        %v4582 = vunpack.c.l.b16 %v4550
        %v4583 = vunpack.c.l.b16 %v4551
        %v4584 = vunpack.c.l.b16 %v4552
        %v4585 = vunpack.c.l.b16 %v4553
        %v4586 = vunpack.c.l.b16 %v4554
        %v4587 = vunpack.c.l.b16 %v4555
        %v4588 = vunpack.c.l.b16 %v4556
        %v4589 = vunpack.c.l.b16 %v4557
        %v4590 = vunpack.c.l.b16 %v4558
        %v4591 = vunpack.c.l.b16 %v4559
        %v4592 = vunpack.c.l.b16 %v4560
        %v4593 = vunpack.c.l.b16 %v4561
        %v4594 = vunpack.c.l.b16 %v4562
        %v4595 = vunpack.c.l.b16 %v4563
        %v4596 = vunpack.c.l.b16 %v4564
        %v4597 = vpack.c.b16 %v4582, %v4581
        %v4598 = vpack.c.b16 %v4584, %v4583
        %v4599 = vpack.c.b16 %v4586, %v4585
        %v4600 = vpack.c.b16 %v4588, %v4587
        %v4601 = vpack.c.b16 %v4590, %v4589
        %v4602 = vpack.c.b16 %v4592, %v4591
        %v4603 = vpack.c.b16 %v4594, %v4593
        %v4604 = vpack.c.b16 %v4596, %v4595
        %4613 = vmatpush.bf16.msra.mxu0 %v4604
        %4614 = vmatpush.bf16.msra.mxu0 %v4603
        %4615 = vmatpush.bf16.msra.mxu0 %v4602
        %4616 = vmatpush.bf16.msra.mxu0 %v4601
        %4617 = vmatpush.bf16.msra.mxu0 %v4600
        %4618 = vmatpush.bf16.msra.mxu0 %v4599
        %4619 = vmatpush.bf16.msra.mxu0 %v4598
        %4620 = vmatpush.bf16.msra.mxu0 %v4597
        %4621 = vmatmul.bf16.gmra.mxu0 %v4532
        %v4622 = vpop.f32.mrf.mxu0
        %v4623 = vadd.f32 0.0, %v4622
        %v4624 = vpop.f32.mrf.mxu0
        %v4625 = vadd.f32 0.0, %v4624
        %4626 = vmatmul.bf16.gmra.mxu0 %v4533
        %v4627 = vpop.f32.mrf.mxu0
        %v4628 = vadd.f32 0.0, %v4627
        %v4629 = vpop.f32.mrf.mxu0
        %v4630 = vadd.f32 0.0, %v4629
        %4631 = vmatmul.bf16.gmra.mxu0 %v4534
        %v4632 = vpop.f32.mrf.mxu0
        %v4633 = vadd.f32 0.0, %v4632
        %v4634 = vpop.f32.mrf.mxu0
        %v4635 = vadd.f32 0.0, %v4634
        %4636 = vmatmul.bf16.gmra.mxu0 %v4535
        %v4637 = vpop.f32.mrf.mxu0
        %v4638 = vadd.f32 0.0, %v4637
        %v4639 = vpop.f32.mrf.mxu0
        %v4640 = vadd.f32 0.0, %v4639
        %4641 = vmatmul.bf16.gmra.mxu0 %v4536
        %v4642 = vpop.f32.mrf.mxu0
        %v4643 = vadd.f32 0.0, %v4642
        %v4644 = vpop.f32.mrf.mxu0
        %v4645 = vadd.f32 0.0, %v4644
        %4646 = vmatmul.bf16.gmra.mxu0 %v4537
        %v4647 = vpop.f32.mrf.mxu0
        %v4648 = vadd.f32 0.0, %v4647
        %v4649 = vpop.f32.mrf.mxu0
        %v4650 = vadd.f32 0.0, %v4649
        %4651 = vmatmul.bf16.gmra.mxu0 %v4538
        %v4652 = vpop.f32.mrf.mxu0
        %v4653 = vadd.f32 0.0, %v4652
        %v4654 = vpop.f32.mrf.mxu0
        %v4655 = vadd.f32 0.0, %v4654
        %4656 = vmatmul.bf16.gmra.mxu0 %v4539
        %v4657 = vpop.f32.mrf.mxu0
        %v4658 = vadd.f32 0.0, %v4657
        %v4659 = vpop.f32.mrf.mxu0
        %v4660 = vadd.f32 0.0, %v4659
        %4661 = vmatmul.bf16.gmra.mxu0 %v4540
        %v4662 = vpop.f32.mrf.mxu0
        %v4663 = vadd.f32 0.0, %v4662
        %v4664 = vpop.f32.mrf.mxu0
        %v4665 = vadd.f32 0.0, %v4664
        %4666 = vmatmul.bf16.gmra.mxu0 %v4541
        %v4667 = vpop.f32.mrf.mxu0
        %v4668 = vadd.f32 0.0, %v4667
        %v4669 = vpop.f32.mrf.mxu0
        %v4670 = vadd.f32 0.0, %v4669
        %4671 = vmatmul.bf16.gmra.mxu0 %v4542
        %v4672 = vpop.f32.mrf.mxu0
        %v4673 = vadd.f32 0.0, %v4672
        %v4674 = vpop.f32.mrf.mxu0
        %v4675 = vadd.f32 0.0, %v4674
        %4676 = vmatmul.bf16.gmra.mxu0 %v4543
        %v4677 = vpop.f32.mrf.mxu0
        %v4678 = vadd.f32 0.0, %v4677
        %v4679 = vpop.f32.mrf.mxu0
        %v4680 = vadd.f32 0.0, %v4679
        %4681 = vmatmul.bf16.gmra.mxu0 %v4544
        %v4682 = vpop.f32.mrf.mxu0
        %v4683 = vadd.f32 0.0, %v4682
        %v4684 = vpop.f32.mrf.mxu0
        %v4685 = vadd.f32 0.0, %v4684
        %4686 = vmatmul.bf16.gmra.mxu0 %v4545
        %v4687 = vpop.f32.mrf.mxu0
        %v4688 = vadd.f32 0.0, %v4687
        %v4689 = vpop.f32.mrf.mxu0
        %v4690 = vadd.f32 0.0, %v4689
        %4691 = vmatmul.bf16.gmra.mxu0 %v4546
        %v4692 = vpop.f32.mrf.mxu0
        %v4693 = vadd.f32 0.0, %v4692
        %v4694 = vpop.f32.mrf.mxu0
        %v4695 = vadd.f32 0.0, %v4694
        %4696 = vmatmul.bf16.gmra.mxu0 %v4547
        %v4697 = vpop.f32.mrf.mxu0
        %v4698 = vadd.f32 0.0, %v4697
        %v4699 = vpop.f32.mrf.mxu0
        %v4700 = vadd.f32 0.0, %v4699
        %4701 = vdwg.mxu0
        %v4702 = vadd.f32 %v4468, %v4623
        %v4703 = vadd.f32 %v4469, %v4625
        %v4704 = vadd.f32 %v4470, %v4628
        %v4705 = vadd.f32 %v4471, %v4630
        %v4706 = vadd.f32 %v4472, %v4633
        %v4707 = vadd.f32 %v4473, %v4635
        %v4708 = vadd.f32 %v4474, %v4638
        %v4709 = vadd.f32 %v4475, %v4640
        %v4710 = vadd.f32 %v4476, %v4643
        %v4711 = vadd.f32 %v4477, %v4645
        %v4712 = vadd.f32 %v4478, %v4648
        %v4713 = vadd.f32 %v4479, %v4650
        %v4714 = vadd.f32 %v4480, %v4653
        %v4715 = vadd.f32 %v4481, %v4655
        %v4716 = vadd.f32 %v4482, %v4658
        %v4717 = vadd.f32 %v4483, %v4660
        %v4718 = vadd.f32 %v4484, %v4663
        %v4719 = vadd.f32 %v4485, %v4665
        %v4720 = vadd.f32 %v4486, %v4668
        %v4721 = vadd.f32 %v4487, %v4670
        %v4722 = vadd.f32 %v4488, %v4673
        %v4723 = vadd.f32 %v4489, %v4675
        %v4724 = vadd.f32 %v4490, %v4678
        %v4725 = vadd.f32 %v4491, %v4680
        %v4726 = vadd.f32 %v4492, %v4683
        %v4727 = vadd.f32 %v4493, %v4685
        %v4728 = vadd.f32 %v4494, %v4688
        %v4729 = vadd.f32 %v4495, %v4690
        %v4730 = vadd.f32 %v4496, %v4693
        %v4731 = vadd.f32 %v4497, %v4695
        %v4732 = vadd.f32 %v4498, %v4698
        %v4733 = vadd.f32 %v4499, %v4700
        %v4734 = vld [vmem:[%s1697 + $0x2] sm:$0xff]
        %v4735 = vld [vmem:[%s1697 + $0xa] sm:$0xff]
        %v4736 = vld [vmem:[%s1697 + $0x1a] sm:$0xff]
        %v4737 = vld [vmem:[%s1697 + $0x22] sm:$0xff]
        %v4738 = vld [vmem:[%s1697 + $0x32] sm:$0xff]
        %v4739 = vld [vmem:[%s1697 + $0x3a] sm:$0xff]
        %v4740 = vld [vmem:[%s1697 + $0x4a] sm:$0xff]
        %v4741 = vld [vmem:[%s1697 + $0x52] sm:$0xff]
        %v4742 = vld [vmem:[%s1697 + $0x62] sm:$0xff]
        %v4743 = vld [vmem:[%s1697 + $0x6a] sm:$0xff]
        %v4744 = vld [vmem:[%s1697 + $0x7a] sm:$0xff]
        %v4745 = vld [vmem:[%s1697 + $0x82] sm:$0xff]
        %v4746 = vld [vmem:[%s1697 + $0x92] sm:$0xff]
        %v4747 = vld [vmem:[%s1697 + $0x9a] sm:$0xff]
        %v4748 = vld [vmem:[%s1697 + $0xaa] sm:$0xff]
        %v4749 = vld [vmem:[%s1697 + $0xb2] sm:$0xff]
        %v4750 = vld [vmem:[%s1697 + $0xc2] sm:$0xff]
        %v4751 = vld [vmem:[%s1697 + $0xca] sm:$0xff]
        %v4752 = vld [vmem:[%s1697 + $0xda] sm:$0xff]
        %v4753 = vld [vmem:[%s1697 + $0xe2] sm:$0xff]
        %v4754 = vld [vmem:[%s1697 + $0xf2] sm:$0xff]
        %v4755 = vld [vmem:[%s1697 + $0xfa] sm:$0xff]
        %v4756 = vld [vmem:[%s1697 + $0x10a] sm:$0xff]
        %v4757 = vld [vmem:[%s1697 + $0x112] sm:$0xff]
        %v4758 = vld [vmem:[%s1697 + $0x122] sm:$0xff]
        %v4759 = vld [vmem:[%s1697 + $0x12a] sm:$0xff]
        %v4760 = vld [vmem:[%s1697 + $0x13a] sm:$0xff]
        %v4761 = vld [vmem:[%s1697 + $0x142] sm:$0xff]
        %v4762 = vld [vmem:[%s1697 + $0x152] sm:$0xff]
        %v4763 = vld [vmem:[%s1697 + $0x15a] sm:$0xff]
        %v4764 = vld [vmem:[%s1697 + $0x16a] sm:$0xff]
        %v4765 = vld [vmem:[%s1697 + $0x172] sm:$0xff]
        %v4766 = vld [vmem:[%s4] sm:$0x1]
        %v4768 = vperm.slane %v4766, 0
        %v4770 = vadd.f32 %v4702, %v4768
        %v4771 = vadd.f32 %v4703, %v4768
        %v4772 = vadd.f32 %v4704, %v4768
        %v4773 = vadd.f32 %v4705, %v4768
        %v4774 = vadd.f32 %v4706, %v4768
        %v4775 = vadd.f32 %v4707, %v4768
        %v4776 = vadd.f32 %v4708, %v4768
        %v4777 = vadd.f32 %v4709, %v4768
        %v4778 = vadd.f32 %v4710, %v4768
        %v4779 = vadd.f32 %v4711, %v4768
        %v4780 = vadd.f32 %v4712, %v4768
        %v4781 = vadd.f32 %v4713, %v4768
        %v4782 = vadd.f32 %v4714, %v4768
        %v4783 = vadd.f32 %v4715, %v4768
        %v4784 = vadd.f32 %v4716, %v4768
        %v4785 = vadd.f32 %v4717, %v4768
        %v4786 = vadd.f32 %v4718, %v4768
        %v4787 = vadd.f32 %v4719, %v4768
        %v4788 = vadd.f32 %v4720, %v4768
        %v4789 = vadd.f32 %v4721, %v4768
        %v4790 = vadd.f32 %v4722, %v4768
        %v4791 = vadd.f32 %v4723, %v4768
        %v4792 = vadd.f32 %v4724, %v4768
        %v4793 = vadd.f32 %v4725, %v4768
        %v4794 = vadd.f32 %v4726, %v4768
        %v4795 = vadd.f32 %v4727, %v4768
        %v4796 = vadd.f32 %v4728, %v4768
        %v4797 = vadd.f32 %v4729, %v4768
        %v4798 = vadd.f32 %v4730, %v4768
        %v4799 = vadd.f32 %v4731, %v4768
        %v4800 = vadd.f32 %v4732, %v4768
        %v4801 = vadd.f32 %v4733, %v4768
        %v4802 = vadd.f32 %v4770, %v4734
        %v4803 = vadd.f32 %v4771, %v4735
        %v4804 = vadd.f32 %v4772, %v4736
        %v4805 = vadd.f32 %v4773, %v4737
        %v4806 = vadd.f32 %v4774, %v4738
        %v4807 = vadd.f32 %v4775, %v4739
        %v4808 = vadd.f32 %v4776, %v4740
        %v4809 = vadd.f32 %v4777, %v4741
        %v4810 = vadd.f32 %v4778, %v4742
        %v4811 = vadd.f32 %v4779, %v4743
        %v4812 = vadd.f32 %v4780, %v4744
        %v4813 = vadd.f32 %v4781, %v4745
        %v4814 = vadd.f32 %v4782, %v4746
        %v4815 = vadd.f32 %v4783, %v4747
        %v4816 = vadd.f32 %v4784, %v4748
        %v4817 = vadd.f32 %v4785, %v4749
        %v4818 = vadd.f32 %v4786, %v4750
        %v4819 = vadd.f32 %v4787, %v4751
        %v4820 = vadd.f32 %v4788, %v4752
        %v4821 = vadd.f32 %v4789, %v4753
        %v4822 = vadd.f32 %v4790, %v4754
        %v4823 = vadd.f32 %v4791, %v4755
        %v4824 = vadd.f32 %v4792, %v4756
        %v4825 = vadd.f32 %v4793, %v4757
        %v4826 = vadd.f32 %v4794, %v4758
        %v4827 = vadd.f32 %v4795, %v4759
        %v4828 = vadd.f32 %v4796, %v4760
        %v4829 = vadd.f32 %v4797, %v4761
        %v4830 = vadd.f32 %v4798, %v4762
        %v4831 = vadd.f32 %v4799, %v4763
        %v4832 = vadd.f32 %v4800, %v4764
        %v4833 = vadd.f32 %v4801, %v4765
        %vm4834 = vcmp.ge.f32.partialorder %v4802, 0.0
        %vm4835 = vcmp.ge.f32.partialorder %v4803, 0.0
        %vm4836 = vcmp.ge.f32.partialorder %v4804, 0.0
        %vm4837 = vcmp.ge.f32.partialorder %v4805, 0.0
        %vm4838 = vcmp.ge.f32.partialorder %v4806, 0.0
        %vm4839 = vcmp.ge.f32.partialorder %v4807, 0.0
        %vm4840 = vcmp.ge.f32.partialorder %v4808, 0.0
        %vm4841 = vcmp.ge.f32.partialorder %v4809, 0.0
        %vm4842 = vcmp.ge.f32.partialorder %v4810, 0.0
        %vm4843 = vcmp.ge.f32.partialorder %v4811, 0.0
        %vm4844 = vcmp.ge.f32.partialorder %v4812, 0.0
        %vm4845 = vcmp.ge.f32.partialorder %v4813, 0.0
        %vm4846 = vcmp.ge.f32.partialorder %v4814, 0.0
        %vm4847 = vcmp.ge.f32.partialorder %v4815, 0.0
        %vm4848 = vcmp.ge.f32.partialorder %v4816, 0.0
        %vm4849 = vcmp.ge.f32.partialorder %v4817, 0.0
        %vm4850 = vcmp.ge.f32.partialorder %v4818, 0.0
        %vm4851 = vcmp.ge.f32.partialorder %v4819, 0.0
        %vm4852 = vcmp.ge.f32.partialorder %v4820, 0.0
        %vm4853 = vcmp.ge.f32.partialorder %v4821, 0.0
        %vm4854 = vcmp.ge.f32.partialorder %v4822, 0.0
        %vm4855 = vcmp.ge.f32.partialorder %v4823, 0.0
        %vm4856 = vcmp.ge.f32.partialorder %v4824, 0.0
        %vm4857 = vcmp.ge.f32.partialorder %v4825, 0.0
        %vm4858 = vcmp.ge.f32.partialorder %v4826, 0.0
        %vm4859 = vcmp.ge.f32.partialorder %v4827, 0.0
        %vm4860 = vcmp.ge.f32.partialorder %v4828, 0.0
        %vm4861 = vcmp.ge.f32.partialorder %v4829, 0.0
        %vm4862 = vcmp.ge.f32.partialorder %v4830, 0.0
        %vm4863 = vcmp.ge.f32.partialorder %v4831, 0.0
        %vm4864 = vcmp.ge.f32.partialorder %v4832, 0.0
        %vm4865 = vcmp.ge.f32.partialorder %v4833, 0.0
        %v4866 = vmul.f32 %v4802, 0.01
        %v4867 = vmul.f32 %v4803, 0.01
        %v4868 = vmul.f32 %v4804, 0.01
        %v4869 = vmul.f32 %v4805, 0.01
        %v4870 = vmul.f32 %v4806, 0.01
        %v4871 = vmul.f32 %v4807, 0.01
        %v4872 = vmul.f32 %v4808, 0.01
        %v4873 = vmul.f32 %v4809, 0.01
        %v4874 = vmul.f32 %v4810, 0.01
        %v4875 = vmul.f32 %v4811, 0.01
        %v4876 = vmul.f32 %v4812, 0.01
        %v4877 = vmul.f32 %v4813, 0.01
        %v4878 = vmul.f32 %v4814, 0.01
        %v4879 = vmul.f32 %v4815, 0.01
        %v4880 = vmul.f32 %v4816, 0.01
        %v4881 = vmul.f32 %v4817, 0.01
        %v4882 = vmul.f32 %v4818, 0.01
        %v4883 = vmul.f32 %v4819, 0.01
        %v4884 = vmul.f32 %v4820, 0.01
        %v4885 = vmul.f32 %v4821, 0.01
        %v4886 = vmul.f32 %v4822, 0.01
        %v4887 = vmul.f32 %v4823, 0.01
        %v4888 = vmul.f32 %v4824, 0.01
        %v4889 = vmul.f32 %v4825, 0.01
        %v4890 = vmul.f32 %v4826, 0.01
        %v4891 = vmul.f32 %v4827, 0.01
        %v4892 = vmul.f32 %v4828, 0.01
        %v4893 = vmul.f32 %v4829, 0.01
        %v4894 = vmul.f32 %v4830, 0.01
        %v4895 = vmul.f32 %v4831, 0.01
        %v4896 = vmul.f32 %v4832, 0.01
        %v4897 = vmul.f32 %v4833, 0.01
        %v4898 = vsel %vm4834, %v4802, %v4866
        %v4899 = vsel %vm4835, %v4803, %v4867
        %v4900 = vsel %vm4836, %v4804, %v4868
        %v4901 = vsel %vm4837, %v4805, %v4869
        %v4902 = vsel %vm4838, %v4806, %v4870
        %v4903 = vsel %vm4839, %v4807, %v4871
        %v4904 = vsel %vm4840, %v4808, %v4872
        %v4905 = vsel %vm4841, %v4809, %v4873
        %v4906 = vsel %vm4842, %v4810, %v4874
        %v4907 = vsel %vm4843, %v4811, %v4875
        %v4908 = vsel %vm4844, %v4812, %v4876
        %v4909 = vsel %vm4845, %v4813, %v4877
        %v4910 = vsel %vm4846, %v4814, %v4878
        %v4911 = vsel %vm4847, %v4815, %v4879
        %v4912 = vsel %vm4848, %v4816, %v4880
        %v4913 = vsel %vm4849, %v4817, %v4881
        %v4914 = vsel %vm4850, %v4818, %v4882
        %v4915 = vsel %vm4851, %v4819, %v4883
        %v4916 = vsel %vm4852, %v4820, %v4884
        %v4917 = vsel %vm4853, %v4821, %v4885
        %v4918 = vsel %vm4854, %v4822, %v4886
        %v4919 = vsel %vm4855, %v4823, %v4887
        %v4920 = vsel %vm4856, %v4824, %v4888
        %v4921 = vsel %vm4857, %v4825, %v4889
        %v4922 = vsel %vm4858, %v4826, %v4890
        %v4923 = vsel %vm4859, %v4827, %v4891
        %v4924 = vsel %vm4860, %v4828, %v4892
        %v4925 = vsel %vm4861, %v4829, %v4893
        %v4926 = vsel %vm4862, %v4830, %v4894
        %v4927 = vsel %vm4863, %v4831, %v4895
        %v4928 = vsel %vm4864, %v4832, %v4896
        %v4929 = vsel %vm4865, %v4833, %v4897
        %4930 = vst [vmem:[%s236] sm:$0xff] %v4898
        %4931 = vst [vmem:[%s236 + $0x8] sm:$0xff] %v4899
        %4932 = vst [vmem:[%s236 + $0x10] sm:$0xff] %v4900
        %4933 = vst [vmem:[%s236 + $0x18] sm:$0xff] %v4901
        %4934 = vst [vmem:[%s236 + $0x20] sm:$0xff] %v4902
        %4935 = vst [vmem:[%s236 + $0x28] sm:$0xff] %v4903
        %4936 = vst [vmem:[%s236 + $0x30] sm:$0xff] %v4904
        %4937 = vst [vmem:[%s236 + $0x38] sm:$0xff] %v4905
        %4938 = vst [vmem:[%s236 + $0x40] sm:$0xff] %v4906
        %4939 = vst [vmem:[%s236 + $0x48] sm:$0xff] %v4907
        %4940 = vst [vmem:[%s236 + $0x50] sm:$0xff] %v4908
        %4941 = vst [vmem:[%s236 + $0x58] sm:$0xff] %v4909
        %4942 = vst [vmem:[%s236 + $0x60] sm:$0xff] %v4910
        %4943 = vst [vmem:[%s236 + $0x68] sm:$0xff] %v4911
        %4944 = vst [vmem:[%s236 + $0x70] sm:$0xff] %v4912
        %4945 = vst [vmem:[%s236 + $0x78] sm:$0xff] %v4913
        %4946 = vst [vmem:[%s236 + $0x80] sm:$0xff] %v4914
        %4947 = vst [vmem:[%s236 + $0x88] sm:$0xff] %v4915
        %4948 = vst [vmem:[%s236 + $0x90] sm:$0xff] %v4916
        %4949 = vst [vmem:[%s236 + $0x98] sm:$0xff] %v4917
        %4950 = vst [vmem:[%s236 + $0xa0] sm:$0xff] %v4918
        %4951 = vst [vmem:[%s236 + $0xa8] sm:$0xff] %v4919
        %4952 = vst [vmem:[%s236 + $0xb0] sm:$0xff] %v4920
        %4953 = vst [vmem:[%s236 + $0xb8] sm:$0xff] %v4921
        %4954 = vst [vmem:[%s236 + $0xc0] sm:$0xff] %v4922
        %4955 = vst [vmem:[%s236 + $0xc8] sm:$0xff] %v4923
        %4956 = vst [vmem:[%s236 + $0xd0] sm:$0xff] %v4924
        %4957 = vst [vmem:[%s236 + $0xd8] sm:$0xff] %v4925
        %4958 = vst [vmem:[%s236 + $0xe0] sm:$0xff] %v4926
        %4959 = vst [vmem:[%s236 + $0xe8] sm:$0xff] %v4927
        %4960 = vst [vmem:[%s236 + $0xf0] sm:$0xff] %v4928
        %4961 = vst [vmem:[%s236 + $0xf8] sm:$0xff] %v4929
        %s4962 = sand.u32 %s153, 1
        %s4963 = scalar_lea.sflag [#allocation4], %s4962
        %s4964 = sand.u32 %s153, 1
        %s4965 = smul.addr %s4964, 256
        %s4966 = scalar_lea.vmem [#allocation3], %s4965
        // Predicated region
        $region45: #{tpu_custom_call.1} parent=39 // pred_check
          %p4967 = pneg %p163
        $region46: #{tpu_custom_call.1} parent=39 // pred_check_branch
          %4969 = sbr.rel (%p4967) target = $region48
        $region47: #{tpu_custom_call.1} parent=39 // pred_region
          %s4970 = smul.u32 16, %s24
          %4972 = vsyncadd %s4963, 0
          %s4973 = smul.addr %s4970, 2
          %s4974 = smul.addr %s23, 32
          %s4975 = sadd.s32 %s4973, %s4974
          %s4976 = smul.addr %s4975, 8
          %s4977 = scalar_lea.hbm %s5, %s4976
          %s4978 = sshll.u32 %s4966, 4
          %s4979 = int_to_ptr.vmem [resolvable:$true] %s4978
          %s4980 = sshll.u32 %s4977, 4
          %s4981 = int_to_ptr.hbm [resolvable:$true] %s4980
          %4986 = dma.vmem_to_hbm [thread:$0]  %s4979, 4096, %s4981, %s4963, 128, 128, 8
        $region48: #{tpu_custom_call.1} parent=39 // pred_fallthru
          _
      $region40: #{tpu_custom_call.1} parent=5 // pred_fallthru
        _
      %p4987 = scmp.le.s32.totalorder 2, %s14
      // Predicated region
      $region49: #{tpu_custom_call.1} parent=5 // pred_check
        %p4988 = pneg %p4987
      $region50: #{tpu_custom_call.1} parent=5 // pred_check_branch
        %4990 = sbr.rel (%p4988) target = $region52
      $region51: #{tpu_custom_call.1} parent=5 // pred_region
        %s4991 = ssub.s32 %s14, 2
        // Predicated region
        $region53: #{tpu_custom_call.1} parent=51 // pred_check
          %p4992 = pneg %p169
        $region54: #{tpu_custom_call.1} parent=51 // pred_check_branch
          %4994 = sbr.rel (%p4992) target = $region56
        $region55: #{tpu_custom_call.1} parent=51 // pred_region
          %s4995 = sand.u32 %s154, 1
          %s4996 = scalar_lea.sflag [#allocation4], %s4995
          %s4997 = sand.u32 %s154, 1
          %s4998 = smul.addr %s4997, 256
          %s4999 = scalar_lea.vmem [#allocation3], %s4998
          %5001 = dma.done %s4996, 4096
        $region56: #{tpu_custom_call.1} parent=51 // pred_fallthru
          _
      $region52: #{tpu_custom_call.1} parent=5 // pred_fallthru
        _
    $region6: #{tpu_custom_call.1} parent=1 // loop_footer
      %s18 = sadd.s32 1, %s14
    $region7: #{tpu_custom_call.1} parent=1 // loop_footer_branch
      %13 = sbr.rel target = $region3
    $region8: #{tpu_custom_call.1} parent=1 // loop_exit
      _
    %5002 = vsyncpa [#allocation4], 1
    %s5003 = scalar_lea.sflag [#allocation4], 1
    %5004 = vsyncpa %s5003, 1

</llo_original>
